<compile_context>
chip_gen: v5e
topology: v5e:2x2
jax: 0.10.0
libtpu: 0.0.40
codegen_flags: <defaults>
</compile_context>

<pallas_src>
import functools

import jax
import jax.numpy as jnp
from jax.experimental import pallas as pl
from jax.experimental.pallas import tpu as pltpu


def _round_up(x, m):
    return ((x + m - 1) // m) * m


def _draft_mlp_kernel(ids_ref, t_ref, w2_ref, w3_ref, b_ref, o_ref, *,
                      slots_per_group):
    TB, S = ids_ref.shape
    SC, H = t_ref.shape
    C = SC // S
    H2 = w2_ref.shape[1]

    # Clamp ids exactly like jnp.take would.
    ids = jnp.clip(ids_ref[...], 0, C - 1)                       # (TB, S) int32

    # ---- Layer 1: folded-embedding gather as grouped one-hot MXU matmuls ----
    # Group `slots_per_group` draft slots so the contraction depth per matmul
    # is slots_per_group * C (= 256 for C=64), lane-dense.
    h1 = None
    for s0 in range(0, S, slots_per_group):
        g = min(slots_per_group, S - s0)             # slots in this group
        width = g * C                                # K for this group's matmul
        iota = jax.lax.broadcasted_iota(jnp.int32, (TB, width), 1)
        # target[b, t*C + c] == ids[b, s0+t] + t*C  (select ladder over slots)
        target = ids[:, s0:s0 + 1]
        for t in range(1, g):
            target = jnp.where(iota >= t * C,
                               ids[:, s0 + t:s0 + t + 1] + t * C, target)
        onehot = (iota == target).astype(t_ref.dtype)            # (TB, width)
        part = jnp.dot(onehot, t_ref[s0 * C:(s0 + g) * C, :],
                       preferred_element_type=jnp.float32)       # (TB, H) f32
        h1 = part if h1 is None else h1 + part
    h1 = jnp.maximum(h1 + b_ref[:, 0:H], 0.0)        # bias + ReLU in f32
    # (Dropout is identity at inference.)

    # ---- Layer 2: Linear -> ReLU ----
    h2 = jnp.dot(h1.astype(w2_ref.dtype), w2_ref[...],
                 preferred_element_type=jnp.float32)
    h2 = jnp.maximum(h2 + b_ref[:, H:H + H2], 0.0)

    # ---- Layer 3: final Linear into a lane-dense 128-wide output slab ----
    out = jnp.dot(h2.astype(w3_ref.dtype), w3_ref[...],
                  preferred_element_type=jnp.float32)
    o_ref[...] = out + b_ref[:, H + H2:]


def prepare_kernel_params(params, *, weight_dtype=jnp.bfloat16, lane_pad=128,
                          slots_per_group=4):
    """Fold embedding into W1, flatten the table, cast to bf16, pack biases."""
    emb = params["emb"].astype(jnp.float32)           # (C, E)
    w1 = params["w1"].astype(jnp.float32)             # (S*E, H)
    C, E = emb.shape
    d_in, H = w1.shape
    S = d_in // E
    H2 = params["w2"].shape[1]
    O = params["w3"].shape[1]
    OP = _round_up(max(O, lane_pad), 128)

    # T[s*C + c, :] = (emb @ W1[s*E:(s+1)*E, :])[c, :]  -- flat (S*C, H), f32 fold.
    t_fold = jnp.einsum("ce,seh->sch", emb, w1.reshape(S, E, H)).reshape(S * C, H)

    w3_pad = jnp.zeros((H2, OP), jnp.float32).at[:, :O].set(
        params["w3"].astype(jnp.float32))
    b3_pad = jnp.zeros((1, OP), jnp.float32).at[:, :O].set(
        params["b3"].astype(jnp.float32))
    b_cat = jnp.concatenate(
        [params["b1"].astype(jnp.float32),
         params["b2"].astype(jnp.float32),
         b3_pad], axis=1)                              # (1, H + H2 + OP) f32

    return {
        "t_fold": t_fold.astype(weight_dtype),         # (S*C, H)
        "w2": params["w2"].astype(weight_dtype),       # (H, H2)
        "w3": w3_pad.astype(weight_dtype),             # (H2, OP)
        "b": b_cat,                                    # (1, H + H2 + OP) f32
        "out_size": O,
        "slots_per_group": slots_per_group,
    }


def draft_mlp_forward(draft_sequence, kparams, *, block_b=512, min_num_blocks=1):
    """Fused DraftMLP forward: (B, S) int32 champion ids -> (B, O) f32 logits.

    min_num_blocks=1 (default) keeps a single grid step for small B, which is
    right for 1-TC v5e/v6e; pass min_num_blocks=2 on v7x so the "parallel"
    batch axis splits evenly across its two TensorCores.
    """
    ids = draft_sequence.astype(jnp.int32)
    B, S = ids.shape
    t_fold = kparams["t_fold"]
    w2 = kparams["w2"]
    w3 = kparams["w3"]
    b = kparams["b"]
    OP = w3.shape[1]
    O = kparams["out_size"]

    # Batch tile: multiple of 8 sublanes; all weights (~420 KiB bf16) stay
    # VMEM-resident across grid steps, so big tiles are cheap.
    per_block = -(-B // max(min_num_blocks, 1))
    TB = max(8, min(block_b, _round_up(per_block, 8)))
    num_blocks = -(-B // TB)
    B_pad = num_blocks * TB
    if B_pad != B:
        ids = jnp.pad(ids, ((0, B_pad - B), (0, 0)))

    kernel = functools.partial(_draft_mlp_kernel,
                               slots_per_group=kparams["slots_per_group"])

    out_pad = pl.pallas_call(
        kernel,
        out_shape=jax.ShapeDtypeStruct((B_pad, OP), jnp.float32),
        grid=(num_blocks,),
        in_specs=[
            pl.BlockSpec((TB, S), lambda i: (i, 0)),           # ids: per block
            pl.BlockSpec(t_fold.shape, lambda i: (0, 0)),      # resident table
            pl.BlockSpec(w2.shape, lambda i: (0, 0)),          # resident
            pl.BlockSpec(w3.shape, lambda i: (0, 0)),          # resident
            pl.BlockSpec(b.shape, lambda i: (0, 0)),           # resident
        ],
        out_specs=pl.BlockSpec((TB, OP), lambda i: (i, 0)),
        compiler_params=pltpu.CompilerParams(
            dimension_semantics=("parallel",)),
    )(ids, t_fold, w2, w3, b)

    return out_pad[:B, :O]


def init_params(key, num_champions, draft_sequence_len, hidden_size,
                output_size, embed_dim=16):
    """Deterministic synthetic parameter init (shapes match the PyTorch module)."""
    ks = jax.random.split(key, 7)
    d_in = draft_sequence_len * embed_dim
    h2 = hidden_size // 2

    def lin_init(k, fan_in, shape):
        bound = 1.0 / jnp.sqrt(fan_in)
        return jax.random.uniform(k, shape, jnp.float32, -bound, bound)

    return {
        "emb": jax.random.normal(ks[0], (num_champions, embed_dim), jnp.float32),
        "w1": lin_init(ks[1], d_in, (d_in, hidden_size)),
        "b1": lin_init(ks[2], d_in, (1, hidden_size)),
        "w2": lin_init(ks[3], hidden_size, (hidden_size, h2)),
        "b2": lin_init(ks[4], hidden_size, (1, h2)),
        "w3": lin_init(ks[5], h2, (h2, output_size)),
        "b3": lin_init(ks[6], h2, (1, output_size)),
    }


if __name__ == "__main__":
    # Module-consistent shapes: 10-pick draft, 64 champions, hidden=256
    # (module default), 2-way output, batch=256.
    feature_dims = {"num_champions": 64, "draft_sequence": 10}
    hidden_size = 256
    output_size = 2
    batch = 256

    key = jax.random.PRNGKey(0)
    k_param, k_data = jax.random.split(key)
    params = init_params(k_param, feature_dims["num_champions"],
                         feature_dims["draft_sequence"], hidden_size,
                         output_size)
    draft_sequence = jax.random.randint(
        k_data, (batch, feature_dims["draft_sequence"]), 0,
        feature_dims["num_champions"], dtype=jnp.int32)

    kparams = prepare_kernel_params(params)

    # Single-block path (default; right for 1-TC v5e/v6e at this batch).
    out = draft_mlp_forward(draft_sequence, kparams)
    jax.block_until_ready(out)
    # Two-block path (what you'd use on 2-TC v7x): exercises the batch grid.
    out2 = draft_mlp_forward(draft_sequence, kparams, min_num_blocks=2)
    jax.block_until_ready(out2)

    # Pure-JAX f32 reference (original module semantics: gather -> flatten ->
    # Linear/ReLU x2 -> Linear; dropout identity at eval).
    emb_flat = jnp.take(params["emb"], draft_sequence, axis=0).reshape(batch, -1)
    h1 = jnp.maximum(emb_flat @ params["w1"] + params["b1"], 0.0)
    h2 = jnp.maximum(h1 @ params["w2"] + params["b2"], 0.0)
    ref = h2 @ params["w3"] + params["b3"]

    assert out.shape == (batch, output_size)
    assert out.dtype == jnp.float32
    # Kernel runs with bf16 weights (f32 accumulation), so compare with a
    # tolerance that covers the bf16 quantisation of the (folded) weights.
    max_err = float(jnp.max(jnp.abs(out - ref)))
    assert jnp.allclose(out, ref, atol=2e-2, rtol=2e-2), max_err
    max_err2 = float(jnp.max(jnp.abs(out2 - ref)))
    assert jnp.allclose(out2, ref, atol=2e-2, rtol=2e-2), max_err2

    print("KERNEL_OK")
</pallas_src>

<mosaic_0001>
module attributes {stable_mosaic.version = 11 : i64} {
  func.func @_draft_mlp_kernel(%arg0: i32, %arg1: memref<256x10xi32, #tpu.memory_space<vmem>>, %arg2: memref<640x256xbf16, #tpu.memory_space<vmem>>, %arg3: memref<256x128xbf16, #tpu.memory_space<vmem>>, %arg4: memref<128x128xbf16, #tpu.memory_space<vmem>>, %arg5: memref<1x512xf32, #tpu.memory_space<vmem>>, %arg6: memref<256x128xf32, #tpu.memory_space<vmem>>) attributes {dimension_semantics = [#tpu.dimension_semantics<parallel>], iteration_bounds = array<i64: 1>, scalar_prefetch = 0 : i64, scratch_operands = 0 : i64, tpu.core_type = #tpu.core_type<tc>, window_params = [{transform_indices = @transform_0, window_bounds = array<i64: 256, 10>}, {pipeline_mode = #tpu.pipeline_mode<synchronous>, transform_indices = @transform_1, window_bounds = array<i64: 640, 256>}, {pipeline_mode = #tpu.pipeline_mode<synchronous>, transform_indices = @transform_2, window_bounds = array<i64: 256, 128>}, {pipeline_mode = #tpu.pipeline_mode<synchronous>, transform_indices = @transform_3, window_bounds = array<i64: 128, 128>}, {pipeline_mode = #tpu.pipeline_mode<synchronous>, transform_indices = @transform_4, window_bounds = array<i64: 1, 512>}, {transform_indices = @transform_5, window_bounds = array<i64: 256, 128>}]} {
    %c0 = arith.constant 0 : index
    %c0_0 = arith.constant 0 : index
    %0 = vector.load %arg1[%c0, %c0_0] : memref<256x10xi32, #tpu.memory_space<vmem>>, vector<256x10xi32>
    %c0_i32 = arith.constant 0 : i32
    %c63_i32 = arith.constant 63 : i32
    %1 = vector.broadcast %c0_i32 : i32 to vector<256x10xi32>
    %2 = arith.maxsi %1, %0 : vector<256x10xi32>
    %3 = vector.broadcast %c63_i32 : i32 to vector<256x10xi32>
    %4 = arith.minsi %3, %2 : vector<256x10xi32>
    %5 = tpu.iota {dimensions = array<i32: 1>} : vector<256x256xi32>
    %6 = vector.extract_strided_slice %4 {offsets = [0, 0], sizes = [256, 1], strides = [1, 1]} : vector<256x10xi32> to vector<256x1xi32>
    %c64_i32 = arith.constant 64 : i32
    %7 = vector.broadcast %c64_i32 : i32 to vector<256x256xi32>
    %8 = arith.cmpi sge, %5, %7 : vector<256x256xi32>
    %9 = vector.extract_strided_slice %4 {offsets = [0, 1], sizes = [256, 1], strides = [1, 1]} : vector<256x10xi32> to vector<256x1xi32>
    %c64_i32_1 = arith.constant 64 : i32
    %10 = vector.broadcast %c64_i32_1 : i32 to vector<256x1xi32>
    %11 = arith.addi %9, %10 : vector<256x1xi32>
    %12 = vector.shape_cast %11 : vector<256x1xi32> to vector<256x1xi32>
    %13 = vector.broadcast %12 : vector<256x1xi32> to vector<256x256xi32>
    %14 = vector.shape_cast %6 : vector<256x1xi32> to vector<256x1xi32>
    %15 = vector.broadcast %14 : vector<256x1xi32> to vector<256x256xi32>
    %16 = arith.select %8, %13, %15 : vector<256x256xi1>, vector<256x256xi32>
    %c128_i32 = arith.constant 128 : i32
    %17 = vector.broadcast %c128_i32 : i32 to vector<256x256xi32>
    %18 = arith.cmpi sge, %5, %17 : vector<256x256xi32>
    %19 = vector.extract_strided_slice %4 {offsets = [0, 2], sizes = [256, 1], strides = [1, 1]} : vector<256x10xi32> to vector<256x1xi32>
    %c128_i32_2 = arith.constant 128 : i32
    %20 = vector.broadcast %c128_i32_2 : i32 to vector<256x1xi32>
    %21 = arith.addi %19, %20 : vector<256x1xi32>
    %22 = vector.shape_cast %21 : vector<256x1xi32> to vector<256x1xi32>
    %23 = vector.broadcast %22 : vector<256x1xi32> to vector<256x256xi32>
    %24 = arith.select %18, %23, %16 : vector<256x256xi1>, vector<256x256xi32>
    %c192_i32 = arith.constant 192 : i32
    %25 = vector.broadcast %c192_i32 : i32 to vector<256x256xi32>
    %26 = arith.cmpi sge, %5, %25 : vector<256x256xi32>
    %27 = vector.extract_strided_slice %4 {offsets = [0, 3], sizes = [256, 1], strides = [1, 1]} : vector<256x10xi32> to vector<256x1xi32>
    %c192_i32_3 = arith.constant 192 : i32
    %28 = vector.broadcast %c192_i32_3 : i32 to vector<256x1xi32>
    %29 = arith.addi %27, %28 : vector<256x1xi32>
    %30 = vector.shape_cast %29 : vector<256x1xi32> to vector<256x1xi32>
    %31 = vector.broadcast %30 : vector<256x1xi32> to vector<256x256xi32>
    %32 = arith.select %26, %31, %24 : vector<256x256xi1>, vector<256x256xi32>
    %33 = arith.cmpi eq, %5, %32 : vector<256x256xi32>
    %34 = arith.extui %33 : vector<256x256xi1> to vector<256x256xi32>
    %35 = arith.sitofp %34 : vector<256x256xi32> to vector<256x256xf32>
    %36 = arith.truncf %35 : vector<256x256xf32> to vector<256x256xbf16>
    %c0_4 = arith.constant 0 : index
    %c0_5 = arith.constant 0 : index
    %37 = vector.load %arg2[%c0_4, %c0_5] : memref<640x256xbf16, #tpu.memory_space<vmem>>, vector<256x256xbf16>
    %cst = arith.constant dense<0.000000e+00> : vector<256x256xf32>
    %38 = tpu.matmul %36, %37, %cst {dimension_numbers = #tpu.dot_dimension_numbers<[1], [0], [0], [1], [0, 0, 1, 1], [], []>} : vector<256x256xbf16>, vector<256x256xbf16>, vector<256x256xf32> -> vector<256x256xf32>
    %39 = tpu.iota {dimensions = array<i32: 1>} : vector<256x256xi32>
    %40 = vector.extract_strided_slice %4 {offsets = [0, 4], sizes = [256, 1], strides = [1, 1]} : vector<256x10xi32> to vector<256x1xi32>
    %c64_i32_6 = arith.constant 64 : i32
    %41 = vector.broadcast %c64_i32_6 : i32 to vector<256x256xi32>
    %42 = arith.cmpi sge, %39, %41 : vector<256x256xi32>
    %43 = vector.extract_strided_slice %4 {offsets = [0, 5], sizes = [256, 1], strides = [1, 1]} : vector<256x10xi32> to vector<256x1xi32>
    %c64_i32_7 = arith.constant 64 : i32
    %44 = vector.broadcast %c64_i32_7 : i32 to vector<256x1xi32>
    %45 = arith.addi %43, %44 : vector<256x1xi32>
    %46 = vector.shape_cast %45 : vector<256x1xi32> to vector<256x1xi32>
    %47 = vector.broadcast %46 : vector<256x1xi32> to vector<256x256xi32>
    %48 = vector.shape_cast %40 : vector<256x1xi32> to vector<256x1xi32>
    %49 = vector.broadcast %48 : vector<256x1xi32> to vector<256x256xi32>
    %50 = arith.select %42, %47, %49 : vector<256x256xi1>, vector<256x256xi32>
    %c128_i32_8 = arith.constant 128 : i32
    %51 = vector.broadcast %c128_i32_8 : i32 to vector<256x256xi32>
    %52 = arith.cmpi sge, %39, %51 : vector<256x256xi32>
    %53 = vector.extract_strided_slice %4 {offsets = [0, 6], sizes = [256, 1], strides = [1, 1]} : vector<256x10xi32> to vector<256x1xi32>
    %c128_i32_9 = arith.constant 128 : i32
    %54 = vector.broadcast %c128_i32_9 : i32 to vector<256x1xi32>
    %55 = arith.addi %53, %54 : vector<256x1xi32>
    %56 = vector.shape_cast %55 : vector<256x1xi32> to vector<256x1xi32>
    %57 = vector.broadcast %56 : vector<256x1xi32> to vector<256x256xi32>
    %58 = arith.select %52, %57, %50 : vector<256x256xi1>, vector<256x256xi32>
    %c192_i32_10 = arith.constant 192 : i32
    %59 = vector.broadcast %c192_i32_10 : i32 to vector<256x256xi32>
    %60 = arith.cmpi sge, %39, %59 : vector<256x256xi32>
    %61 = vector.extract_strided_slice %4 {offsets = [0, 7], sizes = [256, 1], strides = [1, 1]} : vector<256x10xi32> to vector<256x1xi32>
    %c192_i32_11 = arith.constant 192 : i32
    %62 = vector.broadcast %c192_i32_11 : i32 to vector<256x1xi32>
    %63 = arith.addi %61, %62 : vector<256x1xi32>
    %64 = vector.shape_cast %63 : vector<256x1xi32> to vector<256x1xi32>
    %65 = vector.broadcast %64 : vector<256x1xi32> to vector<256x256xi32>
    %66 = arith.select %60, %65, %58 : vector<256x256xi1>, vector<256x256xi32>
    %67 = arith.cmpi eq, %39, %66 : vector<256x256xi32>
    %68 = arith.extui %67 : vector<256x256xi1> to vector<256x256xi32>
    %69 = arith.sitofp %68 : vector<256x256xi32> to vector<256x256xf32>
    %70 = arith.truncf %69 : vector<256x256xf32> to vector<256x256xbf16>
    %c256 = arith.constant 256 : index
    %c0_12 = arith.constant 0 : index
    %71 = vector.load %arg2[%c256, %c0_12] : memref<640x256xbf16, #tpu.memory_space<vmem>>, vector<256x256xbf16>
    %cst_13 = arith.constant dense<0.000000e+00> : vector<256x256xf32>
    %72 = tpu.matmul %70, %71, %cst_13 {dimension_numbers = #tpu.dot_dimension_numbers<[1], [0], [0], [1], [0, 0, 1, 1], [], []>} : vector<256x256xbf16>, vector<256x256xbf16>, vector<256x256xf32> -> vector<256x256xf32>
    %73 = arith.addf %38, %72 : vector<256x256xf32>
    %74 = tpu.iota {dimensions = array<i32: 1>} : vector<256x128xi32>
    %75 = vector.extract_strided_slice %4 {offsets = [0, 8], sizes = [256, 1], strides = [1, 1]} : vector<256x10xi32> to vector<256x1xi32>
    %c64_i32_14 = arith.constant 64 : i32
    %76 = vector.broadcast %c64_i32_14 : i32 to vector<256x128xi32>
    %77 = arith.cmpi sge, %74, %76 : vector<256x128xi32>
    %78 = vector.extract_strided_slice %4 {offsets = [0, 9], sizes = [256, 1], strides = [1, 1]} : vector<256x10xi32> to vector<256x1xi32>
    %c64_i32_15 = arith.constant 64 : i32
    %79 = vector.broadcast %c64_i32_15 : i32 to vector<256x1xi32>
    %80 = arith.addi %78, %79 : vector<256x1xi32>
    %81 = vector.shape_cast %80 : vector<256x1xi32> to vector<256x1xi32>
    %82 = vector.broadcast %81 : vector<256x1xi32> to vector<256x128xi32>
    %83 = vector.shape_cast %75 : vector<256x1xi32> to vector<256x1xi32>
    %84 = vector.broadcast %83 : vector<256x1xi32> to vector<256x128xi32>
    %85 = arith.select %77, %82, %84 : vector<256x128xi1>, vector<256x128xi32>
    %86 = arith.cmpi eq, %74, %85 : vector<256x128xi32>
    %87 = arith.extui %86 : vector<256x128xi1> to vector<256x128xi32>
    %88 = arith.sitofp %87 : vector<256x128xi32> to vector<256x128xf32>
    %89 = arith.truncf %88 : vector<256x128xf32> to vector<256x128xbf16>
    %c512 = arith.constant 512 : index
    %c0_16 = arith.constant 0 : index
    %90 = vector.load %arg2[%c512, %c0_16] : memref<640x256xbf16, #tpu.memory_space<vmem>>, vector<128x256xbf16>
    %cst_17 = arith.constant dense<0.000000e+00> : vector<256x256xf32>
    %91 = tpu.matmul %89, %90, %cst_17 {dimension_numbers = #tpu.dot_dimension_numbers<[1], [0], [0], [1], [0, 0, 1, 1], [], []>} : vector<256x128xbf16>, vector<128x256xbf16>, vector<256x256xf32> -> vector<256x256xf32>
    %92 = arith.addf %73, %91 : vector<256x256xf32>
    %c0_18 = arith.constant 0 : index
    %c0_19 = arith.constant 0 : index
    %93 = vector.load %arg5[%c0_18, %c0_19] : memref<1x512xf32, #tpu.memory_space<vmem>>, vector<1x256xf32>
    %94 = vector.broadcast %93 : vector<1x256xf32> to vector<256x256xf32>
    %95 = arith.addf %92, %94 : vector<256x256xf32>
    %cst_20 = arith.constant 0.000000e+00 : f32
    %96 = vector.broadcast %cst_20 : f32 to vector<256x256xf32>
    %97 = arith.maximumf %95, %96 : vector<256x256xf32>
    %98 = arith.truncf %97 : vector<256x256xf32> to vector<256x256xbf16>
    %c0_21 = arith.constant 0 : index
    %c0_22 = arith.constant 0 : index
    %99 = vector.load %arg3[%c0_21, %c0_22] : memref<256x128xbf16, #tpu.memory_space<vmem>>, vector<256x128xbf16>
    %cst_23 = arith.constant dense<0.000000e+00> : vector<256x128xf32>
    %100 = tpu.matmul %98, %99, %cst_23 {dimension_numbers = #tpu.dot_dimension_numbers<[1], [0], [0], [1], [0, 0, 1, 1], [], []>} : vector<256x256xbf16>, vector<256x128xbf16>, vector<256x128xf32> -> vector<256x128xf32>
    %c0_24 = arith.constant 0 : index
    %c256_25 = arith.constant 256 : index
    %101 = vector.load %arg5[%c0_24, %c256_25] : memref<1x512xf32, #tpu.memory_space<vmem>>, vector<1x128xf32>
    %102 = vector.broadcast %101 : vector<1x128xf32> to vector<256x128xf32>
    %103 = arith.addf %100, %102 : vector<256x128xf32>
    %cst_26 = arith.constant 0.000000e+00 : f32
    %104 = vector.broadcast %cst_26 : f32 to vector<256x128xf32>
    %105 = arith.maximumf %103, %104 : vector<256x128xf32>
    %106 = arith.truncf %105 : vector<256x128xf32> to vector<256x128xbf16>
    %c0_27 = arith.constant 0 : index
    %c0_28 = arith.constant 0 : index
    %107 = vector.load %arg4[%c0_27, %c0_28] : memref<128x128xbf16, #tpu.memory_space<vmem>>, vector<128x128xbf16>
    %cst_29 = arith.constant dense<0.000000e+00> : vector<256x128xf32>
    %108 = tpu.matmul %106, %107, %cst_29 {dimension_numbers = #tpu.dot_dimension_numbers<[1], [0], [0], [1], [0, 0, 1, 1], [], []>} : vector<256x128xbf16>, vector<128x128xbf16>, vector<256x128xf32> -> vector<256x128xf32>
    %c0_30 = arith.constant 0 : index
    %c384 = arith.constant 384 : index
    %109 = vector.load %arg5[%c0_30, %c384] : memref<1x512xf32, #tpu.memory_space<vmem>>, vector<1x128xf32>
    %110 = vector.broadcast %109 : vector<1x128xf32> to vector<256x128xf32>
    %111 = arith.addf %108, %110 : vector<256x128xf32>
    %c0_31 = arith.constant 0 : index
    %c0_32 = arith.constant 0 : index
    %112 = vector.load %arg6[%c0_31, %c0_32] : memref<256x128xf32, #tpu.memory_space<vmem>>, vector<256x128xf32>
    tpu.vector_store %arg6[%c0_31, %c0_32], %111 {strides = array<i32>} : memref<256x128xf32, #tpu.memory_space<vmem>>, vector<256x128xf32>,
    return
  }
  func.func @transform_0(%arg0: i32) -> (i32, i32) {
    %c0_i32 = arith.constant 0 : i32
    %c0_i32_0 = arith.constant 0 : i32
    return %arg0, %c0_i32 : i32, i32
  }
  func.func @transform_1(%arg0: i32) -> (i32, i32) {
    %c0_i32 = arith.constant 0 : i32
    %c0_i32_0 = arith.constant 0 : i32
    %c0_i32_1 = arith.constant 0 : i32
    return %c0_i32, %c0_i32_0 : i32, i32
  }
  func.func @transform_2(%arg0: i32) -> (i32, i32) {
    %c0_i32 = arith.constant 0 : i32
    %c0_i32_0 = arith.constant 0 : i32
    %c0_i32_1 = arith.constant 0 : i32
    return %c0_i32, %c0_i32_0 : i32, i32
  }
  func.func @transform_3(%arg0: i32) -> (i32, i32) {
    %c0_i32 = arith.constant 0 : i32
    %c0_i32_0 = arith.constant 0 : i32
    %c0_i32_1 = arith.constant 0 : i32
    return %c0_i32, %c0_i32_0 : i32, i32
  }
  func.func @transform_4(%arg0: i32) -> (i32, i32) {
    %c0_i32 = arith.constant 0 : i32
    %c0_i32_0 = arith.constant 0 : i32
    %c0_i32_1 = arith.constant 0 : i32
    return %c0_i32, %c0_i32_0 : i32, i32
  }
  func.func @transform_5(%arg0: i32) -> (i32, i32) {
    %c0_i32 = arith.constant 0 : i32
    %c0_i32_0 = arith.constant 0 : i32
    return %arg0, %c0_i32 : i32, i32
  }
}

</mosaic_0001>

<llo_original>
// kernel: tpu_custom_call.1
$region0: #{tpu_custom_call.1}
  #allocation0 [shape = 'u32[]', space=smem, size = 0x4, offset = 0x4, fixed_abs, tag = 'smem constant byte address 0x4 - core index']
  #allocation1 [shape = 'u32[72,128]{1,0:T(1,128)}', space=vmem, size = 0x9000, scoped, tag = 'internal scratch']
  %s0 = inlined_call_operand.vmem [shape: s32[256,10], index: 0, kind: input, shape index: {}]
  %s1 = inlined_call_operand.hbm [shape: bf16[640,256], index: 1, kind: input, shape index: {}]
  %s2 = inlined_call_operand.vmem [shape: bf16[256,128], index: 2, kind: input, shape index: {}]
  %s3 = inlined_call_operand.vmem [shape: bf16[128,128], index: 3, kind: input, shape index: {}]
  %s4 = inlined_call_operand.vmem [shape: f32[1,512], index: 4, kind: input, shape index: {}]
  %s5 = inlined_call_operand.hbm [shape: f32[256,128], index: 5, kind: output, shape index: {}]
  %s6 = sld [smem:[#allocation0]]
  $region34: #{tpu_custom_call.1} parent=0
    _
  %s8 = ssub.s32 1, %s6
  %s9 = scalar_select 0, %s8, %s6
  $region1: #{tpu_custom_call.1} parent=0
    #allocation2 [shape = 'u8[327680]{0}', space=vmem, size = 0x50000, scoped, tag = 'input window, operand 1, single buffered']
    #allocation3 [shape = 's32[1]{0}', space=sflag, size = 0x4, scoped, tag = 'scoped memory for tpu_custom_call.1']
    #allocation4 [shape = 's32[1]{0}', space=sflag, size = 0x4, scoped, tag = 'scoped memory for tpu_custom_call.1']
    #allocation5 [shape = 'u8[131072]{0}', space=vmem, size = 0x20000, scoped, tag = 'output window, operand 0, single buffered']
    %10 = vsyncpa [#allocation3], 0
    %11 = vsyncpa [#allocation4], 0
    // Predicated region
    $region2: #{tpu_custom_call.1} parent=1 // pred_check
      _
    $region3: #{tpu_custom_call.1} parent=1 // pred_check_branch
      %13 = sbr.rel (0) target = $region5
    $region4: #{tpu_custom_call.1} parent=1 // pred_region
      _
    $region5: #{tpu_custom_call.1} parent=1 // pred_fallthru
      _
    // Predicated region
    $region6: #{tpu_custom_call.1} parent=1 // pred_check
      _
    $region7: #{tpu_custom_call.1} parent=1 // pred_check_branch
      %15 = sbr.rel (0) target = $region9
    $region8: #{tpu_custom_call.1} parent=1 // pred_region
      %17 = vsyncadd [#allocation3], 0
      %s18 = sshll.u32 %s1, 4
      %s19 = int_to_ptr.hbm [resolvable:$true] %s18
      %s20 = sshll.u32 [#allocation2], 4
      %s21 = int_to_ptr.vmem [resolvable:$true] %s20
      %26 = dma.hbm_to_vmem [thread:$0]  %s19, 10240, %s21, [#allocation3], 128, 128, 8
    $region9: #{tpu_custom_call.1} parent=1 // pred_fallthru
      _
    // Predicated region
    $region10: #{tpu_custom_call.1} parent=1 // pred_check
      _
    $region11: #{tpu_custom_call.1} parent=1 // pred_check_branch
      %28 = sbr.rel (0) target = $region13
    $region12: #{tpu_custom_call.1} parent=1 // pred_region
      _
    $region13: #{tpu_custom_call.1} parent=1 // pred_fallthru
      _
    // Predicated region
    $region14: #{tpu_custom_call.1} parent=1 // pred_check
      _
    $region15: #{tpu_custom_call.1} parent=1 // pred_check_branch
      %30 = sbr.rel (0) target = $region17
    $region16: #{tpu_custom_call.1} parent=1 // pred_region
      _
    $region17: #{tpu_custom_call.1} parent=1 // pred_fallthru
      _
    // Predicated region
    $region18: #{tpu_custom_call.1} parent=1 // pred_check
      _
    $region19: #{tpu_custom_call.1} parent=1 // pred_check_branch
      %32 = sbr.rel (0) target = $region21
    $region20: #{tpu_custom_call.1} parent=1 // pred_region
      _
    $region21: #{tpu_custom_call.1} parent=1 // pred_fallthru
      _
    // Predicated region
    $region22: #{tpu_custom_call.1} parent=1 // pred_check
      _
    $region23: #{tpu_custom_call.1} parent=1 // pred_check_branch
      %34 = sbr.rel (0) target = $region25
    $region24: #{tpu_custom_call.1} parent=1 // pred_region
      %36 = dma.done [#allocation3], 10240
    $region25: #{tpu_custom_call.1} parent=1 // pred_fallthru
      _
    %v37 = vld [vmem:[%s0] sm:$0xff]
    %v38 = vld [vmem:[%s0 + $0x8] sm:$0xff]
    %v39 = vld [vmem:[%s0 + $0x10] sm:$0xff]
    %v40 = vld [vmem:[%s0 + $0x18] sm:$0xff]
    %v41 = vld [vmem:[%s0 + $0x20] sm:$0xff]
    %v42 = vld [vmem:[%s0 + $0x28] sm:$0xff]
    %v43 = vld [vmem:[%s0 + $0x30] sm:$0xff]
    %v44 = vld [vmem:[%s0 + $0x38] sm:$0xff]
    %v45 = vld [vmem:[%s0 + $0x40] sm:$0xff]
    %v46 = vld [vmem:[%s0 + $0x48] sm:$0xff]
    %v47 = vld [vmem:[%s0 + $0x50] sm:$0xff]
    %v48 = vld [vmem:[%s0 + $0x58] sm:$0xff]
    %v49 = vld [vmem:[%s0 + $0x60] sm:$0xff]
    %v50 = vld [vmem:[%s0 + $0x68] sm:$0xff]
    %v51 = vld [vmem:[%s0 + $0x70] sm:$0xff]
    %v52 = vld [vmem:[%s0 + $0x78] sm:$0xff]
    %v53 = vld [vmem:[%s0 + $0x80] sm:$0xff]
    %v54 = vld [vmem:[%s0 + $0x88] sm:$0xff]
    %v55 = vld [vmem:[%s0 + $0x90] sm:$0xff]
    %v56 = vld [vmem:[%s0 + $0x98] sm:$0xff]
    %v57 = vld [vmem:[%s0 + $0xa0] sm:$0xff]
    %v58 = vld [vmem:[%s0 + $0xa8] sm:$0xff]
    %v59 = vld [vmem:[%s0 + $0xb0] sm:$0xff]
    %v60 = vld [vmem:[%s0 + $0xb8] sm:$0xff]
    %v61 = vld [vmem:[%s0 + $0xc0] sm:$0xff]
    %v62 = vld [vmem:[%s0 + $0xc8] sm:$0xff]
    %v63 = vld [vmem:[%s0 + $0xd0] sm:$0xff]
    %v64 = vld [vmem:[%s0 + $0xd8] sm:$0xff]
    %v65 = vld [vmem:[%s0 + $0xe0] sm:$0xff]
    %v66 = vld [vmem:[%s0 + $0xe8] sm:$0xff]
    %v67 = vld [vmem:[%s0 + $0xf0] sm:$0xff]
    %v68 = vld [vmem:[%s0 + $0xf8] sm:$0xff]
    %vm69 = vcmp.gt.s32.totalorder %v37, 0
    %v70 = vsel %vm69, %v37, 0
    %vm71 = vcmp.gt.s32.totalorder %v38, 0
    %v72 = vsel %vm71, %v38, 0
    %vm73 = vcmp.gt.s32.totalorder %v39, 0
    %v74 = vsel %vm73, %v39, 0
    %vm75 = vcmp.gt.s32.totalorder %v40, 0
    %v76 = vsel %vm75, %v40, 0
    %vm77 = vcmp.gt.s32.totalorder %v41, 0
    %v78 = vsel %vm77, %v41, 0
    %vm79 = vcmp.gt.s32.totalorder %v42, 0
    %v80 = vsel %vm79, %v42, 0
    %vm81 = vcmp.gt.s32.totalorder %v43, 0
    %v82 = vsel %vm81, %v43, 0
    %vm83 = vcmp.gt.s32.totalorder %v44, 0
    %v84 = vsel %vm83, %v44, 0
    %vm85 = vcmp.gt.s32.totalorder %v45, 0
    %v86 = vsel %vm85, %v45, 0
    %vm87 = vcmp.gt.s32.totalorder %v46, 0
    %v88 = vsel %vm87, %v46, 0
    %vm89 = vcmp.gt.s32.totalorder %v47, 0
    %v90 = vsel %vm89, %v47, 0
    %vm91 = vcmp.gt.s32.totalorder %v48, 0
    %v92 = vsel %vm91, %v48, 0
    %vm93 = vcmp.gt.s32.totalorder %v49, 0
    %v94 = vsel %vm93, %v49, 0
    %vm95 = vcmp.gt.s32.totalorder %v50, 0
    %v96 = vsel %vm95, %v50, 0
    %vm97 = vcmp.gt.s32.totalorder %v51, 0
    %v98 = vsel %vm97, %v51, 0
    %vm99 = vcmp.gt.s32.totalorder %v52, 0
    %v100 = vsel %vm99, %v52, 0
    %vm101 = vcmp.gt.s32.totalorder %v53, 0
    %v102 = vsel %vm101, %v53, 0
    %vm103 = vcmp.gt.s32.totalorder %v54, 0
    %v104 = vsel %vm103, %v54, 0
    %vm105 = vcmp.gt.s32.totalorder %v55, 0
    %v106 = vsel %vm105, %v55, 0
    %vm107 = vcmp.gt.s32.totalorder %v56, 0
    %v108 = vsel %vm107, %v56, 0
    %vm109 = vcmp.gt.s32.totalorder %v57, 0
    %v110 = vsel %vm109, %v57, 0
    %vm111 = vcmp.gt.s32.totalorder %v58, 0
    %v112 = vsel %vm111, %v58, 0
    %vm113 = vcmp.gt.s32.totalorder %v59, 0
    %v114 = vsel %vm113, %v59, 0
    %vm115 = vcmp.gt.s32.totalorder %v60, 0
    %v116 = vsel %vm115, %v60, 0
    %vm117 = vcmp.gt.s32.totalorder %v61, 0
    %v118 = vsel %vm117, %v61, 0
    %vm119 = vcmp.gt.s32.totalorder %v62, 0
    %v120 = vsel %vm119, %v62, 0
    %vm121 = vcmp.gt.s32.totalorder %v63, 0
    %v122 = vsel %vm121, %v63, 0
    %vm123 = vcmp.gt.s32.totalorder %v64, 0
    %v124 = vsel %vm123, %v64, 0
    %vm125 = vcmp.gt.s32.totalorder %v65, 0
    %v126 = vsel %vm125, %v65, 0
    %vm127 = vcmp.gt.s32.totalorder %v66, 0
    %v128 = vsel %vm127, %v66, 0
    %vm129 = vcmp.gt.s32.totalorder %v67, 0
    %v130 = vsel %vm129, %v67, 0
    %vm131 = vcmp.gt.s32.totalorder %v68, 0
    %v132 = vsel %vm131, %v68, 0
    %vm133 = vcmp.lt.s32.totalorder %v70, 63
    %v134 = vsel %vm133, %v70, 63
    %vm135 = vcmp.lt.s32.totalorder %v72, 63
    %v136 = vsel %vm135, %v72, 63
    %vm137 = vcmp.lt.s32.totalorder %v74, 63
    %v138 = vsel %vm137, %v74, 63
    %vm139 = vcmp.lt.s32.totalorder %v76, 63
    %v140 = vsel %vm139, %v76, 63
    %vm141 = vcmp.lt.s32.totalorder %v78, 63
    %v142 = vsel %vm141, %v78, 63
    %vm143 = vcmp.lt.s32.totalorder %v80, 63
    %v144 = vsel %vm143, %v80, 63
    %vm145 = vcmp.lt.s32.totalorder %v82, 63
    %v146 = vsel %vm145, %v82, 63
    %vm147 = vcmp.lt.s32.totalorder %v84, 63
    %v148 = vsel %vm147, %v84, 63
    %vm149 = vcmp.lt.s32.totalorder %v86, 63
    %v150 = vsel %vm149, %v86, 63
    %vm151 = vcmp.lt.s32.totalorder %v88, 63
    %v152 = vsel %vm151, %v88, 63
    %vm153 = vcmp.lt.s32.totalorder %v90, 63
    %v154 = vsel %vm153, %v90, 63
    %vm155 = vcmp.lt.s32.totalorder %v92, 63
    %v156 = vsel %vm155, %v92, 63
    %vm157 = vcmp.lt.s32.totalorder %v94, 63
    %v158 = vsel %vm157, %v94, 63
    %vm159 = vcmp.lt.s32.totalorder %v96, 63
    %v160 = vsel %vm159, %v96, 63
    %vm161 = vcmp.lt.s32.totalorder %v98, 63
    %v162 = vsel %vm161, %v98, 63
    %vm163 = vcmp.lt.s32.totalorder %v100, 63
    %v164 = vsel %vm163, %v100, 63
    %vm165 = vcmp.lt.s32.totalorder %v102, 63
    %v166 = vsel %vm165, %v102, 63
    %vm167 = vcmp.lt.s32.totalorder %v104, 63
    %v168 = vsel %vm167, %v104, 63
    %vm169 = vcmp.lt.s32.totalorder %v106, 63
    %v170 = vsel %vm169, %v106, 63
    %vm171 = vcmp.lt.s32.totalorder %v108, 63
    %v172 = vsel %vm171, %v108, 63
    %vm173 = vcmp.lt.s32.totalorder %v110, 63
    %v174 = vsel %vm173, %v110, 63
    %vm175 = vcmp.lt.s32.totalorder %v112, 63
    %v176 = vsel %vm175, %v112, 63
    %vm177 = vcmp.lt.s32.totalorder %v114, 63
    %v178 = vsel %vm177, %v114, 63
    %vm179 = vcmp.lt.s32.totalorder %v116, 63
    %v180 = vsel %vm179, %v116, 63
    %vm181 = vcmp.lt.s32.totalorder %v118, 63
    %v182 = vsel %vm181, %v118, 63
    %vm183 = vcmp.lt.s32.totalorder %v120, 63
    %v184 = vsel %vm183, %v120, 63
    %vm185 = vcmp.lt.s32.totalorder %v122, 63
    %v186 = vsel %vm185, %v122, 63
    %vm187 = vcmp.lt.s32.totalorder %v124, 63
    %v188 = vsel %vm187, %v124, 63
    %vm189 = vcmp.lt.s32.totalorder %v126, 63
    %v190 = vsel %vm189, %v126, 63
    %vm191 = vcmp.lt.s32.totalorder %v128, 63
    %v192 = vsel %vm191, %v128, 63
    %vm193 = vcmp.lt.s32.totalorder %v130, 63
    %v194 = vsel %vm193, %v130, 63
    %vm195 = vcmp.lt.s32.totalorder %v132, 63
    %v196 = vsel %vm195, %v132, 63
    %v197 = vlaneseq
    %v198 = vand.u32 %v197, 127
    %v199 = vadd.s32 %v198, 128
    %vm200 = vcmp.ge.s32.totalorder %v198, 64
    %vm201 = vcmp.ge.s32.totalorder %v199, 64
    %v202 = vadd.s32 %v134, 64
    %v203 = vadd.s32 %v136, 64
    %v204 = vadd.s32 %v138, 64
    %v205 = vadd.s32 %v140, 64
    %v206 = vadd.s32 %v142, 64
    %v207 = vadd.s32 %v144, 64
    %v208 = vadd.s32 %v146, 64
    %v209 = vadd.s32 %v148, 64
    %v210 = vadd.s32 %v150, 64
    %v211 = vadd.s32 %v152, 64
    %v212 = vadd.s32 %v154, 64
    %v213 = vadd.s32 %v156, 64
    %v214 = vadd.s32 %v158, 64
    %v215 = vadd.s32 %v160, 64
    %v216 = vadd.s32 %v162, 64
    %v217 = vadd.s32 %v164, 64
    %v218 = vadd.s32 %v166, 64
    %v219 = vadd.s32 %v168, 64
    %v220 = vadd.s32 %v170, 64
    %v221 = vadd.s32 %v172, 64
    %v222 = vadd.s32 %v174, 64
    %v223 = vadd.s32 %v176, 64
    %v224 = vadd.s32 %v178, 64
    %v225 = vadd.s32 %v180, 64
    %v226 = vadd.s32 %v182, 64
    %v227 = vadd.s32 %v184, 64
    %v228 = vadd.s32 %v186, 64
    %v229 = vadd.s32 %v188, 64
    %v230 = vadd.s32 %v190, 64
    %v231 = vadd.s32 %v192, 64
    %v232 = vadd.s32 %v194, 64
    %v233 = vadd.s32 %v196, 64
    %234 = vset.pattern.permute.xlu0 1
    %235 = vperm.xlu0 %234, %v202
    %v236 = vpop.permute.xlu0 %235
    %237 = vset.pattern.permute.xlu0 1
    %238 = vperm.xlu0 %237, %v203
    %v239 = vpop.permute.xlu0 %238
    %240 = vset.pattern.permute.xlu0 1
    %241 = vperm.xlu0 %240, %v204
    %v242 = vpop.permute.xlu0 %241
    %243 = vset.pattern.permute.xlu0 1
    %244 = vperm.xlu0 %243, %v205
    %v245 = vpop.permute.xlu0 %244
    %246 = vset.pattern.permute.xlu0 1
    %247 = vperm.xlu0 %246, %v206
    %v248 = vpop.permute.xlu0 %247
    %249 = vset.pattern.permute.xlu0 1
    %250 = vperm.xlu0 %249, %v207
    %v251 = vpop.permute.xlu0 %250
    %252 = vset.pattern.permute.xlu0 1
    %253 = vperm.xlu0 %252, %v208
    %v254 = vpop.permute.xlu0 %253
    %255 = vset.pattern.permute.xlu0 1
    %256 = vperm.xlu0 %255, %v209
    %v257 = vpop.permute.xlu0 %256
    %258 = vset.pattern.permute.xlu0 1
    %259 = vperm.xlu0 %258, %v210
    %v260 = vpop.permute.xlu0 %259
    %261 = vset.pattern.permute.xlu0 1
    %262 = vperm.xlu0 %261, %v211
    %v263 = vpop.permute.xlu0 %262
    %264 = vset.pattern.permute.xlu0 1
    %265 = vperm.xlu0 %264, %v212
    %v266 = vpop.permute.xlu0 %265
    %267 = vset.pattern.permute.xlu0 1
    %268 = vperm.xlu0 %267, %v213
    %v269 = vpop.permute.xlu0 %268
    %270 = vset.pattern.permute.xlu0 1
    %271 = vperm.xlu0 %270, %v214
    %v272 = vpop.permute.xlu0 %271
    %273 = vset.pattern.permute.xlu0 1
    %274 = vperm.xlu0 %273, %v215
    %v275 = vpop.permute.xlu0 %274
    %276 = vset.pattern.permute.xlu0 1
    %277 = vperm.xlu0 %276, %v216
    %v278 = vpop.permute.xlu0 %277
    %279 = vset.pattern.permute.xlu0 1
    %280 = vperm.xlu0 %279, %v217
    %v281 = vpop.permute.xlu0 %280
    %282 = vset.pattern.permute.xlu0 1
    %283 = vperm.xlu0 %282, %v218
    %v284 = vpop.permute.xlu0 %283
    %285 = vset.pattern.permute.xlu0 1
    %286 = vperm.xlu0 %285, %v219
    %v287 = vpop.permute.xlu0 %286
    %288 = vset.pattern.permute.xlu0 1
    %289 = vperm.xlu0 %288, %v220
    %v290 = vpop.permute.xlu0 %289
    %291 = vset.pattern.permute.xlu0 1
    %292 = vperm.xlu0 %291, %v221
    %v293 = vpop.permute.xlu0 %292
    %294 = vset.pattern.permute.xlu0 1
    %295 = vperm.xlu0 %294, %v222
    %v296 = vpop.permute.xlu0 %295
    %297 = vset.pattern.permute.xlu0 1
    %298 = vperm.xlu0 %297, %v223
    %v299 = vpop.permute.xlu0 %298
    %300 = vset.pattern.permute.xlu0 1
    %301 = vperm.xlu0 %300, %v224
    %v302 = vpop.permute.xlu0 %301
    %303 = vset.pattern.permute.xlu0 1
    %304 = vperm.xlu0 %303, %v225
    %v305 = vpop.permute.xlu0 %304
    %306 = vset.pattern.permute.xlu0 1
    %307 = vperm.xlu0 %306, %v226
    %v308 = vpop.permute.xlu0 %307
    %309 = vset.pattern.permute.xlu0 1
    %310 = vperm.xlu0 %309, %v227
    %v311 = vpop.permute.xlu0 %310
    %312 = vset.pattern.permute.xlu0 1
    %313 = vperm.xlu0 %312, %v228
    %v314 = vpop.permute.xlu0 %313
    %315 = vset.pattern.permute.xlu0 1
    %316 = vperm.xlu0 %315, %v229
    %v317 = vpop.permute.xlu0 %316
    %318 = vset.pattern.permute.xlu0 1
    %319 = vperm.xlu0 %318, %v230
    %v320 = vpop.permute.xlu0 %319
    %321 = vset.pattern.permute.xlu0 1
    %322 = vperm.xlu0 %321, %v231
    %v323 = vpop.permute.xlu0 %322
    %324 = vset.pattern.permute.xlu0 1
    %325 = vperm.xlu0 %324, %v232
    %v326 = vpop.permute.xlu0 %325
    %327 = vset.pattern.permute.xlu0 1
    %328 = vperm.xlu0 %327, %v233
    %v329 = vpop.permute.xlu0 %328
    %330 = vset.pattern.permute.xlu0 0
    %331 = vperm.xlu0 %330, %v134
    %v332 = vpop.permute.xlu0 %331
    %333 = vset.pattern.permute.xlu0 0
    %334 = vperm.xlu0 %333, %v136
    %v335 = vpop.permute.xlu0 %334
    %336 = vset.pattern.permute.xlu0 0
    %337 = vperm.xlu0 %336, %v138
    %v338 = vpop.permute.xlu0 %337
    %339 = vset.pattern.permute.xlu0 0
    %340 = vperm.xlu0 %339, %v140
    %v341 = vpop.permute.xlu0 %340
    %342 = vset.pattern.permute.xlu0 0
    %343 = vperm.xlu0 %342, %v142
    %v344 = vpop.permute.xlu0 %343
    %345 = vset.pattern.permute.xlu0 0
    %346 = vperm.xlu0 %345, %v144
    %v347 = vpop.permute.xlu0 %346
    %348 = vset.pattern.permute.xlu0 0
    %349 = vperm.xlu0 %348, %v146
    %v350 = vpop.permute.xlu0 %349
    %351 = vset.pattern.permute.xlu0 0
    %352 = vperm.xlu0 %351, %v148
    %v353 = vpop.permute.xlu0 %352
    %354 = vset.pattern.permute.xlu0 0
    %355 = vperm.xlu0 %354, %v150
    %v356 = vpop.permute.xlu0 %355
    %357 = vset.pattern.permute.xlu0 0
    %358 = vperm.xlu0 %357, %v152
    %v359 = vpop.permute.xlu0 %358
    %360 = vset.pattern.permute.xlu0 0
    %361 = vperm.xlu0 %360, %v154
    %v362 = vpop.permute.xlu0 %361
    %363 = vset.pattern.permute.xlu0 0
    %364 = vperm.xlu0 %363, %v156
    %v365 = vpop.permute.xlu0 %364
    %366 = vset.pattern.permute.xlu0 0
    %367 = vperm.xlu0 %366, %v158
    %v368 = vpop.permute.xlu0 %367
    %369 = vset.pattern.permute.xlu0 0
    %370 = vperm.xlu0 %369, %v160
    %v371 = vpop.permute.xlu0 %370
    %372 = vset.pattern.permute.xlu0 0
    %373 = vperm.xlu0 %372, %v162
    %v374 = vpop.permute.xlu0 %373
    %375 = vset.pattern.permute.xlu0 0
    %376 = vperm.xlu0 %375, %v164
    %v377 = vpop.permute.xlu0 %376
    %378 = vset.pattern.permute.xlu0 0
    %379 = vperm.xlu0 %378, %v166
    %v380 = vpop.permute.xlu0 %379
    %381 = vset.pattern.permute.xlu0 0
    %382 = vperm.xlu0 %381, %v168
    %v383 = vpop.permute.xlu0 %382
    %384 = vset.pattern.permute.xlu0 0
    %385 = vperm.xlu0 %384, %v170
    %v386 = vpop.permute.xlu0 %385
    %387 = vset.pattern.permute.xlu0 0
    %388 = vperm.xlu0 %387, %v172
    %v389 = vpop.permute.xlu0 %388
    %390 = vset.pattern.permute.xlu0 0
    %391 = vperm.xlu0 %390, %v174
    %v392 = vpop.permute.xlu0 %391
    %393 = vset.pattern.permute.xlu0 0
    %394 = vperm.xlu0 %393, %v176
    %v395 = vpop.permute.xlu0 %394
    %396 = vset.pattern.permute.xlu0 0
    %397 = vperm.xlu0 %396, %v178
    %v398 = vpop.permute.xlu0 %397
    %399 = vset.pattern.permute.xlu0 0
    %400 = vperm.xlu0 %399, %v180
    %v401 = vpop.permute.xlu0 %400
    %402 = vset.pattern.permute.xlu0 0
    %403 = vperm.xlu0 %402, %v182
    %v404 = vpop.permute.xlu0 %403
    %405 = vset.pattern.permute.xlu0 0
    %406 = vperm.xlu0 %405, %v184
    %v407 = vpop.permute.xlu0 %406
    %408 = vset.pattern.permute.xlu0 0
    %409 = vperm.xlu0 %408, %v186
    %v410 = vpop.permute.xlu0 %409
    %411 = vset.pattern.permute.xlu0 0
    %412 = vperm.xlu0 %411, %v188
    %v413 = vpop.permute.xlu0 %412
    %414 = vset.pattern.permute.xlu0 0
    %415 = vperm.xlu0 %414, %v190
    %v416 = vpop.permute.xlu0 %415
    %417 = vset.pattern.permute.xlu0 0
    %418 = vperm.xlu0 %417, %v192
    %v419 = vpop.permute.xlu0 %418
    %420 = vset.pattern.permute.xlu0 0
    %421 = vperm.xlu0 %420, %v194
    %v422 = vpop.permute.xlu0 %421
    %423 = vset.pattern.permute.xlu0 0
    %424 = vperm.xlu0 %423, %v196
    %v425 = vpop.permute.xlu0 %424
    %v426 = vsel %vm200, %v236, %v332
    %v427 = vsel %vm201, %v236, %v332
    %v428 = vsel %vm200, %v239, %v335
    %v429 = vsel %vm201, %v239, %v335
    %v430 = vsel %vm200, %v242, %v338
    %v431 = vsel %vm201, %v242, %v338
    %v432 = vsel %vm200, %v245, %v341
    %v433 = vsel %vm201, %v245, %v341
    %v434 = vsel %vm200, %v248, %v344
    %v435 = vsel %vm201, %v248, %v344
    %v436 = vsel %vm200, %v251, %v347
    %v437 = vsel %vm201, %v251, %v347
    %v438 = vsel %vm200, %v254, %v350
    %v439 = vsel %vm201, %v254, %v350
    %v440 = vsel %vm200, %v257, %v353
    %v441 = vsel %vm201, %v257, %v353
    %v442 = vsel %vm200, %v260, %v356
    %v443 = vsel %vm201, %v260, %v356
    %v444 = vsel %vm200, %v263, %v359
    %v445 = vsel %vm201, %v263, %v359
    %v446 = vsel %vm200, %v266, %v362
    %v447 = vsel %vm201, %v266, %v362
    %v448 = vsel %vm200, %v269, %v365
    %v449 = vsel %vm201, %v269, %v365
    %v450 = vsel %vm200, %v272, %v368
    %v451 = vsel %vm201, %v272, %v368
    %v452 = vsel %vm200, %v275, %v371
    %v453 = vsel %vm201, %v275, %v371
    %v454 = vsel %vm200, %v278, %v374
    %v455 = vsel %vm201, %v278, %v374
    %v456 = vsel %vm200, %v281, %v377
    %v457 = vsel %vm201, %v281, %v377
    %v458 = vsel %vm200, %v284, %v380
    %v459 = vsel %vm201, %v284, %v380
    %v460 = vsel %vm200, %v287, %v383
    %v461 = vsel %vm201, %v287, %v383
    %v462 = vsel %vm200, %v290, %v386
    %v463 = vsel %vm201, %v290, %v386
    %v464 = vsel %vm200, %v293, %v389
    %v465 = vsel %vm201, %v293, %v389
    %v466 = vsel %vm200, %v296, %v392
    %v467 = vsel %vm201, %v296, %v392
    %v468 = vsel %vm200, %v299, %v395
    %v469 = vsel %vm201, %v299, %v395
    %v470 = vsel %vm200, %v302, %v398
    %v471 = vsel %vm201, %v302, %v398
    %v472 = vsel %vm200, %v305, %v401
    %v473 = vsel %vm201, %v305, %v401
    %v474 = vsel %vm200, %v308, %v404
    %v475 = vsel %vm201, %v308, %v404
    %v476 = vsel %vm200, %v311, %v407
    %v477 = vsel %vm201, %v311, %v407
    %v478 = vsel %vm200, %v314, %v410
    %v479 = vsel %vm201, %v314, %v410
    %v480 = vsel %vm200, %v317, %v413
    %v481 = vsel %vm201, %v317, %v413
    %v482 = vsel %vm200, %v320, %v416
    %v483 = vsel %vm201, %v320, %v416
    %v484 = vsel %vm200, %v323, %v419
    %v485 = vsel %vm201, %v323, %v419
    %v486 = vsel %vm200, %v326, %v422
    %v487 = vsel %vm201, %v326, %v422
    %v488 = vsel %vm200, %v329, %v425
    %v489 = vsel %vm201, %v329, %v425
    %vm490 = vcmp.ge.s32.totalorder %v198, 128
    %vm491 = vcmp.ge.s32.totalorder %v199, 128
    %v492 = vadd.s32 %v134, 128
    %v493 = vadd.s32 %v136, 128
    %v494 = vadd.s32 %v138, 128
    %v495 = vadd.s32 %v140, 128
    %v496 = vadd.s32 %v142, 128
    %v497 = vadd.s32 %v144, 128
    %v498 = vadd.s32 %v146, 128
    %v499 = vadd.s32 %v148, 128
    %v500 = vadd.s32 %v150, 128
    %v501 = vadd.s32 %v152, 128
    %v502 = vadd.s32 %v154, 128
    %v503 = vadd.s32 %v156, 128
    %v504 = vadd.s32 %v158, 128
    %v505 = vadd.s32 %v160, 128
    %v506 = vadd.s32 %v162, 128
    %v507 = vadd.s32 %v164, 128
    %v508 = vadd.s32 %v166, 128
    %v509 = vadd.s32 %v168, 128
    %v510 = vadd.s32 %v170, 128
    %v511 = vadd.s32 %v172, 128
    %v512 = vadd.s32 %v174, 128
    %v513 = vadd.s32 %v176, 128
    %v514 = vadd.s32 %v178, 128
    %v515 = vadd.s32 %v180, 128
    %v516 = vadd.s32 %v182, 128
    %v517 = vadd.s32 %v184, 128
    %v518 = vadd.s32 %v186, 128
    %v519 = vadd.s32 %v188, 128
    %v520 = vadd.s32 %v190, 128
    %v521 = vadd.s32 %v192, 128
    %v522 = vadd.s32 %v194, 128
    %v523 = vadd.s32 %v196, 128
    %524 = vset.pattern.permute.xlu0 2
    %525 = vperm.xlu0 %524, %v492
    %v526 = vpop.permute.xlu0 %525
    %527 = vset.pattern.permute.xlu0 2
    %528 = vperm.xlu0 %527, %v493
    %v529 = vpop.permute.xlu0 %528
    %530 = vset.pattern.permute.xlu0 2
    %531 = vperm.xlu0 %530, %v494
    %v532 = vpop.permute.xlu0 %531
    %533 = vset.pattern.permute.xlu0 2
    %534 = vperm.xlu0 %533, %v495
    %v535 = vpop.permute.xlu0 %534
    %536 = vset.pattern.permute.xlu0 2
    %537 = vperm.xlu0 %536, %v496
    %v538 = vpop.permute.xlu0 %537
    %539 = vset.pattern.permute.xlu0 2
    %540 = vperm.xlu0 %539, %v497
    %v541 = vpop.permute.xlu0 %540
    %542 = vset.pattern.permute.xlu0 2
    %543 = vperm.xlu0 %542, %v498
    %v544 = vpop.permute.xlu0 %543
    %545 = vset.pattern.permute.xlu0 2
    %546 = vperm.xlu0 %545, %v499
    %v547 = vpop.permute.xlu0 %546
    %548 = vset.pattern.permute.xlu0 2
    %549 = vperm.xlu0 %548, %v500
    %v550 = vpop.permute.xlu0 %549
    %551 = vset.pattern.permute.xlu0 2
    %552 = vperm.xlu0 %551, %v501
    %v553 = vpop.permute.xlu0 %552
    %554 = vset.pattern.permute.xlu0 2
    %555 = vperm.xlu0 %554, %v502
    %v556 = vpop.permute.xlu0 %555
    %557 = vset.pattern.permute.xlu0 2
    %558 = vperm.xlu0 %557, %v503
    %v559 = vpop.permute.xlu0 %558
    %560 = vset.pattern.permute.xlu0 2
    %561 = vperm.xlu0 %560, %v504
    %v562 = vpop.permute.xlu0 %561
    %563 = vset.pattern.permute.xlu0 2
    %564 = vperm.xlu0 %563, %v505
    %v565 = vpop.permute.xlu0 %564
    %566 = vset.pattern.permute.xlu0 2
    %567 = vperm.xlu0 %566, %v506
    %v568 = vpop.permute.xlu0 %567
    %569 = vset.pattern.permute.xlu0 2
    %570 = vperm.xlu0 %569, %v507
    %v571 = vpop.permute.xlu0 %570
    %572 = vset.pattern.permute.xlu0 2
    %573 = vperm.xlu0 %572, %v508
    %v574 = vpop.permute.xlu0 %573
    %575 = vset.pattern.permute.xlu0 2
    %576 = vperm.xlu0 %575, %v509
    %v577 = vpop.permute.xlu0 %576
    %578 = vset.pattern.permute.xlu0 2
    %579 = vperm.xlu0 %578, %v510
    %v580 = vpop.permute.xlu0 %579
    %581 = vset.pattern.permute.xlu0 2
    %582 = vperm.xlu0 %581, %v511
    %v583 = vpop.permute.xlu0 %582
    %584 = vset.pattern.permute.xlu0 2
    %585 = vperm.xlu0 %584, %v512
    %v586 = vpop.permute.xlu0 %585
    %587 = vset.pattern.permute.xlu0 2
    %588 = vperm.xlu0 %587, %v513
    %v589 = vpop.permute.xlu0 %588
    %590 = vset.pattern.permute.xlu0 2
    %591 = vperm.xlu0 %590, %v514
    %v592 = vpop.permute.xlu0 %591
    %593 = vset.pattern.permute.xlu0 2
    %594 = vperm.xlu0 %593, %v515
    %v595 = vpop.permute.xlu0 %594
    %596 = vset.pattern.permute.xlu0 2
    %597 = vperm.xlu0 %596, %v516
    %v598 = vpop.permute.xlu0 %597
    %599 = vset.pattern.permute.xlu0 2
    %600 = vperm.xlu0 %599, %v517
    %v601 = vpop.permute.xlu0 %600
    %602 = vset.pattern.permute.xlu0 2
    %603 = vperm.xlu0 %602, %v518
    %v604 = vpop.permute.xlu0 %603
    %605 = vset.pattern.permute.xlu0 2
    %606 = vperm.xlu0 %605, %v519
    %v607 = vpop.permute.xlu0 %606
    %608 = vset.pattern.permute.xlu0 2
    %609 = vperm.xlu0 %608, %v520
    %v610 = vpop.permute.xlu0 %609
    %611 = vset.pattern.permute.xlu0 2
    %612 = vperm.xlu0 %611, %v521
    %v613 = vpop.permute.xlu0 %612
    %614 = vset.pattern.permute.xlu0 2
    %615 = vperm.xlu0 %614, %v522
    %v616 = vpop.permute.xlu0 %615
    %617 = vset.pattern.permute.xlu0 2
    %618 = vperm.xlu0 %617, %v523
    %v619 = vpop.permute.xlu0 %618
    %v620 = vsel %vm490, %v526, %v426
    %v621 = vsel %vm491, %v526, %v427
    %v622 = vsel %vm490, %v529, %v428
    %v623 = vsel %vm491, %v529, %v429
    %v624 = vsel %vm490, %v532, %v430
    %v625 = vsel %vm491, %v532, %v431
    %v626 = vsel %vm490, %v535, %v432
    %v627 = vsel %vm491, %v535, %v433
    %v628 = vsel %vm490, %v538, %v434
    %v629 = vsel %vm491, %v538, %v435
    %v630 = vsel %vm490, %v541, %v436
    %v631 = vsel %vm491, %v541, %v437
    %v632 = vsel %vm490, %v544, %v438
    %v633 = vsel %vm491, %v544, %v439
    %v634 = vsel %vm490, %v547, %v440
    %v635 = vsel %vm491, %v547, %v441
    %v636 = vsel %vm490, %v550, %v442
    %v637 = vsel %vm491, %v550, %v443
    %v638 = vsel %vm490, %v553, %v444
    %v639 = vsel %vm491, %v553, %v445
    %v640 = vsel %vm490, %v556, %v446
    %v641 = vsel %vm491, %v556, %v447
    %v642 = vsel %vm490, %v559, %v448
    %v643 = vsel %vm491, %v559, %v449
    %v644 = vsel %vm490, %v562, %v450
    %v645 = vsel %vm491, %v562, %v451
    %v646 = vsel %vm490, %v565, %v452
    %v647 = vsel %vm491, %v565, %v453
    %v648 = vsel %vm490, %v568, %v454
    %v649 = vsel %vm491, %v568, %v455
    %v650 = vsel %vm490, %v571, %v456
    %v651 = vsel %vm491, %v571, %v457
    %v652 = vsel %vm490, %v574, %v458
    %v653 = vsel %vm491, %v574, %v459
    %v654 = vsel %vm490, %v577, %v460
    %v655 = vsel %vm491, %v577, %v461
    %v656 = vsel %vm490, %v580, %v462
    %v657 = vsel %vm491, %v580, %v463
    %v658 = vsel %vm490, %v583, %v464
    %v659 = vsel %vm491, %v583, %v465
    %v660 = vsel %vm490, %v586, %v466
    %v661 = vsel %vm491, %v586, %v467
    %v662 = vsel %vm490, %v589, %v468
    %v663 = vsel %vm491, %v589, %v469
    %v664 = vsel %vm490, %v592, %v470
    %v665 = vsel %vm491, %v592, %v471
    %v666 = vsel %vm490, %v595, %v472
    %v667 = vsel %vm491, %v595, %v473
    %v668 = vsel %vm490, %v598, %v474
    %v669 = vsel %vm491, %v598, %v475
    %v670 = vsel %vm490, %v601, %v476
    %v671 = vsel %vm491, %v601, %v477
    %v672 = vsel %vm490, %v604, %v478
    %v673 = vsel %vm491, %v604, %v479
    %v674 = vsel %vm490, %v607, %v480
    %v675 = vsel %vm491, %v607, %v481
    %v676 = vsel %vm490, %v610, %v482
    %v677 = vsel %vm491, %v610, %v483
    %v678 = vsel %vm490, %v613, %v484
    %v679 = vsel %vm491, %v613, %v485
    %v680 = vsel %vm490, %v616, %v486
    %v681 = vsel %vm491, %v616, %v487
    %v682 = vsel %vm490, %v619, %v488
    %v683 = vsel %vm491, %v619, %v489
    %vm684 = vcmp.ge.s32.totalorder %v198, 192
    %vm685 = vcmp.ge.s32.totalorder %v199, 192
    %v686 = vadd.s32 %v134, 192
    %v687 = vadd.s32 %v136, 192
    %v688 = vadd.s32 %v138, 192
    %v689 = vadd.s32 %v140, 192
    %v690 = vadd.s32 %v142, 192
    %v691 = vadd.s32 %v144, 192
    %v692 = vadd.s32 %v146, 192
    %v693 = vadd.s32 %v148, 192
    %v694 = vadd.s32 %v150, 192
    %v695 = vadd.s32 %v152, 192
    %v696 = vadd.s32 %v154, 192
    %v697 = vadd.s32 %v156, 192
    %v698 = vadd.s32 %v158, 192
    %v699 = vadd.s32 %v160, 192
    %v700 = vadd.s32 %v162, 192
    %v701 = vadd.s32 %v164, 192
    %v702 = vadd.s32 %v166, 192
    %v703 = vadd.s32 %v168, 192
    %v704 = vadd.s32 %v170, 192
    %v705 = vadd.s32 %v172, 192
    %v706 = vadd.s32 %v174, 192
    %v707 = vadd.s32 %v176, 192
    %v708 = vadd.s32 %v178, 192
    %v709 = vadd.s32 %v180, 192
    %v710 = vadd.s32 %v182, 192
    %v711 = vadd.s32 %v184, 192
    %v712 = vadd.s32 %v186, 192
    %v713 = vadd.s32 %v188, 192
    %v714 = vadd.s32 %v190, 192
    %v715 = vadd.s32 %v192, 192
    %v716 = vadd.s32 %v194, 192
    %v717 = vadd.s32 %v196, 192
    %718 = vset.pattern.permute.xlu0 3
    %719 = vperm.xlu0 %718, %v686
    %v720 = vpop.permute.xlu0 %719
    %721 = vset.pattern.permute.xlu0 3
    %722 = vperm.xlu0 %721, %v687
    %v723 = vpop.permute.xlu0 %722
    %724 = vset.pattern.permute.xlu0 3
    %725 = vperm.xlu0 %724, %v688
    %v726 = vpop.permute.xlu0 %725
    %727 = vset.pattern.permute.xlu0 3
    %728 = vperm.xlu0 %727, %v689
    %v729 = vpop.permute.xlu0 %728
    %730 = vset.pattern.permute.xlu0 3
    %731 = vperm.xlu0 %730, %v690
    %v732 = vpop.permute.xlu0 %731
    %733 = vset.pattern.permute.xlu0 3
    %734 = vperm.xlu0 %733, %v691
    %v735 = vpop.permute.xlu0 %734
    %736 = vset.pattern.permute.xlu0 3
    %737 = vperm.xlu0 %736, %v692
    %v738 = vpop.permute.xlu0 %737
    %739 = vset.pattern.permute.xlu0 3
    %740 = vperm.xlu0 %739, %v693
    %v741 = vpop.permute.xlu0 %740
    %742 = vset.pattern.permute.xlu0 3
    %743 = vperm.xlu0 %742, %v694
    %v744 = vpop.permute.xlu0 %743
    %745 = vset.pattern.permute.xlu0 3
    %746 = vperm.xlu0 %745, %v695
    %v747 = vpop.permute.xlu0 %746
    %748 = vset.pattern.permute.xlu0 3
    %749 = vperm.xlu0 %748, %v696
    %v750 = vpop.permute.xlu0 %749
    %751 = vset.pattern.permute.xlu0 3
    %752 = vperm.xlu0 %751, %v697
    %v753 = vpop.permute.xlu0 %752
    %754 = vset.pattern.permute.xlu0 3
    %755 = vperm.xlu0 %754, %v698
    %v756 = vpop.permute.xlu0 %755
    %757 = vset.pattern.permute.xlu0 3
    %758 = vperm.xlu0 %757, %v699
    %v759 = vpop.permute.xlu0 %758
    %760 = vset.pattern.permute.xlu0 3
    %761 = vperm.xlu0 %760, %v700
    %v762 = vpop.permute.xlu0 %761
    %763 = vset.pattern.permute.xlu0 3
    %764 = vperm.xlu0 %763, %v701
    %v765 = vpop.permute.xlu0 %764
    %766 = vset.pattern.permute.xlu0 3
    %767 = vperm.xlu0 %766, %v702
    %v768 = vpop.permute.xlu0 %767
    %769 = vset.pattern.permute.xlu0 3
    %770 = vperm.xlu0 %769, %v703
    %v771 = vpop.permute.xlu0 %770
    %772 = vset.pattern.permute.xlu0 3
    %773 = vperm.xlu0 %772, %v704
    %v774 = vpop.permute.xlu0 %773
    %775 = vset.pattern.permute.xlu0 3
    %776 = vperm.xlu0 %775, %v705
    %v777 = vpop.permute.xlu0 %776
    %778 = vset.pattern.permute.xlu0 3
    %779 = vperm.xlu0 %778, %v706
    %v780 = vpop.permute.xlu0 %779
    %781 = vset.pattern.permute.xlu0 3
    %782 = vperm.xlu0 %781, %v707
    %v783 = vpop.permute.xlu0 %782
    %784 = vset.pattern.permute.xlu0 3
    %785 = vperm.xlu0 %784, %v708
    %v786 = vpop.permute.xlu0 %785
    %787 = vset.pattern.permute.xlu0 3
    %788 = vperm.xlu0 %787, %v709
    %v789 = vpop.permute.xlu0 %788
    %790 = vset.pattern.permute.xlu0 3
    %791 = vperm.xlu0 %790, %v710
    %v792 = vpop.permute.xlu0 %791
    %793 = vset.pattern.permute.xlu0 3
    %794 = vperm.xlu0 %793, %v711
    %v795 = vpop.permute.xlu0 %794
    %796 = vset.pattern.permute.xlu0 3
    %797 = vperm.xlu0 %796, %v712
    %v798 = vpop.permute.xlu0 %797
    %799 = vset.pattern.permute.xlu0 3
    %800 = vperm.xlu0 %799, %v713
    %v801 = vpop.permute.xlu0 %800
    %802 = vset.pattern.permute.xlu0 3
    %803 = vperm.xlu0 %802, %v714
    %v804 = vpop.permute.xlu0 %803
    %805 = vset.pattern.permute.xlu0 3
    %806 = vperm.xlu0 %805, %v715
    %v807 = vpop.permute.xlu0 %806
    %808 = vset.pattern.permute.xlu0 3
    %809 = vperm.xlu0 %808, %v716
    %v810 = vpop.permute.xlu0 %809
    %811 = vset.pattern.permute.xlu0 3
    %812 = vperm.xlu0 %811, %v717
    %v813 = vpop.permute.xlu0 %812
    %v814 = vsel %vm684, %v720, %v620
    %v815 = vsel %vm685, %v720, %v621
    %v816 = vsel %vm684, %v723, %v622
    %v817 = vsel %vm685, %v723, %v623
    %v818 = vsel %vm684, %v726, %v624
    %v819 = vsel %vm685, %v726, %v625
    %v820 = vsel %vm684, %v729, %v626
    %v821 = vsel %vm685, %v729, %v627
    %v822 = vsel %vm684, %v732, %v628
    %v823 = vsel %vm685, %v732, %v629
    %v824 = vsel %vm684, %v735, %v630
    %v825 = vsel %vm685, %v735, %v631
    %v826 = vsel %vm684, %v738, %v632
    %v827 = vsel %vm685, %v738, %v633
    %v828 = vsel %vm684, %v741, %v634
    %v829 = vsel %vm685, %v741, %v635
    %v830 = vsel %vm684, %v744, %v636
    %v831 = vsel %vm685, %v744, %v637
    %v832 = vsel %vm684, %v747, %v638
    %v833 = vsel %vm685, %v747, %v639
    %v834 = vsel %vm684, %v750, %v640
    %v835 = vsel %vm685, %v750, %v641
    %v836 = vsel %vm684, %v753, %v642
    %v837 = vsel %vm685, %v753, %v643
    %v838 = vsel %vm684, %v756, %v644
    %v839 = vsel %vm685, %v756, %v645
    %v840 = vsel %vm684, %v759, %v646
    %v841 = vsel %vm685, %v759, %v647
    %v842 = vsel %vm684, %v762, %v648
    %v843 = vsel %vm685, %v762, %v649
    %v844 = vsel %vm684, %v765, %v650
    %v845 = vsel %vm685, %v765, %v651
    %v846 = vsel %vm684, %v768, %v652
    %v847 = vsel %vm685, %v768, %v653
    %v848 = vsel %vm684, %v771, %v654
    %v849 = vsel %vm685, %v771, %v655
    %v850 = vsel %vm684, %v774, %v656
    %v851 = vsel %vm685, %v774, %v657
    %v852 = vsel %vm684, %v777, %v658
    %v853 = vsel %vm685, %v777, %v659
    %v854 = vsel %vm684, %v780, %v660
    %v855 = vsel %vm685, %v780, %v661
    %v856 = vsel %vm684, %v783, %v662
    %v857 = vsel %vm685, %v783, %v663
    %v858 = vsel %vm684, %v786, %v664
    %v859 = vsel %vm685, %v786, %v665
    %v860 = vsel %vm684, %v789, %v666
    %v861 = vsel %vm685, %v789, %v667
    %v862 = vsel %vm684, %v792, %v668
    %v863 = vsel %vm685, %v792, %v669
    %v864 = vsel %vm684, %v795, %v670
    %v865 = vsel %vm685, %v795, %v671
    %v866 = vsel %vm684, %v798, %v672
    %v867 = vsel %vm685, %v798, %v673
    %v868 = vsel %vm684, %v801, %v674
    %v869 = vsel %vm685, %v801, %v675
    %v870 = vsel %vm684, %v804, %v676
    %v871 = vsel %vm685, %v804, %v677
    %v872 = vsel %vm684, %v807, %v678
    %v873 = vsel %vm685, %v807, %v679
    %v874 = vsel %vm684, %v810, %v680
    %v875 = vsel %vm685, %v810, %v681
    %v876 = vsel %vm684, %v813, %v682
    %v877 = vsel %vm685, %v813, %v683
    %vm878 = vcmp.eq.s32.totalorder %v198, %v814
    %vm879 = vcmp.eq.s32.totalorder %v199, %v815
    %vm880 = vcmp.eq.s32.totalorder %v198, %v816
    %vm881 = vcmp.eq.s32.totalorder %v199, %v817
    %vm882 = vcmp.eq.s32.totalorder %v198, %v818
    %vm883 = vcmp.eq.s32.totalorder %v199, %v819
    %vm884 = vcmp.eq.s32.totalorder %v198, %v820
    %vm885 = vcmp.eq.s32.totalorder %v199, %v821
    %vm886 = vcmp.eq.s32.totalorder %v198, %v822
    %vm887 = vcmp.eq.s32.totalorder %v199, %v823
    %vm888 = vcmp.eq.s32.totalorder %v198, %v824
    %vm889 = vcmp.eq.s32.totalorder %v199, %v825
    %vm890 = vcmp.eq.s32.totalorder %v198, %v826
    %vm891 = vcmp.eq.s32.totalorder %v199, %v827
    %vm892 = vcmp.eq.s32.totalorder %v198, %v828
    %vm893 = vcmp.eq.s32.totalorder %v199, %v829
    %vm894 = vcmp.eq.s32.totalorder %v198, %v830
    %vm895 = vcmp.eq.s32.totalorder %v199, %v831
    %vm896 = vcmp.eq.s32.totalorder %v198, %v832
    %vm897 = vcmp.eq.s32.totalorder %v199, %v833
    %vm898 = vcmp.eq.s32.totalorder %v198, %v834
    %vm899 = vcmp.eq.s32.totalorder %v199, %v835
    %vm900 = vcmp.eq.s32.totalorder %v198, %v836
    %vm901 = vcmp.eq.s32.totalorder %v199, %v837
    %vm902 = vcmp.eq.s32.totalorder %v198, %v838
    %vm903 = vcmp.eq.s32.totalorder %v199, %v839
    %vm904 = vcmp.eq.s32.totalorder %v198, %v840
    %vm905 = vcmp.eq.s32.totalorder %v199, %v841
    %vm906 = vcmp.eq.s32.totalorder %v198, %v842
    %vm907 = vcmp.eq.s32.totalorder %v199, %v843
    %vm908 = vcmp.eq.s32.totalorder %v198, %v844
    %vm909 = vcmp.eq.s32.totalorder %v199, %v845
    %vm910 = vcmp.eq.s32.totalorder %v198, %v846
    %vm911 = vcmp.eq.s32.totalorder %v199, %v847
    %vm912 = vcmp.eq.s32.totalorder %v198, %v848
    %vm913 = vcmp.eq.s32.totalorder %v199, %v849
    %vm914 = vcmp.eq.s32.totalorder %v198, %v850
    %vm915 = vcmp.eq.s32.totalorder %v199, %v851
    %vm916 = vcmp.eq.s32.totalorder %v198, %v852
    %vm917 = vcmp.eq.s32.totalorder %v199, %v853
    %vm918 = vcmp.eq.s32.totalorder %v198, %v854
    %vm919 = vcmp.eq.s32.totalorder %v199, %v855
    %vm920 = vcmp.eq.s32.totalorder %v198, %v856
    %vm921 = vcmp.eq.s32.totalorder %v199, %v857
    %vm922 = vcmp.eq.s32.totalorder %v198, %v858
    %vm923 = vcmp.eq.s32.totalorder %v199, %v859
    %vm924 = vcmp.eq.s32.totalorder %v198, %v860
    %vm925 = vcmp.eq.s32.totalorder %v199, %v861
    %vm926 = vcmp.eq.s32.totalorder %v198, %v862
    %vm927 = vcmp.eq.s32.totalorder %v199, %v863
    %vm928 = vcmp.eq.s32.totalorder %v198, %v864
    %vm929 = vcmp.eq.s32.totalorder %v199, %v865
    %vm930 = vcmp.eq.s32.totalorder %v198, %v866
    %vm931 = vcmp.eq.s32.totalorder %v199, %v867
    %vm932 = vcmp.eq.s32.totalorder %v198, %v868
    %vm933 = vcmp.eq.s32.totalorder %v199, %v869
    %vm934 = vcmp.eq.s32.totalorder %v198, %v870
    %vm935 = vcmp.eq.s32.totalorder %v199, %v871
    %vm936 = vcmp.eq.s32.totalorder %v198, %v872
    %vm937 = vcmp.eq.s32.totalorder %v199, %v873
    %vm938 = vcmp.eq.s32.totalorder %v198, %v874
    %vm939 = vcmp.eq.s32.totalorder %v199, %v875
    %vm940 = vcmp.eq.s32.totalorder %v198, %v876
    %vm941 = vcmp.eq.s32.totalorder %v199, %v877
    %v942 = vsel %vm878, 1, 0
    %v943 = vsel %vm879, 1, 0
    %v944 = vsel %vm880, 1, 0
    %v945 = vsel %vm881, 1, 0
    %v946 = vsel %vm882, 1, 0
    %v947 = vsel %vm883, 1, 0
    %v948 = vsel %vm884, 1, 0
    %v949 = vsel %vm885, 1, 0
    %v950 = vsel %vm886, 1, 0
    %v951 = vsel %vm887, 1, 0
    %v952 = vsel %vm888, 1, 0
    %v953 = vsel %vm889, 1, 0
    %v954 = vsel %vm890, 1, 0
    %v955 = vsel %vm891, 1, 0
    %v956 = vsel %vm892, 1, 0
    %v957 = vsel %vm893, 1, 0
    %v958 = vsel %vm894, 1, 0
    %v959 = vsel %vm895, 1, 0
    %v960 = vsel %vm896, 1, 0
    %v961 = vsel %vm897, 1, 0
    %v962 = vsel %vm898, 1, 0
    %v963 = vsel %vm899, 1, 0
    %v964 = vsel %vm900, 1, 0
    %v965 = vsel %vm901, 1, 0
    %v966 = vsel %vm902, 1, 0
    %v967 = vsel %vm903, 1, 0
    %v968 = vsel %vm904, 1, 0
    %v969 = vsel %vm905, 1, 0
    %v970 = vsel %vm906, 1, 0
    %v971 = vsel %vm907, 1, 0
    %v972 = vsel %vm908, 1, 0
    %v973 = vsel %vm909, 1, 0
    %v974 = vsel %vm910, 1, 0
    %v975 = vsel %vm911, 1, 0
    %v976 = vsel %vm912, 1, 0
    %v977 = vsel %vm913, 1, 0
    %v978 = vsel %vm914, 1, 0
    %v979 = vsel %vm915, 1, 0
    %v980 = vsel %vm916, 1, 0
    %v981 = vsel %vm917, 1, 0
    %v982 = vsel %vm918, 1, 0
    %v983 = vsel %vm919, 1, 0
    %v984 = vsel %vm920, 1, 0
    %v985 = vsel %vm921, 1, 0
    %v986 = vsel %vm922, 1, 0
    %v987 = vsel %vm923, 1, 0
    %v988 = vsel %vm924, 1, 0
    %v989 = vsel %vm925, 1, 0
    %v990 = vsel %vm926, 1, 0
    %v991 = vsel %vm927, 1, 0
    %v992 = vsel %vm928, 1, 0
    %v993 = vsel %vm929, 1, 0
    %v994 = vsel %vm930, 1, 0
    %v995 = vsel %vm931, 1, 0
    %v996 = vsel %vm932, 1, 0
    %v997 = vsel %vm933, 1, 0
    %v998 = vsel %vm934, 1, 0
    %v999 = vsel %vm935, 1, 0
    %v1000 = vsel %vm936, 1, 0
    %v1001 = vsel %vm937, 1, 0
    %v1002 = vsel %vm938, 1, 0
    %v1003 = vsel %vm939, 1, 0
    %v1004 = vsel %vm940, 1, 0
    %v1005 = vsel %vm941, 1, 0
    %v1006 = vcvt.s32.f32 %v942
    %v1007 = vcvt.s32.f32 %v943
    %v1008 = vcvt.s32.f32 %v944
    %v1009 = vcvt.s32.f32 %v945
    %v1010 = vcvt.s32.f32 %v946
    %v1011 = vcvt.s32.f32 %v947
    %v1012 = vcvt.s32.f32 %v948
    %v1013 = vcvt.s32.f32 %v949
    %v1014 = vcvt.s32.f32 %v950
    %v1015 = vcvt.s32.f32 %v951
    %v1016 = vcvt.s32.f32 %v952
    %v1017 = vcvt.s32.f32 %v953
    %v1018 = vcvt.s32.f32 %v954
    %v1019 = vcvt.s32.f32 %v955
    %v1020 = vcvt.s32.f32 %v956
    %v1021 = vcvt.s32.f32 %v957
    %v1022 = vcvt.s32.f32 %v958
    %v1023 = vcvt.s32.f32 %v959
    %v1024 = vcvt.s32.f32 %v960
    %v1025 = vcvt.s32.f32 %v961
    %v1026 = vcvt.s32.f32 %v962
    %v1027 = vcvt.s32.f32 %v963
    %v1028 = vcvt.s32.f32 %v964
    %v1029 = vcvt.s32.f32 %v965
    %v1030 = vcvt.s32.f32 %v966
    %v1031 = vcvt.s32.f32 %v967
    %v1032 = vcvt.s32.f32 %v968
    %v1033 = vcvt.s32.f32 %v969
    %v1034 = vcvt.s32.f32 %v970
    %v1035 = vcvt.s32.f32 %v971
    %v1036 = vcvt.s32.f32 %v972
    %v1037 = vcvt.s32.f32 %v973
    %v1038 = vcvt.s32.f32 %v974
    %v1039 = vcvt.s32.f32 %v975
    %v1040 = vcvt.s32.f32 %v976
    %v1041 = vcvt.s32.f32 %v977
    %v1042 = vcvt.s32.f32 %v978
    %v1043 = vcvt.s32.f32 %v979
    %v1044 = vcvt.s32.f32 %v980
    %v1045 = vcvt.s32.f32 %v981
    %v1046 = vcvt.s32.f32 %v982
    %v1047 = vcvt.s32.f32 %v983
    %v1048 = vcvt.s32.f32 %v984
    %v1049 = vcvt.s32.f32 %v985
    %v1050 = vcvt.s32.f32 %v986
    %v1051 = vcvt.s32.f32 %v987
    %v1052 = vcvt.s32.f32 %v988
    %v1053 = vcvt.s32.f32 %v989
    %v1054 = vcvt.s32.f32 %v990
    %v1055 = vcvt.s32.f32 %v991
    %v1056 = vcvt.s32.f32 %v992
    %v1057 = vcvt.s32.f32 %v993
    %v1058 = vcvt.s32.f32 %v994
    %v1059 = vcvt.s32.f32 %v995
    %v1060 = vcvt.s32.f32 %v996
    %v1061 = vcvt.s32.f32 %v997
    %v1062 = vcvt.s32.f32 %v998
    %v1063 = vcvt.s32.f32 %v999
    %v1064 = vcvt.s32.f32 %v1000
    %v1065 = vcvt.s32.f32 %v1001
    %v1066 = vcvt.s32.f32 %v1002
    %v1067 = vcvt.s32.f32 %v1003
    %v1068 = vcvt.s32.f32 %v1004
    %v1069 = vcvt.s32.f32 %v1005
    %v1070 = vpack.c.bf16 %v1008, %v1006
    %v1071 = vpack.c.bf16 %v1009, %v1007
    %v1072 = vpack.c.bf16 %v1012, %v1010
    %v1073 = vpack.c.bf16 %v1013, %v1011
    %v1074 = vpack.c.bf16 %v1016, %v1014
    %v1075 = vpack.c.bf16 %v1017, %v1015
    %v1076 = vpack.c.bf16 %v1020, %v1018
    %v1077 = vpack.c.bf16 %v1021, %v1019
    %v1078 = vpack.c.bf16 %v1024, %v1022
    %v1079 = vpack.c.bf16 %v1025, %v1023
    %v1080 = vpack.c.bf16 %v1028, %v1026
    %v1081 = vpack.c.bf16 %v1029, %v1027
    %v1082 = vpack.c.bf16 %v1032, %v1030
    %v1083 = vpack.c.bf16 %v1033, %v1031
    %v1084 = vpack.c.bf16 %v1036, %v1034
    %v1085 = vpack.c.bf16 %v1037, %v1035
    %v1086 = vpack.c.bf16 %v1040, %v1038
    %v1087 = vpack.c.bf16 %v1041, %v1039
    %v1088 = vpack.c.bf16 %v1044, %v1042
    %v1089 = vpack.c.bf16 %v1045, %v1043
    %v1090 = vpack.c.bf16 %v1048, %v1046
    %v1091 = vpack.c.bf16 %v1049, %v1047
    %v1092 = vpack.c.bf16 %v1052, %v1050
    %v1093 = vpack.c.bf16 %v1053, %v1051
    %v1094 = vpack.c.bf16 %v1056, %v1054
    %v1095 = vpack.c.bf16 %v1057, %v1055
    %v1096 = vpack.c.bf16 %v1060, %v1058
    %v1097 = vpack.c.bf16 %v1061, %v1059
    %v1098 = vpack.c.bf16 %v1064, %v1062
    %v1099 = vpack.c.bf16 %v1065, %v1063
    %v1100 = vpack.c.bf16 %v1068, %v1066
    %v1101 = vpack.c.bf16 %v1069, %v1067
    %v1102 = vld [vmem:[#allocation2] sm:$0xff]
    %v1103 = vld [vmem:[#allocation2 + $0x8] sm:$0xff]
    %v1104 = vld [vmem:[#allocation2 + $0x10] sm:$0xff]
    %v1105 = vld [vmem:[#allocation2 + $0x18] sm:$0xff]
    %v1106 = vld [vmem:[#allocation2 + $0x20] sm:$0xff]
    %v1107 = vld [vmem:[#allocation2 + $0x28] sm:$0xff]
    %v1108 = vld [vmem:[#allocation2 + $0x30] sm:$0xff]
    %v1109 = vld [vmem:[#allocation2 + $0x38] sm:$0xff]
    %v1110 = vld [vmem:[#allocation2 + $0x40] sm:$0xff]
    %v1111 = vld [vmem:[#allocation2 + $0x48] sm:$0xff]
    %v1112 = vld [vmem:[#allocation2 + $0x50] sm:$0xff]
    %v1113 = vld [vmem:[#allocation2 + $0x58] sm:$0xff]
    %v1114 = vld [vmem:[#allocation2 + $0x60] sm:$0xff]
    %v1115 = vld [vmem:[#allocation2 + $0x68] sm:$0xff]
    %v1116 = vld [vmem:[#allocation2 + $0x70] sm:$0xff]
    %v1117 = vld [vmem:[#allocation2 + $0x78] sm:$0xff]
    %v1118 = vld [vmem:[#allocation2 + $0x80] sm:$0xff]
    %v1119 = vld [vmem:[#allocation2 + $0x88] sm:$0xff]
    %v1120 = vld [vmem:[#allocation2 + $0x90] sm:$0xff]
    %v1121 = vld [vmem:[#allocation2 + $0x98] sm:$0xff]
    %v1122 = vld [vmem:[#allocation2 + $0xa0] sm:$0xff]
    %v1123 = vld [vmem:[#allocation2 + $0xa8] sm:$0xff]
    %v1124 = vld [vmem:[#allocation2 + $0xb0] sm:$0xff]
    %v1125 = vld [vmem:[#allocation2 + $0xb8] sm:$0xff]
    %v1126 = vld [vmem:[#allocation2 + $0xc0] sm:$0xff]
    %v1127 = vld [vmem:[#allocation2 + $0xc8] sm:$0xff]
    %v1128 = vld [vmem:[#allocation2 + $0xd0] sm:$0xff]
    %v1129 = vld [vmem:[#allocation2 + $0xd8] sm:$0xff]
    %v1130 = vld [vmem:[#allocation2 + $0xe0] sm:$0xff]
    %v1131 = vld [vmem:[#allocation2 + $0xe8] sm:$0xff]
    %v1132 = vld [vmem:[#allocation2 + $0xf0] sm:$0xff]
    %v1133 = vld [vmem:[#allocation2 + $0xf8] sm:$0xff]
    %1134 = vset.pattern.permute.xlu0 5
    %1135 = vperm.xlu0 %1134, %v202
    %v1136 = vpop.permute.xlu0 %1135
    %1137 = vset.pattern.permute.xlu0 5
    %1138 = vperm.xlu0 %1137, %v203
    %v1139 = vpop.permute.xlu0 %1138
    %1140 = vset.pattern.permute.xlu0 5
    %1141 = vperm.xlu0 %1140, %v204
    %v1142 = vpop.permute.xlu0 %1141
    %1143 = vset.pattern.permute.xlu0 5
    %1144 = vperm.xlu0 %1143, %v205
    %v1145 = vpop.permute.xlu0 %1144
    %1146 = vset.pattern.permute.xlu0 5
    %1147 = vperm.xlu0 %1146, %v206
    %v1148 = vpop.permute.xlu0 %1147
    %1149 = vset.pattern.permute.xlu0 5
    %1150 = vperm.xlu0 %1149, %v207
    %v1151 = vpop.permute.xlu0 %1150
    %1152 = vset.pattern.permute.xlu0 5
    %1153 = vperm.xlu0 %1152, %v208
    %v1154 = vpop.permute.xlu0 %1153
    %1155 = vset.pattern.permute.xlu0 5
    %1156 = vperm.xlu0 %1155, %v209
    %v1157 = vpop.permute.xlu0 %1156
    %1158 = vset.pattern.permute.xlu0 5
    %1159 = vperm.xlu0 %1158, %v210
    %v1160 = vpop.permute.xlu0 %1159
    %1161 = vset.pattern.permute.xlu0 5
    %1162 = vperm.xlu0 %1161, %v211
    %v1163 = vpop.permute.xlu0 %1162
    %1164 = vset.pattern.permute.xlu0 5
    %1165 = vperm.xlu0 %1164, %v212
    %v1166 = vpop.permute.xlu0 %1165
    %1167 = vset.pattern.permute.xlu0 5
    %1168 = vperm.xlu0 %1167, %v213
    %v1169 = vpop.permute.xlu0 %1168
    %1170 = vset.pattern.permute.xlu0 5
    %1171 = vperm.xlu0 %1170, %v214
    %v1172 = vpop.permute.xlu0 %1171
    %1173 = vset.pattern.permute.xlu0 5
    %1174 = vperm.xlu0 %1173, %v215
    %v1175 = vpop.permute.xlu0 %1174
    %1176 = vset.pattern.permute.xlu0 5
    %1177 = vperm.xlu0 %1176, %v216
    %v1178 = vpop.permute.xlu0 %1177
    %1179 = vset.pattern.permute.xlu0 5
    %1180 = vperm.xlu0 %1179, %v217
    %v1181 = vpop.permute.xlu0 %1180
    %1182 = vset.pattern.permute.xlu0 5
    %1183 = vperm.xlu0 %1182, %v218
    %v1184 = vpop.permute.xlu0 %1183
    %1185 = vset.pattern.permute.xlu0 5
    %1186 = vperm.xlu0 %1185, %v219
    %v1187 = vpop.permute.xlu0 %1186
    %1188 = vset.pattern.permute.xlu0 5
    %1189 = vperm.xlu0 %1188, %v220
    %v1190 = vpop.permute.xlu0 %1189
    %1191 = vset.pattern.permute.xlu0 5
    %1192 = vperm.xlu0 %1191, %v221
    %v1193 = vpop.permute.xlu0 %1192
    %1194 = vset.pattern.permute.xlu0 5
    %1195 = vperm.xlu0 %1194, %v222
    %v1196 = vpop.permute.xlu0 %1195
    %1197 = vset.pattern.permute.xlu0 5
    %1198 = vperm.xlu0 %1197, %v223
    %v1199 = vpop.permute.xlu0 %1198
    %1200 = vset.pattern.permute.xlu0 5
    %1201 = vperm.xlu0 %1200, %v224
    %v1202 = vpop.permute.xlu0 %1201
    %1203 = vset.pattern.permute.xlu0 5
    %1204 = vperm.xlu0 %1203, %v225
    %v1205 = vpop.permute.xlu0 %1204
    %1206 = vset.pattern.permute.xlu0 5
    %1207 = vperm.xlu0 %1206, %v226
    %v1208 = vpop.permute.xlu0 %1207
    %1209 = vset.pattern.permute.xlu0 5
    %1210 = vperm.xlu0 %1209, %v227
    %v1211 = vpop.permute.xlu0 %1210
    %1212 = vset.pattern.permute.xlu0 5
    %1213 = vperm.xlu0 %1212, %v228
    %v1214 = vpop.permute.xlu0 %1213
    %1215 = vset.pattern.permute.xlu0 5
    %1216 = vperm.xlu0 %1215, %v229
    %v1217 = vpop.permute.xlu0 %1216
    %1218 = vset.pattern.permute.xlu0 5
    %1219 = vperm.xlu0 %1218, %v230
    %v1220 = vpop.permute.xlu0 %1219
    %1221 = vset.pattern.permute.xlu0 5
    %1222 = vperm.xlu0 %1221, %v231
    %v1223 = vpop.permute.xlu0 %1222
    %1224 = vset.pattern.permute.xlu0 5
    %1225 = vperm.xlu0 %1224, %v232
    %v1226 = vpop.permute.xlu0 %1225
    %1227 = vset.pattern.permute.xlu0 5
    %1228 = vperm.xlu0 %1227, %v233
    %v1229 = vpop.permute.xlu0 %1228
    %1230 = vset.pattern.permute.xlu0 4
    %1231 = vperm.xlu0 %1230, %v134
    %v1232 = vpop.permute.xlu0 %1231
    %1233 = vset.pattern.permute.xlu0 4
    %1234 = vperm.xlu0 %1233, %v136
    %v1235 = vpop.permute.xlu0 %1234
    %1236 = vset.pattern.permute.xlu0 4
    %1237 = vperm.xlu0 %1236, %v138
    %v1238 = vpop.permute.xlu0 %1237
    %1239 = vset.pattern.permute.xlu0 4
    %1240 = vperm.xlu0 %1239, %v140
    %v1241 = vpop.permute.xlu0 %1240
    %1242 = vset.pattern.permute.xlu0 4
    %1243 = vperm.xlu0 %1242, %v142
    %v1244 = vpop.permute.xlu0 %1243
    %1245 = vset.pattern.permute.xlu0 4
    %1246 = vperm.xlu0 %1245, %v144
    %v1247 = vpop.permute.xlu0 %1246
    %1248 = vset.pattern.permute.xlu0 4
    %1249 = vperm.xlu0 %1248, %v146
    %v1250 = vpop.permute.xlu0 %1249
    %1251 = vset.pattern.permute.xlu0 4
    %1252 = vperm.xlu0 %1251, %v148
    %v1253 = vpop.permute.xlu0 %1252
    %1254 = vset.pattern.permute.xlu0 4
    %1255 = vperm.xlu0 %1254, %v150
    %v1256 = vpop.permute.xlu0 %1255
    %1257 = vset.pattern.permute.xlu0 4
    %1258 = vperm.xlu0 %1257, %v152
    %v1259 = vpop.permute.xlu0 %1258
    %1260 = vset.pattern.permute.xlu0 4
    %1261 = vperm.xlu0 %1260, %v154
    %v1262 = vpop.permute.xlu0 %1261
    %1263 = vset.pattern.permute.xlu0 4
    %1264 = vperm.xlu0 %1263, %v156
    %v1265 = vpop.permute.xlu0 %1264
    %1266 = vset.pattern.permute.xlu0 4
    %1267 = vperm.xlu0 %1266, %v158
    %v1268 = vpop.permute.xlu0 %1267
    %1269 = vset.pattern.permute.xlu0 4
    %1270 = vperm.xlu0 %1269, %v160
    %v1271 = vpop.permute.xlu0 %1270
    %1272 = vset.pattern.permute.xlu0 4
    %1273 = vperm.xlu0 %1272, %v162
    %v1274 = vpop.permute.xlu0 %1273
    %1275 = vset.pattern.permute.xlu0 4
    %1276 = vperm.xlu0 %1275, %v164
    %v1277 = vpop.permute.xlu0 %1276
    %1278 = vset.pattern.permute.xlu0 4
    %1279 = vperm.xlu0 %1278, %v166
    %v1280 = vpop.permute.xlu0 %1279
    %1281 = vset.pattern.permute.xlu0 4
    %1282 = vperm.xlu0 %1281, %v168
    %v1283 = vpop.permute.xlu0 %1282
    %1284 = vset.pattern.permute.xlu0 4
    %1285 = vperm.xlu0 %1284, %v170
    %v1286 = vpop.permute.xlu0 %1285
    %1287 = vset.pattern.permute.xlu0 4
    %1288 = vperm.xlu0 %1287, %v172
    %v1289 = vpop.permute.xlu0 %1288
    %1290 = vset.pattern.permute.xlu0 4
    %1291 = vperm.xlu0 %1290, %v174
    %v1292 = vpop.permute.xlu0 %1291
    %1293 = vset.pattern.permute.xlu0 4
    %1294 = vperm.xlu0 %1293, %v176
    %v1295 = vpop.permute.xlu0 %1294
    %1296 = vset.pattern.permute.xlu0 4
    %1297 = vperm.xlu0 %1296, %v178
    %v1298 = vpop.permute.xlu0 %1297
    %1299 = vset.pattern.permute.xlu0 4
    %1300 = vperm.xlu0 %1299, %v180
    %v1301 = vpop.permute.xlu0 %1300
    %1302 = vset.pattern.permute.xlu0 4
    %1303 = vperm.xlu0 %1302, %v182
    %v1304 = vpop.permute.xlu0 %1303
    %1305 = vset.pattern.permute.xlu0 4
    %1306 = vperm.xlu0 %1305, %v184
    %v1307 = vpop.permute.xlu0 %1306
    %1308 = vset.pattern.permute.xlu0 4
    %1309 = vperm.xlu0 %1308, %v186
    %v1310 = vpop.permute.xlu0 %1309
    %1311 = vset.pattern.permute.xlu0 4
    %1312 = vperm.xlu0 %1311, %v188
    %v1313 = vpop.permute.xlu0 %1312
    %1314 = vset.pattern.permute.xlu0 4
    %1315 = vperm.xlu0 %1314, %v190
    %v1316 = vpop.permute.xlu0 %1315
    %1317 = vset.pattern.permute.xlu0 4
    %1318 = vperm.xlu0 %1317, %v192
    %v1319 = vpop.permute.xlu0 %1318
    %1320 = vset.pattern.permute.xlu0 4
    %1321 = vperm.xlu0 %1320, %v194
    %v1322 = vpop.permute.xlu0 %1321
    %1323 = vset.pattern.permute.xlu0 4
    %1324 = vperm.xlu0 %1323, %v196
    %v1325 = vpop.permute.xlu0 %1324
    %v1326 = vsel %vm200, %v1136, %v1232
    %v1327 = vsel %vm201, %v1136, %v1232
    %v1328 = vsel %vm200, %v1139, %v1235
    %v1329 = vsel %vm201, %v1139, %v1235
    %v1330 = vsel %vm200, %v1142, %v1238
    %v1331 = vsel %vm201, %v1142, %v1238
    %v1332 = vsel %vm200, %v1145, %v1241
    %v1333 = vsel %vm201, %v1145, %v1241
    %v1334 = vsel %vm200, %v1148, %v1244
    %v1335 = vsel %vm201, %v1148, %v1244
    %v1336 = vsel %vm200, %v1151, %v1247
    %v1337 = vsel %vm201, %v1151, %v1247
    %v1338 = vsel %vm200, %v1154, %v1250
    %v1339 = vsel %vm201, %v1154, %v1250
    %v1340 = vsel %vm200, %v1157, %v1253
    %v1341 = vsel %vm201, %v1157, %v1253
    %v1342 = vsel %vm200, %v1160, %v1256
    %v1343 = vsel %vm201, %v1160, %v1256
    %v1344 = vsel %vm200, %v1163, %v1259
    %v1345 = vsel %vm201, %v1163, %v1259
    %v1346 = vsel %vm200, %v1166, %v1262
    %v1347 = vsel %vm201, %v1166, %v1262
    %v1348 = vsel %vm200, %v1169, %v1265
    %v1349 = vsel %vm201, %v1169, %v1265
    %v1350 = vsel %vm200, %v1172, %v1268
    %v1351 = vsel %vm201, %v1172, %v1268
    %v1352 = vsel %vm200, %v1175, %v1271
    %v1353 = vsel %vm201, %v1175, %v1271
    %v1354 = vsel %vm200, %v1178, %v1274
    %v1355 = vsel %vm201, %v1178, %v1274
    %v1356 = vsel %vm200, %v1181, %v1277
    %v1357 = vsel %vm201, %v1181, %v1277
    %v1358 = vsel %vm200, %v1184, %v1280
    %v1359 = vsel %vm201, %v1184, %v1280
    %v1360 = vsel %vm200, %v1187, %v1283
    %v1361 = vsel %vm201, %v1187, %v1283
    %v1362 = vsel %vm200, %v1190, %v1286
    %v1363 = vsel %vm201, %v1190, %v1286
    %v1364 = vsel %vm200, %v1193, %v1289
    %v1365 = vsel %vm201, %v1193, %v1289
    %v1366 = vsel %vm200, %v1196, %v1292
    %v1367 = vsel %vm201, %v1196, %v1292
    %v1368 = vsel %vm200, %v1199, %v1295
    %v1369 = vsel %vm201, %v1199, %v1295
    %v1370 = vsel %vm200, %v1202, %v1298
    %v1371 = vsel %vm201, %v1202, %v1298
    %v1372 = vsel %vm200, %v1205, %v1301
    %v1373 = vsel %vm201, %v1205, %v1301
    %v1374 = vsel %vm200, %v1208, %v1304
    %v1375 = vsel %vm201, %v1208, %v1304
    %v1376 = vsel %vm200, %v1211, %v1307
    %v1377 = vsel %vm201, %v1211, %v1307
    %v1378 = vsel %vm200, %v1214, %v1310
    %v1379 = vsel %vm201, %v1214, %v1310
    %v1380 = vsel %vm200, %v1217, %v1313
    %v1381 = vsel %vm201, %v1217, %v1313
    %v1382 = vsel %vm200, %v1220, %v1316
    %v1383 = vsel %vm201, %v1220, %v1316
    %v1384 = vsel %vm200, %v1223, %v1319
    %v1385 = vsel %vm201, %v1223, %v1319
    %v1386 = vsel %vm200, %v1226, %v1322
    %v1387 = vsel %vm201, %v1226, %v1322
    %v1388 = vsel %vm200, %v1229, %v1325
    %v1389 = vsel %vm201, %v1229, %v1325
    %1390 = vset.pattern.permute.xlu0 6
    %1391 = vperm.xlu0 %1390, %v492
    %v1392 = vpop.permute.xlu0 %1391
    %1393 = vset.pattern.permute.xlu0 6
    %1394 = vperm.xlu0 %1393, %v493
    %v1395 = vpop.permute.xlu0 %1394
    %1396 = vset.pattern.permute.xlu0 6
    %1397 = vperm.xlu0 %1396, %v494
    %v1398 = vpop.permute.xlu0 %1397
    %1399 = vset.pattern.permute.xlu0 6
    %1400 = vperm.xlu0 %1399, %v495
    %v1401 = vpop.permute.xlu0 %1400
    %1402 = vset.pattern.permute.xlu0 6
    %1403 = vperm.xlu0 %1402, %v496
    %v1404 = vpop.permute.xlu0 %1403
    %1405 = vset.pattern.permute.xlu0 6
    %1406 = vperm.xlu0 %1405, %v497
    %v1407 = vpop.permute.xlu0 %1406
    %1408 = vset.pattern.permute.xlu0 6
    %1409 = vperm.xlu0 %1408, %v498
    %v1410 = vpop.permute.xlu0 %1409
    %1411 = vset.pattern.permute.xlu0 6
    %1412 = vperm.xlu0 %1411, %v499
    %v1413 = vpop.permute.xlu0 %1412
    %1414 = vset.pattern.permute.xlu0 6
    %1415 = vperm.xlu0 %1414, %v500
    %v1416 = vpop.permute.xlu0 %1415
    %1417 = vset.pattern.permute.xlu0 6
    %1418 = vperm.xlu0 %1417, %v501
    %v1419 = vpop.permute.xlu0 %1418
    %1420 = vset.pattern.permute.xlu0 6
    %1421 = vperm.xlu0 %1420, %v502
    %v1422 = vpop.permute.xlu0 %1421
    %1423 = vset.pattern.permute.xlu0 6
    %1424 = vperm.xlu0 %1423, %v503
    %v1425 = vpop.permute.xlu0 %1424
    %1426 = vset.pattern.permute.xlu0 6
    %1427 = vperm.xlu0 %1426, %v504
    %v1428 = vpop.permute.xlu0 %1427
    %1429 = vset.pattern.permute.xlu0 6
    %1430 = vperm.xlu0 %1429, %v505
    %v1431 = vpop.permute.xlu0 %1430
    %1432 = vset.pattern.permute.xlu0 6
    %1433 = vperm.xlu0 %1432, %v506
    %v1434 = vpop.permute.xlu0 %1433
    %1435 = vset.pattern.permute.xlu0 6
    %1436 = vperm.xlu0 %1435, %v507
    %v1437 = vpop.permute.xlu0 %1436
    %1438 = vset.pattern.permute.xlu0 6
    %1439 = vperm.xlu0 %1438, %v508
    %v1440 = vpop.permute.xlu0 %1439
    %1441 = vset.pattern.permute.xlu0 6
    %1442 = vperm.xlu0 %1441, %v509
    %v1443 = vpop.permute.xlu0 %1442
    %1444 = vset.pattern.permute.xlu0 6
    %1445 = vperm.xlu0 %1444, %v510
    %v1446 = vpop.permute.xlu0 %1445
    %1447 = vset.pattern.permute.xlu0 6
    %1448 = vperm.xlu0 %1447, %v511
    %v1449 = vpop.permute.xlu0 %1448
    %1450 = vset.pattern.permute.xlu0 6
    %1451 = vperm.xlu0 %1450, %v512
    %v1452 = vpop.permute.xlu0 %1451
    %1453 = vset.pattern.permute.xlu0 6
    %1454 = vperm.xlu0 %1453, %v513
    %v1455 = vpop.permute.xlu0 %1454
    %1456 = vset.pattern.permute.xlu0 6
    %1457 = vperm.xlu0 %1456, %v514
    %v1458 = vpop.permute.xlu0 %1457
    %1459 = vset.pattern.permute.xlu0 6
    %1460 = vperm.xlu0 %1459, %v515
    %v1461 = vpop.permute.xlu0 %1460
    %1462 = vset.pattern.permute.xlu0 6
    %1463 = vperm.xlu0 %1462, %v516
    %v1464 = vpop.permute.xlu0 %1463
    %1465 = vset.pattern.permute.xlu0 6
    %1466 = vperm.xlu0 %1465, %v517
    %v1467 = vpop.permute.xlu0 %1466
    %1468 = vset.pattern.permute.xlu0 6
    %1469 = vperm.xlu0 %1468, %v518
    %v1470 = vpop.permute.xlu0 %1469
    %1471 = vset.pattern.permute.xlu0 6
    %1472 = vperm.xlu0 %1471, %v519
    %v1473 = vpop.permute.xlu0 %1472
    %1474 = vset.pattern.permute.xlu0 6
    %1475 = vperm.xlu0 %1474, %v520
    %v1476 = vpop.permute.xlu0 %1475
    %1477 = vset.pattern.permute.xlu0 6
    %1478 = vperm.xlu0 %1477, %v521
    %v1479 = vpop.permute.xlu0 %1478
    %1480 = vset.pattern.permute.xlu0 6
    %1481 = vperm.xlu0 %1480, %v522
    %v1482 = vpop.permute.xlu0 %1481
    %1483 = vset.pattern.permute.xlu0 6
    %1484 = vperm.xlu0 %1483, %v523
    %v1485 = vpop.permute.xlu0 %1484
    %v1486 = vsel %vm490, %v1392, %v1326
    %v1487 = vsel %vm491, %v1392, %v1327
    %v1488 = vsel %vm490, %v1395, %v1328
    %v1489 = vsel %vm491, %v1395, %v1329
    %v1490 = vsel %vm490, %v1398, %v1330
    %v1491 = vsel %vm491, %v1398, %v1331
    %v1492 = vsel %vm490, %v1401, %v1332
    %v1493 = vsel %vm491, %v1401, %v1333
    %v1494 = vsel %vm490, %v1404, %v1334
    %v1495 = vsel %vm491, %v1404, %v1335
    %v1496 = vsel %vm490, %v1407, %v1336
    %v1497 = vsel %vm491, %v1407, %v1337
    %v1498 = vsel %vm490, %v1410, %v1338
    %v1499 = vsel %vm491, %v1410, %v1339
    %v1500 = vsel %vm490, %v1413, %v1340
    %v1501 = vsel %vm491, %v1413, %v1341
    %v1502 = vsel %vm490, %v1416, %v1342
    %v1503 = vsel %vm491, %v1416, %v1343
    %v1504 = vsel %vm490, %v1419, %v1344
    %v1505 = vsel %vm491, %v1419, %v1345
    %v1506 = vsel %vm490, %v1422, %v1346
    %v1507 = vsel %vm491, %v1422, %v1347
    %v1508 = vsel %vm490, %v1425, %v1348
    %v1509 = vsel %vm491, %v1425, %v1349
    %v1510 = vsel %vm490, %v1428, %v1350
    %v1511 = vsel %vm491, %v1428, %v1351
    %v1512 = vsel %vm490, %v1431, %v1352
    %v1513 = vsel %vm491, %v1431, %v1353
    %v1514 = vsel %vm490, %v1434, %v1354
    %v1515 = vsel %vm491, %v1434, %v1355
    %v1516 = vsel %vm490, %v1437, %v1356
    %v1517 = vsel %vm491, %v1437, %v1357
    %v1518 = vsel %vm490, %v1440, %v1358
    %v1519 = vsel %vm491, %v1440, %v1359
    %v1520 = vsel %vm490, %v1443, %v1360
    %v1521 = vsel %vm491, %v1443, %v1361
    %v1522 = vsel %vm490, %v1446, %v1362
    %v1523 = vsel %vm491, %v1446, %v1363
    %v1524 = vsel %vm490, %v1449, %v1364
    %v1525 = vsel %vm491, %v1449, %v1365
    %v1526 = vsel %vm490, %v1452, %v1366
    %v1527 = vsel %vm491, %v1452, %v1367
    %v1528 = vsel %vm490, %v1455, %v1368
    %v1529 = vsel %vm491, %v1455, %v1369
    %v1530 = vsel %vm490, %v1458, %v1370
    %v1531 = vsel %vm491, %v1458, %v1371
    %v1532 = vsel %vm490, %v1461, %v1372
    %v1533 = vsel %vm491, %v1461, %v1373
    %v1534 = vsel %vm490, %v1464, %v1374
    %v1535 = vsel %vm491, %v1464, %v1375
    %v1536 = vsel %vm490, %v1467, %v1376
    %v1537 = vsel %vm491, %v1467, %v1377
    %v1538 = vsel %vm490, %v1470, %v1378
    %v1539 = vsel %vm491, %v1470, %v1379
    %v1540 = vsel %vm490, %v1473, %v1380
    %v1541 = vsel %vm491, %v1473, %v1381
    %v1542 = vsel %vm490, %v1476, %v1382
    %v1543 = vsel %vm491, %v1476, %v1383
    %v1544 = vsel %vm490, %v1479, %v1384
    %v1545 = vsel %vm491, %v1479, %v1385
    %v1546 = vsel %vm490, %v1482, %v1386
    %v1547 = vsel %vm491, %v1482, %v1387
    %v1548 = vsel %vm490, %v1485, %v1388
    %v1549 = vsel %vm491, %v1485, %v1389
    %1550 = vset.pattern.permute.xlu0 7
    %1551 = vperm.xlu0 %1550, %v686
    %v1552 = vpop.permute.xlu0 %1551
    %1553 = vset.pattern.permute.xlu0 7
    %1554 = vperm.xlu0 %1553, %v687
    %v1555 = vpop.permute.xlu0 %1554
    %1556 = vset.pattern.permute.xlu0 7
    %1557 = vperm.xlu0 %1556, %v688
    %v1558 = vpop.permute.xlu0 %1557
    %1559 = vset.pattern.permute.xlu0 7
    %1560 = vperm.xlu0 %1559, %v689
    %v1561 = vpop.permute.xlu0 %1560
    %1562 = vset.pattern.permute.xlu0 7
    %1563 = vperm.xlu0 %1562, %v690
    %v1564 = vpop.permute.xlu0 %1563
    %1565 = vset.pattern.permute.xlu0 7
    %1566 = vperm.xlu0 %1565, %v691
    %v1567 = vpop.permute.xlu0 %1566
    %1568 = vset.pattern.permute.xlu0 7
    %1569 = vperm.xlu0 %1568, %v692
    %v1570 = vpop.permute.xlu0 %1569
    %1571 = vset.pattern.permute.xlu0 7
    %1572 = vperm.xlu0 %1571, %v693
    %v1573 = vpop.permute.xlu0 %1572
    %1574 = vset.pattern.permute.xlu0 7
    %1575 = vperm.xlu0 %1574, %v694
    %v1576 = vpop.permute.xlu0 %1575
    %1577 = vset.pattern.permute.xlu0 7
    %1578 = vperm.xlu0 %1577, %v695
    %v1579 = vpop.permute.xlu0 %1578
    %1580 = vset.pattern.permute.xlu0 7
    %1581 = vperm.xlu0 %1580, %v696
    %v1582 = vpop.permute.xlu0 %1581
    %1583 = vset.pattern.permute.xlu0 7
    %1584 = vperm.xlu0 %1583, %v697
    %v1585 = vpop.permute.xlu0 %1584
    %1586 = vset.pattern.permute.xlu0 7
    %1587 = vperm.xlu0 %1586, %v698
    %v1588 = vpop.permute.xlu0 %1587
    %1589 = vset.pattern.permute.xlu0 7
    %1590 = vperm.xlu0 %1589, %v699
    %v1591 = vpop.permute.xlu0 %1590
    %1592 = vset.pattern.permute.xlu0 7
    %1593 = vperm.xlu0 %1592, %v700
    %v1594 = vpop.permute.xlu0 %1593
    %1595 = vset.pattern.permute.xlu0 7
    %1596 = vperm.xlu0 %1595, %v701
    %v1597 = vpop.permute.xlu0 %1596
    %1598 = vset.pattern.permute.xlu0 7
    %1599 = vperm.xlu0 %1598, %v702
    %v1600 = vpop.permute.xlu0 %1599
    %1601 = vset.pattern.permute.xlu0 7
    %1602 = vperm.xlu0 %1601, %v703
    %v1603 = vpop.permute.xlu0 %1602
    %1604 = vset.pattern.permute.xlu0 7
    %1605 = vperm.xlu0 %1604, %v704
    %v1606 = vpop.permute.xlu0 %1605
    %1607 = vset.pattern.permute.xlu0 7
    %1608 = vperm.xlu0 %1607, %v705
    %v1609 = vpop.permute.xlu0 %1608
    %1610 = vset.pattern.permute.xlu0 7
    %1611 = vperm.xlu0 %1610, %v706
    %v1612 = vpop.permute.xlu0 %1611
    %1613 = vset.pattern.permute.xlu0 7
    %1614 = vperm.xlu0 %1613, %v707
    %v1615 = vpop.permute.xlu0 %1614
    %1616 = vset.pattern.permute.xlu0 7
    %1617 = vperm.xlu0 %1616, %v708
    %v1618 = vpop.permute.xlu0 %1617
    %1619 = vset.pattern.permute.xlu0 7
    %1620 = vperm.xlu0 %1619, %v709
    %v1621 = vpop.permute.xlu0 %1620
    %1622 = vset.pattern.permute.xlu0 7
    %1623 = vperm.xlu0 %1622, %v710
    %v1624 = vpop.permute.xlu0 %1623
    %1625 = vset.pattern.permute.xlu0 7
    %1626 = vperm.xlu0 %1625, %v711
    %v1627 = vpop.permute.xlu0 %1626
    %1628 = vset.pattern.permute.xlu0 7
    %1629 = vperm.xlu0 %1628, %v712
    %v1630 = vpop.permute.xlu0 %1629
    %1631 = vset.pattern.permute.xlu0 7
    %1632 = vperm.xlu0 %1631, %v713
    %v1633 = vpop.permute.xlu0 %1632
    %1634 = vset.pattern.permute.xlu0 7
    %1635 = vperm.xlu0 %1634, %v714
    %v1636 = vpop.permute.xlu0 %1635
    %1637 = vset.pattern.permute.xlu0 7
    %1638 = vperm.xlu0 %1637, %v715
    %v1639 = vpop.permute.xlu0 %1638
    %1640 = vset.pattern.permute.xlu0 7
    %1641 = vperm.xlu0 %1640, %v716
    %v1642 = vpop.permute.xlu0 %1641
    %1643 = vset.pattern.permute.xlu0 7
    %1644 = vperm.xlu0 %1643, %v717
    %v1645 = vpop.permute.xlu0 %1644
    %v1646 = vsel %vm684, %v1552, %v1486
    %v1647 = vsel %vm685, %v1552, %v1487
    %v1648 = vsel %vm684, %v1555, %v1488
    %v1649 = vsel %vm685, %v1555, %v1489
    %v1650 = vsel %vm684, %v1558, %v1490
    %v1651 = vsel %vm685, %v1558, %v1491
    %v1652 = vsel %vm684, %v1561, %v1492
    %v1653 = vsel %vm685, %v1561, %v1493
    %v1654 = vsel %vm684, %v1564, %v1494
    %v1655 = vsel %vm685, %v1564, %v1495
    %v1656 = vsel %vm684, %v1567, %v1496
    %v1657 = vsel %vm685, %v1567, %v1497
    %v1658 = vsel %vm684, %v1570, %v1498
    %v1659 = vsel %vm685, %v1570, %v1499
    %v1660 = vsel %vm684, %v1573, %v1500
    %v1661 = vsel %vm685, %v1573, %v1501
    %v1662 = vsel %vm684, %v1576, %v1502
    %v1663 = vsel %vm685, %v1576, %v1503
    %v1664 = vsel %vm684, %v1579, %v1504
    %v1665 = vsel %vm685, %v1579, %v1505
    %v1666 = vsel %vm684, %v1582, %v1506
    %v1667 = vsel %vm685, %v1582, %v1507
    %v1668 = vsel %vm684, %v1585, %v1508
    %v1669 = vsel %vm685, %v1585, %v1509
    %v1670 = vsel %vm684, %v1588, %v1510
    %v1671 = vsel %vm685, %v1588, %v1511
    %v1672 = vsel %vm684, %v1591, %v1512
    %v1673 = vsel %vm685, %v1591, %v1513
    %v1674 = vsel %vm684, %v1594, %v1514
    %v1675 = vsel %vm685, %v1594, %v1515
    %v1676 = vsel %vm684, %v1597, %v1516
    %v1677 = vsel %vm685, %v1597, %v1517
    %v1678 = vsel %vm684, %v1600, %v1518
    %v1679 = vsel %vm685, %v1600, %v1519
    %v1680 = vsel %vm684, %v1603, %v1520
    %v1681 = vsel %vm685, %v1603, %v1521
    %v1682 = vsel %vm684, %v1606, %v1522
    %v1683 = vsel %vm685, %v1606, %v1523
    %v1684 = vsel %vm684, %v1609, %v1524
    %v1685 = vsel %vm685, %v1609, %v1525
    %v1686 = vsel %vm684, %v1612, %v1526
    %v1687 = vsel %vm685, %v1612, %v1527
    %v1688 = vsel %vm684, %v1615, %v1528
    %v1689 = vsel %vm685, %v1615, %v1529
    %v1690 = vsel %vm684, %v1618, %v1530
    %v1691 = vsel %vm685, %v1618, %v1531
    %v1692 = vsel %vm684, %v1621, %v1532
    %v1693 = vsel %vm685, %v1621, %v1533
    %v1694 = vsel %vm684, %v1624, %v1534
    %v1695 = vsel %vm685, %v1624, %v1535
    %v1696 = vsel %vm684, %v1627, %v1536
    %v1697 = vsel %vm685, %v1627, %v1537
    %v1698 = vsel %vm684, %v1630, %v1538
    %v1699 = vsel %vm685, %v1630, %v1539
    %v1700 = vsel %vm684, %v1633, %v1540
    %v1701 = vsel %vm685, %v1633, %v1541
    %v1702 = vsel %vm684, %v1636, %v1542
    %v1703 = vsel %vm685, %v1636, %v1543
    %v1704 = vsel %vm684, %v1639, %v1544
    %v1705 = vsel %vm685, %v1639, %v1545
    %v1706 = vsel %vm684, %v1642, %v1546
    %v1707 = vsel %vm685, %v1642, %v1547
    %v1708 = vsel %vm684, %v1645, %v1548
    %v1709 = vsel %vm685, %v1645, %v1549
    %vm1710 = vcmp.eq.s32.totalorder %v198, %v1646
    %vm1711 = vcmp.eq.s32.totalorder %v199, %v1647
    %vm1712 = vcmp.eq.s32.totalorder %v198, %v1648
    %vm1713 = vcmp.eq.s32.totalorder %v199, %v1649
    %vm1714 = vcmp.eq.s32.totalorder %v198, %v1650
    %vm1715 = vcmp.eq.s32.totalorder %v199, %v1651
    %vm1716 = vcmp.eq.s32.totalorder %v198, %v1652
    %vm1717 = vcmp.eq.s32.totalorder %v199, %v1653
    %vm1718 = vcmp.eq.s32.totalorder %v198, %v1654
    %vm1719 = vcmp.eq.s32.totalorder %v199, %v1655
    %vm1720 = vcmp.eq.s32.totalorder %v198, %v1656
    %vm1721 = vcmp.eq.s32.totalorder %v199, %v1657
    %vm1722 = vcmp.eq.s32.totalorder %v198, %v1658
    %vm1723 = vcmp.eq.s32.totalorder %v199, %v1659
    %vm1724 = vcmp.eq.s32.totalorder %v198, %v1660
    %vm1725 = vcmp.eq.s32.totalorder %v199, %v1661
    %vm1726 = vcmp.eq.s32.totalorder %v198, %v1662
    %vm1727 = vcmp.eq.s32.totalorder %v199, %v1663
    %vm1728 = vcmp.eq.s32.totalorder %v198, %v1664
    %vm1729 = vcmp.eq.s32.totalorder %v199, %v1665
    %vm1730 = vcmp.eq.s32.totalorder %v198, %v1666
    %vm1731 = vcmp.eq.s32.totalorder %v199, %v1667
    %vm1732 = vcmp.eq.s32.totalorder %v198, %v1668
    %vm1733 = vcmp.eq.s32.totalorder %v199, %v1669
    %vm1734 = vcmp.eq.s32.totalorder %v198, %v1670
    %vm1735 = vcmp.eq.s32.totalorder %v199, %v1671
    %vm1736 = vcmp.eq.s32.totalorder %v198, %v1672
    %vm1737 = vcmp.eq.s32.totalorder %v199, %v1673
    %vm1738 = vcmp.eq.s32.totalorder %v198, %v1674
    %vm1739 = vcmp.eq.s32.totalorder %v199, %v1675
    %vm1740 = vcmp.eq.s32.totalorder %v198, %v1676
    %vm1741 = vcmp.eq.s32.totalorder %v199, %v1677
    %vm1742 = vcmp.eq.s32.totalorder %v198, %v1678
    %vm1743 = vcmp.eq.s32.totalorder %v199, %v1679
    %vm1744 = vcmp.eq.s32.totalorder %v198, %v1680
    %vm1745 = vcmp.eq.s32.totalorder %v199, %v1681
    %vm1746 = vcmp.eq.s32.totalorder %v198, %v1682
    %vm1747 = vcmp.eq.s32.totalorder %v199, %v1683
    %vm1748 = vcmp.eq.s32.totalorder %v198, %v1684
    %vm1749 = vcmp.eq.s32.totalorder %v199, %v1685
    %vm1750 = vcmp.eq.s32.totalorder %v198, %v1686
    %vm1751 = vcmp.eq.s32.totalorder %v199, %v1687
    %vm1752 = vcmp.eq.s32.totalorder %v198, %v1688
    %vm1753 = vcmp.eq.s32.totalorder %v199, %v1689
    %vm1754 = vcmp.eq.s32.totalorder %v198, %v1690
    %vm1755 = vcmp.eq.s32.totalorder %v199, %v1691
    %vm1756 = vcmp.eq.s32.totalorder %v198, %v1692
    %vm1757 = vcmp.eq.s32.totalorder %v199, %v1693
    %vm1758 = vcmp.eq.s32.totalorder %v198, %v1694
    %vm1759 = vcmp.eq.s32.totalorder %v199, %v1695
    %vm1760 = vcmp.eq.s32.totalorder %v198, %v1696
    %vm1761 = vcmp.eq.s32.totalorder %v199, %v1697
    %vm1762 = vcmp.eq.s32.totalorder %v198, %v1698
    %vm1763 = vcmp.eq.s32.totalorder %v199, %v1699
    %vm1764 = vcmp.eq.s32.totalorder %v198, %v1700
    %vm1765 = vcmp.eq.s32.totalorder %v199, %v1701
    %vm1766 = vcmp.eq.s32.totalorder %v198, %v1702
    %vm1767 = vcmp.eq.s32.totalorder %v199, %v1703
    %vm1768 = vcmp.eq.s32.totalorder %v198, %v1704
    %vm1769 = vcmp.eq.s32.totalorder %v199, %v1705
    %vm1770 = vcmp.eq.s32.totalorder %v198, %v1706
    %vm1771 = vcmp.eq.s32.totalorder %v199, %v1707
    %vm1772 = vcmp.eq.s32.totalorder %v198, %v1708
    %vm1773 = vcmp.eq.s32.totalorder %v199, %v1709
    %v1774 = vsel %vm1710, 1, 0
    %v1775 = vsel %vm1711, 1, 0
    %v1776 = vsel %vm1712, 1, 0
    %v1777 = vsel %vm1713, 1, 0
    %v1778 = vsel %vm1714, 1, 0
    %v1779 = vsel %vm1715, 1, 0
    %v1780 = vsel %vm1716, 1, 0
    %v1781 = vsel %vm1717, 1, 0
    %v1782 = vsel %vm1718, 1, 0
    %v1783 = vsel %vm1719, 1, 0
    %v1784 = vsel %vm1720, 1, 0
    %v1785 = vsel %vm1721, 1, 0
    %v1786 = vsel %vm1722, 1, 0
    %v1787 = vsel %vm1723, 1, 0
    %v1788 = vsel %vm1724, 1, 0
    %v1789 = vsel %vm1725, 1, 0
    %v1790 = vsel %vm1726, 1, 0
    %v1791 = vsel %vm1727, 1, 0
    %v1792 = vsel %vm1728, 1, 0
    %v1793 = vsel %vm1729, 1, 0
    %v1794 = vsel %vm1730, 1, 0
    %v1795 = vsel %vm1731, 1, 0
    %v1796 = vsel %vm1732, 1, 0
    %v1797 = vsel %vm1733, 1, 0
    %v1798 = vsel %vm1734, 1, 0
    %v1799 = vsel %vm1735, 1, 0
    %v1800 = vsel %vm1736, 1, 0
    %v1801 = vsel %vm1737, 1, 0
    %v1802 = vsel %vm1738, 1, 0
    %v1803 = vsel %vm1739, 1, 0
    %v1804 = vsel %vm1740, 1, 0
    %v1805 = vsel %vm1741, 1, 0
    %v1806 = vsel %vm1742, 1, 0
    %v1807 = vsel %vm1743, 1, 0
    %v1808 = vsel %vm1744, 1, 0
    %v1809 = vsel %vm1745, 1, 0
    %v1810 = vsel %vm1746, 1, 0
    %v1811 = vsel %vm1747, 1, 0
    %v1812 = vsel %vm1748, 1, 0
    %v1813 = vsel %vm1749, 1, 0
    %v1814 = vsel %vm1750, 1, 0
    %v1815 = vsel %vm1751, 1, 0
    %v1816 = vsel %vm1752, 1, 0
    %v1817 = vsel %vm1753, 1, 0
    %v1818 = vsel %vm1754, 1, 0
    %v1819 = vsel %vm1755, 1, 0
    %v1820 = vsel %vm1756, 1, 0
    %v1821 = vsel %vm1757, 1, 0
    %v1822 = vsel %vm1758, 1, 0
    %v1823 = vsel %vm1759, 1, 0
    %v1824 = vsel %vm1760, 1, 0
    %v1825 = vsel %vm1761, 1, 0
    %v1826 = vsel %vm1762, 1, 0
    %v1827 = vsel %vm1763, 1, 0
    %v1828 = vsel %vm1764, 1, 0
    %v1829 = vsel %vm1765, 1, 0
    %v1830 = vsel %vm1766, 1, 0
    %v1831 = vsel %vm1767, 1, 0
    %v1832 = vsel %vm1768, 1, 0
    %v1833 = vsel %vm1769, 1, 0
    %v1834 = vsel %vm1770, 1, 0
    %v1835 = vsel %vm1771, 1, 0
    %v1836 = vsel %vm1772, 1, 0
    %v1837 = vsel %vm1773, 1, 0
    %v1838 = vcvt.s32.f32 %v1774
    %v1839 = vcvt.s32.f32 %v1775
    %v1840 = vcvt.s32.f32 %v1776
    %v1841 = vcvt.s32.f32 %v1777
    %v1842 = vcvt.s32.f32 %v1778
    %v1843 = vcvt.s32.f32 %v1779
    %v1844 = vcvt.s32.f32 %v1780
    %v1845 = vcvt.s32.f32 %v1781
    %v1846 = vcvt.s32.f32 %v1782
    %v1847 = vcvt.s32.f32 %v1783
    %v1848 = vcvt.s32.f32 %v1784
    %v1849 = vcvt.s32.f32 %v1785
    %v1850 = vcvt.s32.f32 %v1786
    %v1851 = vcvt.s32.f32 %v1787
    %v1852 = vcvt.s32.f32 %v1788
    %v1853 = vcvt.s32.f32 %v1789
    %v1854 = vcvt.s32.f32 %v1790
    %v1855 = vcvt.s32.f32 %v1791
    %v1856 = vcvt.s32.f32 %v1792
    %v1857 = vcvt.s32.f32 %v1793
    %v1858 = vcvt.s32.f32 %v1794
    %v1859 = vcvt.s32.f32 %v1795
    %v1860 = vcvt.s32.f32 %v1796
    %v1861 = vcvt.s32.f32 %v1797
    %v1862 = vcvt.s32.f32 %v1798
    %v1863 = vcvt.s32.f32 %v1799
    %v1864 = vcvt.s32.f32 %v1800
    %v1865 = vcvt.s32.f32 %v1801
    %v1866 = vcvt.s32.f32 %v1802
    %v1867 = vcvt.s32.f32 %v1803
    %v1868 = vcvt.s32.f32 %v1804
    %v1869 = vcvt.s32.f32 %v1805
    %v1870 = vcvt.s32.f32 %v1806
    %v1871 = vcvt.s32.f32 %v1807
    %v1872 = vcvt.s32.f32 %v1808
    %v1873 = vcvt.s32.f32 %v1809
    %v1874 = vcvt.s32.f32 %v1810
    %v1875 = vcvt.s32.f32 %v1811
    %v1876 = vcvt.s32.f32 %v1812
    %v1877 = vcvt.s32.f32 %v1813
    %v1878 = vcvt.s32.f32 %v1814
    %v1879 = vcvt.s32.f32 %v1815
    %v1880 = vcvt.s32.f32 %v1816
    %v1881 = vcvt.s32.f32 %v1817
    %v1882 = vcvt.s32.f32 %v1818
    %v1883 = vcvt.s32.f32 %v1819
    %v1884 = vcvt.s32.f32 %v1820
    %v1885 = vcvt.s32.f32 %v1821
    %v1886 = vcvt.s32.f32 %v1822
    %v1887 = vcvt.s32.f32 %v1823
    %v1888 = vcvt.s32.f32 %v1824
    %v1889 = vcvt.s32.f32 %v1825
    %v1890 = vcvt.s32.f32 %v1826
    %v1891 = vcvt.s32.f32 %v1827
    %v1892 = vcvt.s32.f32 %v1828
    %v1893 = vcvt.s32.f32 %v1829
    %v1894 = vcvt.s32.f32 %v1830
    %v1895 = vcvt.s32.f32 %v1831
    %v1896 = vcvt.s32.f32 %v1832
    %v1897 = vcvt.s32.f32 %v1833
    %v1898 = vcvt.s32.f32 %v1834
    %v1899 = vcvt.s32.f32 %v1835
    %v1900 = vcvt.s32.f32 %v1836
    %v1901 = vcvt.s32.f32 %v1837
    %v1902 = vpack.c.bf16 %v1840, %v1838
    %v1903 = vpack.c.bf16 %v1841, %v1839
    %v1904 = vpack.c.bf16 %v1844, %v1842
    %v1905 = vpack.c.bf16 %v1845, %v1843
    %v1906 = vpack.c.bf16 %v1848, %v1846
    %v1907 = vpack.c.bf16 %v1849, %v1847
    %v1908 = vpack.c.bf16 %v1852, %v1850
    %v1909 = vpack.c.bf16 %v1853, %v1851
    %v1910 = vpack.c.bf16 %v1856, %v1854
    %v1911 = vpack.c.bf16 %v1857, %v1855
    %v1912 = vpack.c.bf16 %v1860, %v1858
    %v1913 = vpack.c.bf16 %v1861, %v1859
    %v1914 = vpack.c.bf16 %v1864, %v1862
    %v1915 = vpack.c.bf16 %v1865, %v1863
    %v1916 = vpack.c.bf16 %v1868, %v1866
    %v1917 = vpack.c.bf16 %v1869, %v1867
    %v1918 = vpack.c.bf16 %v1872, %v1870
    %v1919 = vpack.c.bf16 %v1873, %v1871
    %v1920 = vpack.c.bf16 %v1876, %v1874
    %v1921 = vpack.c.bf16 %v1877, %v1875
    %v1922 = vpack.c.bf16 %v1880, %v1878
    %v1923 = vpack.c.bf16 %v1881, %v1879
    %v1924 = vpack.c.bf16 %v1884, %v1882
    %v1925 = vpack.c.bf16 %v1885, %v1883
    %v1926 = vpack.c.bf16 %v1888, %v1886
    %v1927 = vpack.c.bf16 %v1889, %v1887
    %v1928 = vpack.c.bf16 %v1892, %v1890
    %v1929 = vpack.c.bf16 %v1893, %v1891
    %v1930 = vpack.c.bf16 %v1896, %v1894
    %v1931 = vpack.c.bf16 %v1897, %v1895
    %v1932 = vpack.c.bf16 %v1900, %v1898
    %v1933 = vpack.c.bf16 %v1901, %v1899
    %v1934 = vld [vmem:[#allocation2 + $0x100] sm:$0xff]
    %v1935 = vld [vmem:[#allocation2 + $0x108] sm:$0xff]
    %v1936 = vld [vmem:[#allocation2 + $0x110] sm:$0xff]
    %v1937 = vld [vmem:[#allocation2 + $0x118] sm:$0xff]
    %v1938 = vld [vmem:[#allocation2 + $0x120] sm:$0xff]
    %v1939 = vld [vmem:[#allocation2 + $0x128] sm:$0xff]
    %v1940 = vld [vmem:[#allocation2 + $0x130] sm:$0xff]
    %v1941 = vld [vmem:[#allocation2 + $0x138] sm:$0xff]
    %v1942 = vld [vmem:[#allocation2 + $0x140] sm:$0xff]
    %v1943 = vld [vmem:[#allocation2 + $0x148] sm:$0xff]
    %v1944 = vld [vmem:[#allocation2 + $0x150] sm:$0xff]
    %v1945 = vld [vmem:[#allocation2 + $0x158] sm:$0xff]
    %v1946 = vld [vmem:[#allocation2 + $0x160] sm:$0xff]
    %v1947 = vld [vmem:[#allocation2 + $0x168] sm:$0xff]
    %v1948 = vld [vmem:[#allocation2 + $0x170] sm:$0xff]
    %v1949 = vld [vmem:[#allocation2 + $0x178] sm:$0xff]
    %v1950 = vld [vmem:[#allocation2 + $0x180] sm:$0xff]
    %v1951 = vld [vmem:[#allocation2 + $0x188] sm:$0xff]
    %v1952 = vld [vmem:[#allocation2 + $0x190] sm:$0xff]
    %v1953 = vld [vmem:[#allocation2 + $0x198] sm:$0xff]
    %v1954 = vld [vmem:[#allocation2 + $0x1a0] sm:$0xff]
    %v1955 = vld [vmem:[#allocation2 + $0x1a8] sm:$0xff]
    %v1956 = vld [vmem:[#allocation2 + $0x1b0] sm:$0xff]
    %v1957 = vld [vmem:[#allocation2 + $0x1b8] sm:$0xff]
    %v1958 = vld [vmem:[#allocation2 + $0x1c0] sm:$0xff]
    %v1959 = vld [vmem:[#allocation2 + $0x1c8] sm:$0xff]
    %v1960 = vld [vmem:[#allocation2 + $0x1d0] sm:$0xff]
    %v1961 = vld [vmem:[#allocation2 + $0x1d8] sm:$0xff]
    %v1962 = vld [vmem:[#allocation2 + $0x1e0] sm:$0xff]
    %v1963 = vld [vmem:[#allocation2 + $0x1e8] sm:$0xff]
    %v1964 = vld [vmem:[#allocation2 + $0x1f0] sm:$0xff]
    %v1965 = vld [vmem:[#allocation2 + $0x1f8] sm:$0xff]
    %v1998 = vunpack.c.l.b16 %v1934
    %v1999 = vunpack.c.h.b16 %v1934
    %v2000 = vunpack.c.l.b16 %v1935
    %v2001 = vunpack.c.h.b16 %v1935
    %v2002 = vunpack.c.l.b16 %v1936
    %v2003 = vunpack.c.h.b16 %v1936
    %v2004 = vunpack.c.l.b16 %v1937
    %v2005 = vunpack.c.h.b16 %v1937
    %v2006 = vunpack.c.l.b16 %v1938
    %v2007 = vunpack.c.h.b16 %v1938
    %v2008 = vunpack.c.l.b16 %v1939
    %v2009 = vunpack.c.h.b16 %v1939
    %v2010 = vunpack.c.l.b16 %v1940
    %v2011 = vunpack.c.h.b16 %v1940
    %v2012 = vunpack.c.l.b16 %v1941
    %v2013 = vunpack.c.h.b16 %v1941
    %v2014 = vunpack.c.l.b16 %v1942
    %v2015 = vunpack.c.h.b16 %v1942
    %v2016 = vunpack.c.l.b16 %v1943
    %v2017 = vunpack.c.h.b16 %v1943
    %v2018 = vunpack.c.l.b16 %v1944
    %v2019 = vunpack.c.h.b16 %v1944
    %v2020 = vunpack.c.l.b16 %v1945
    %v2021 = vunpack.c.h.b16 %v1945
    %v2022 = vunpack.c.l.b16 %v1946
    %v2023 = vunpack.c.h.b16 %v1946
    %v2024 = vunpack.c.l.b16 %v1947
    %v2025 = vunpack.c.h.b16 %v1947
    %v2026 = vunpack.c.l.b16 %v1948
    %v2027 = vunpack.c.h.b16 %v1948
    %v2028 = vunpack.c.l.b16 %v1949
    %v2029 = vunpack.c.h.b16 %v1949
    %v2030 = vunpack.c.l.b16 %v1950
    %v2031 = vunpack.c.h.b16 %v1950
    %v2032 = vunpack.c.l.b16 %v1951
    %v2033 = vunpack.c.h.b16 %v1951
    %v2034 = vunpack.c.l.b16 %v1952
    %v2035 = vunpack.c.h.b16 %v1952
    %v2036 = vunpack.c.l.b16 %v1953
    %v2037 = vunpack.c.h.b16 %v1953
    %v2038 = vunpack.c.l.b16 %v1954
    %v2039 = vunpack.c.h.b16 %v1954
    %v2040 = vunpack.c.l.b16 %v1955
    %v2041 = vunpack.c.h.b16 %v1955
    %v2042 = vunpack.c.l.b16 %v1956
    %v2043 = vunpack.c.h.b16 %v1956
    %v2044 = vunpack.c.l.b16 %v1957
    %v2045 = vunpack.c.h.b16 %v1957
    %v2046 = vunpack.c.l.b16 %v1958
    %v2047 = vunpack.c.h.b16 %v1958
    %v2048 = vunpack.c.l.b16 %v1959
    %v2049 = vunpack.c.h.b16 %v1959
    %v2050 = vunpack.c.l.b16 %v1960
    %v2051 = vunpack.c.h.b16 %v1960
    %v2052 = vunpack.c.l.b16 %v1961
    %v2053 = vunpack.c.h.b16 %v1961
    %v2054 = vunpack.c.l.b16 %v1962
    %v2055 = vunpack.c.h.b16 %v1962
    %v2056 = vunpack.c.l.b16 %v1963
    %v2057 = vunpack.c.h.b16 %v1963
    %v2058 = vunpack.c.l.b16 %v1964
    %v2059 = vunpack.c.h.b16 %v1964
    %v2060 = vunpack.c.l.b16 %v1965
    %v2061 = vunpack.c.h.b16 %v1965
    %v2062 = vpack.c.b16 %v2000, %v1998
    %v2063 = vpack.c.b16 %v2001, %v1999
    %v2064 = vpack.c.b16 %v2004, %v2002
    %v2065 = vpack.c.b16 %v2005, %v2003
    %v2066 = vpack.c.b16 %v2008, %v2006
    %v2067 = vpack.c.b16 %v2009, %v2007
    %v2068 = vpack.c.b16 %v2012, %v2010
    %v2069 = vpack.c.b16 %v2013, %v2011
    %v2070 = vpack.c.b16 %v2016, %v2014
    %v2071 = vpack.c.b16 %v2017, %v2015
    %v2072 = vpack.c.b16 %v2020, %v2018
    %v2073 = vpack.c.b16 %v2021, %v2019
    %v2074 = vpack.c.b16 %v2024, %v2022
    %v2075 = vpack.c.b16 %v2025, %v2023
    %v2076 = vpack.c.b16 %v2028, %v2026
    %v2077 = vpack.c.b16 %v2029, %v2027
    %v2078 = vpack.c.b16 %v2032, %v2030
    %v2079 = vpack.c.b16 %v2033, %v2031
    %v2080 = vpack.c.b16 %v2036, %v2034
    %v2081 = vpack.c.b16 %v2037, %v2035
    %v2082 = vpack.c.b16 %v2040, %v2038
    %v2083 = vpack.c.b16 %v2041, %v2039
    %v2084 = vpack.c.b16 %v2044, %v2042
    %v2085 = vpack.c.b16 %v2045, %v2043
    %v2086 = vpack.c.b16 %v2048, %v2046
    %v2087 = vpack.c.b16 %v2049, %v2047
    %v2088 = vpack.c.b16 %v2052, %v2050
    %v2089 = vpack.c.b16 %v2053, %v2051
    %v2090 = vpack.c.b16 %v2056, %v2054
    %v2091 = vpack.c.b16 %v2057, %v2055
    %v2092 = vpack.c.b16 %v2060, %v2058
    %v2093 = vpack.c.b16 %v2061, %v2059
    %2126 = vmatpush.bf16.msra.mxu0 %v2076
    %2127 = vmatpush.bf16.msra.mxu0 %v2074
    %2128 = vmatpush.bf16.msra.mxu0 %v2072
    %2129 = vmatpush.bf16.msra.mxu0 %v2070
    %2130 = vmatpush.bf16.msra.mxu0 %v2068
    %2131 = vmatpush.bf16.msra.mxu0 %v2066
    %2132 = vmatpush.bf16.msra.mxu0 %v2064
    %2133 = vmatpush.bf16.msra.mxu0 %v2062
    %2134 = vmatmul.bf16.gmra.mxu0 %v1902
    %v2135 = vpop.f32.mrf.mxu0
    %v2136 = vadd.f32 0.0, %v2135
    %v2137 = vpop.f32.mrf.mxu0
    %v2138 = vadd.f32 0.0, %v2137
    %2139 = vmatmul.bf16.gmra.mxu0 %v1904
    %v2140 = vpop.f32.mrf.mxu0
    %v2141 = vadd.f32 0.0, %v2140
    %v2142 = vpop.f32.mrf.mxu0
    %v2143 = vadd.f32 0.0, %v2142
    %2144 = vmatmul.bf16.gmra.mxu0 %v1906
    %v2145 = vpop.f32.mrf.mxu0
    %v2146 = vadd.f32 0.0, %v2145
    %v2147 = vpop.f32.mrf.mxu0
    %v2148 = vadd.f32 0.0, %v2147
    %2149 = vmatmul.bf16.gmra.mxu0 %v1908
    %v2150 = vpop.f32.mrf.mxu0
    %v2151 = vadd.f32 0.0, %v2150
    %v2152 = vpop.f32.mrf.mxu0
    %v2153 = vadd.f32 0.0, %v2152
    %2154 = vmatmul.bf16.gmra.mxu0 %v1910
    %v2155 = vpop.f32.mrf.mxu0
    %v2156 = vadd.f32 0.0, %v2155
    %v2157 = vpop.f32.mrf.mxu0
    %v2158 = vadd.f32 0.0, %v2157
    %2159 = vmatmul.bf16.gmra.mxu0 %v1912
    %v2160 = vpop.f32.mrf.mxu0
    %v2161 = vadd.f32 0.0, %v2160
    %v2162 = vpop.f32.mrf.mxu0
    %v2163 = vadd.f32 0.0, %v2162
    %2164 = vmatmul.bf16.gmra.mxu0 %v1914
    %v2165 = vpop.f32.mrf.mxu0
    %v2166 = vadd.f32 0.0, %v2165
    %v2167 = vpop.f32.mrf.mxu0
    %v2168 = vadd.f32 0.0, %v2167
    %2169 = vmatmul.bf16.gmra.mxu0 %v1916
    %v2170 = vpop.f32.mrf.mxu0
    %v2171 = vadd.f32 0.0, %v2170
    %v2172 = vpop.f32.mrf.mxu0
    %v2173 = vadd.f32 0.0, %v2172
    %2174 = vmatmul.bf16.gmra.mxu0 %v1918
    %v2175 = vpop.f32.mrf.mxu0
    %v2176 = vadd.f32 0.0, %v2175
    %v2177 = vpop.f32.mrf.mxu0
    %v2178 = vadd.f32 0.0, %v2177
    %2179 = vmatmul.bf16.gmra.mxu0 %v1920
    %v2180 = vpop.f32.mrf.mxu0
    %v2181 = vadd.f32 0.0, %v2180
    %v2182 = vpop.f32.mrf.mxu0
    %v2183 = vadd.f32 0.0, %v2182
    %2184 = vmatmul.bf16.gmra.mxu0 %v1922
    %v2185 = vpop.f32.mrf.mxu0
    %v2186 = vadd.f32 0.0, %v2185
    %v2187 = vpop.f32.mrf.mxu0
    %v2188 = vadd.f32 0.0, %v2187
    %2189 = vmatmul.bf16.gmra.mxu0 %v1924
    %v2190 = vpop.f32.mrf.mxu0
    %v2191 = vadd.f32 0.0, %v2190
    %v2192 = vpop.f32.mrf.mxu0
    %v2193 = vadd.f32 0.0, %v2192
    %2194 = vmatmul.bf16.gmra.mxu0 %v1926
    %v2195 = vpop.f32.mrf.mxu0
    %v2196 = vadd.f32 0.0, %v2195
    %v2197 = vpop.f32.mrf.mxu0
    %v2198 = vadd.f32 0.0, %v2197
    %2199 = vmatmul.bf16.gmra.mxu0 %v1928
    %v2200 = vpop.f32.mrf.mxu0
    %v2201 = vadd.f32 0.0, %v2200
    %v2202 = vpop.f32.mrf.mxu0
    %v2203 = vadd.f32 0.0, %v2202
    %2204 = vmatmul.bf16.gmra.mxu0 %v1930
    %v2205 = vpop.f32.mrf.mxu0
    %v2206 = vadd.f32 0.0, %v2205
    %v2207 = vpop.f32.mrf.mxu0
    %v2208 = vadd.f32 0.0, %v2207
    %2209 = vmatmul.bf16.gmra.mxu0 %v1932
    %v2210 = vpop.f32.mrf.mxu0
    %v2211 = vadd.f32 0.0, %v2210
    %v2212 = vpop.f32.mrf.mxu0
    %v2213 = vadd.f32 0.0, %v2212
    %2214 = vdwg.mxu0
    %2215 = vmatpush.bf16.msra.mxu0 %v2092
    %2216 = vmatpush.bf16.msra.mxu0 %v2090
    %2217 = vmatpush.bf16.msra.mxu0 %v2088
    %2218 = vmatpush.bf16.msra.mxu0 %v2086
    %2219 = vmatpush.bf16.msra.mxu0 %v2084
    %2220 = vmatpush.bf16.msra.mxu0 %v2082
    %2221 = vmatpush.bf16.msra.mxu0 %v2080
    %2222 = vmatpush.bf16.msra.mxu0 %v2078
    %2223 = vmatmul.bf16.gmra.mxu0 %v1903
    %v2224 = vpop.f32.mrf.mxu0
    %v2225 = vadd.f32 %v2136, %v2224
    %v2226 = vpop.f32.mrf.mxu0
    %v2227 = vadd.f32 %v2138, %v2226
    %2228 = vmatmul.bf16.gmra.mxu0 %v1905
    %v2229 = vpop.f32.mrf.mxu0
    %v2230 = vadd.f32 %v2141, %v2229
    %v2231 = vpop.f32.mrf.mxu0
    %v2232 = vadd.f32 %v2143, %v2231
    %2233 = vmatmul.bf16.gmra.mxu0 %v1907
    %v2234 = vpop.f32.mrf.mxu0
    %v2235 = vadd.f32 %v2146, %v2234
    %v2236 = vpop.f32.mrf.mxu0
    %v2237 = vadd.f32 %v2148, %v2236
    %2238 = vmatmul.bf16.gmra.mxu0 %v1909
    %v2239 = vpop.f32.mrf.mxu0
    %v2240 = vadd.f32 %v2151, %v2239
    %v2241 = vpop.f32.mrf.mxu0
    %v2242 = vadd.f32 %v2153, %v2241
    %2243 = vmatmul.bf16.gmra.mxu0 %v1911
    %v2244 = vpop.f32.mrf.mxu0
    %v2245 = vadd.f32 %v2156, %v2244
    %v2246 = vpop.f32.mrf.mxu0
    %v2247 = vadd.f32 %v2158, %v2246
    %2248 = vmatmul.bf16.gmra.mxu0 %v1913
    %v2249 = vpop.f32.mrf.mxu0
    %v2250 = vadd.f32 %v2161, %v2249
    %v2251 = vpop.f32.mrf.mxu0
    %v2252 = vadd.f32 %v2163, %v2251
    %2253 = vmatmul.bf16.gmra.mxu0 %v1915
    %v2254 = vpop.f32.mrf.mxu0
    %v2255 = vadd.f32 %v2166, %v2254
    %v2256 = vpop.f32.mrf.mxu0
    %v2257 = vadd.f32 %v2168, %v2256
    %2258 = vmatmul.bf16.gmra.mxu0 %v1917
    %v2259 = vpop.f32.mrf.mxu0
    %v2260 = vadd.f32 %v2171, %v2259
    %v2261 = vpop.f32.mrf.mxu0
    %v2262 = vadd.f32 %v2173, %v2261
    %2263 = vmatmul.bf16.gmra.mxu0 %v1919
    %v2264 = vpop.f32.mrf.mxu0
    %v2265 = vadd.f32 %v2176, %v2264
    %v2266 = vpop.f32.mrf.mxu0
    %v2267 = vadd.f32 %v2178, %v2266
    %2268 = vmatmul.bf16.gmra.mxu0 %v1921
    %v2269 = vpop.f32.mrf.mxu0
    %v2270 = vadd.f32 %v2181, %v2269
    %v2271 = vpop.f32.mrf.mxu0
    %v2272 = vadd.f32 %v2183, %v2271
    %2273 = vmatmul.bf16.gmra.mxu0 %v1923
    %v2274 = vpop.f32.mrf.mxu0
    %v2275 = vadd.f32 %v2186, %v2274
    %v2276 = vpop.f32.mrf.mxu0
    %v2277 = vadd.f32 %v2188, %v2276
    %2278 = vmatmul.bf16.gmra.mxu0 %v1925
    %v2279 = vpop.f32.mrf.mxu0
    %v2280 = vadd.f32 %v2191, %v2279
    %v2281 = vpop.f32.mrf.mxu0
    %v2282 = vadd.f32 %v2193, %v2281
    %2283 = vmatmul.bf16.gmra.mxu0 %v1927
    %v2284 = vpop.f32.mrf.mxu0
    %v2285 = vadd.f32 %v2196, %v2284
    %v2286 = vpop.f32.mrf.mxu0
    %v2287 = vadd.f32 %v2198, %v2286
    %2288 = vmatmul.bf16.gmra.mxu0 %v1929
    %v2289 = vpop.f32.mrf.mxu0
    %v2290 = vadd.f32 %v2201, %v2289
    %v2291 = vpop.f32.mrf.mxu0
    %v2292 = vadd.f32 %v2203, %v2291
    %2293 = vmatmul.bf16.gmra.mxu0 %v1931
    %v2294 = vpop.f32.mrf.mxu0
    %v2295 = vadd.f32 %v2206, %v2294
    %v2296 = vpop.f32.mrf.mxu0
    %v2297 = vadd.f32 %v2208, %v2296
    %2298 = vmatmul.bf16.gmra.mxu0 %v1933
    %v2299 = vpop.f32.mrf.mxu0
    %v2300 = vadd.f32 %v2211, %v2299
    %v2301 = vpop.f32.mrf.mxu0
    %v2302 = vadd.f32 %v2213, %v2301
    %2303 = vdwg.mxu0
    %2304 = vmatpush.bf16.msra.mxu0 %v2077
    %2305 = vmatpush.bf16.msra.mxu0 %v2075
    %2306 = vmatpush.bf16.msra.mxu0 %v2073
    %2307 = vmatpush.bf16.msra.mxu0 %v2071
    %2308 = vmatpush.bf16.msra.mxu0 %v2069
    %2309 = vmatpush.bf16.msra.mxu0 %v2067
    %2310 = vmatpush.bf16.msra.mxu0 %v2065
    %2311 = vmatpush.bf16.msra.mxu0 %v2063
    %2312 = vmatmul.bf16.gmra.mxu0 %v1902
    %v2313 = vpop.f32.mrf.mxu0
    %v2314 = vadd.f32 0.0, %v2313
    %v2315 = vpop.f32.mrf.mxu0
    %v2316 = vadd.f32 0.0, %v2315
    %2317 = vmatmul.bf16.gmra.mxu0 %v1904
    %v2318 = vpop.f32.mrf.mxu0
    %v2319 = vadd.f32 0.0, %v2318
    %v2320 = vpop.f32.mrf.mxu0
    %v2321 = vadd.f32 0.0, %v2320
    %2322 = vmatmul.bf16.gmra.mxu0 %v1906
    %v2323 = vpop.f32.mrf.mxu0
    %v2324 = vadd.f32 0.0, %v2323
    %v2325 = vpop.f32.mrf.mxu0
    %v2326 = vadd.f32 0.0, %v2325
    %2327 = vmatmul.bf16.gmra.mxu0 %v1908
    %v2328 = vpop.f32.mrf.mxu0
    %v2329 = vadd.f32 0.0, %v2328
    %v2330 = vpop.f32.mrf.mxu0
    %v2331 = vadd.f32 0.0, %v2330
    %2332 = vmatmul.bf16.gmra.mxu0 %v1910
    %v2333 = vpop.f32.mrf.mxu0
    %v2334 = vadd.f32 0.0, %v2333
    %v2335 = vpop.f32.mrf.mxu0
    %v2336 = vadd.f32 0.0, %v2335
    %2337 = vmatmul.bf16.gmra.mxu0 %v1912
    %v2338 = vpop.f32.mrf.mxu0
    %v2339 = vadd.f32 0.0, %v2338
    %v2340 = vpop.f32.mrf.mxu0
    %v2341 = vadd.f32 0.0, %v2340
    %2342 = vmatmul.bf16.gmra.mxu0 %v1914
    %v2343 = vpop.f32.mrf.mxu0
    %v2344 = vadd.f32 0.0, %v2343
    %v2345 = vpop.f32.mrf.mxu0
    %v2346 = vadd.f32 0.0, %v2345
    %2347 = vmatmul.bf16.gmra.mxu0 %v1916
    %v2348 = vpop.f32.mrf.mxu0
    %v2349 = vadd.f32 0.0, %v2348
    %v2350 = vpop.f32.mrf.mxu0
    %v2351 = vadd.f32 0.0, %v2350
    %2352 = vmatmul.bf16.gmra.mxu0 %v1918
    %v2353 = vpop.f32.mrf.mxu0
    %v2354 = vadd.f32 0.0, %v2353
    %v2355 = vpop.f32.mrf.mxu0
    %v2356 = vadd.f32 0.0, %v2355
    %2357 = vmatmul.bf16.gmra.mxu0 %v1920
    %v2358 = vpop.f32.mrf.mxu0
    %v2359 = vadd.f32 0.0, %v2358
    %v2360 = vpop.f32.mrf.mxu0
    %v2361 = vadd.f32 0.0, %v2360
    %2362 = vmatmul.bf16.gmra.mxu0 %v1922
    %v2363 = vpop.f32.mrf.mxu0
    %v2364 = vadd.f32 0.0, %v2363
    %v2365 = vpop.f32.mrf.mxu0
    %v2366 = vadd.f32 0.0, %v2365
    %2367 = vmatmul.bf16.gmra.mxu0 %v1924
    %v2368 = vpop.f32.mrf.mxu0
    %v2369 = vadd.f32 0.0, %v2368
    %v2370 = vpop.f32.mrf.mxu0
    %v2371 = vadd.f32 0.0, %v2370
    %2372 = vmatmul.bf16.gmra.mxu0 %v1926
    %v2373 = vpop.f32.mrf.mxu0
    %v2374 = vadd.f32 0.0, %v2373
    %v2375 = vpop.f32.mrf.mxu0
    %v2376 = vadd.f32 0.0, %v2375
    %2377 = vmatmul.bf16.gmra.mxu0 %v1928
    %v2378 = vpop.f32.mrf.mxu0
    %v2379 = vadd.f32 0.0, %v2378
    %v2380 = vpop.f32.mrf.mxu0
    %v2381 = vadd.f32 0.0, %v2380
    %2382 = vmatmul.bf16.gmra.mxu0 %v1930
    %v2383 = vpop.f32.mrf.mxu0
    %v2384 = vadd.f32 0.0, %v2383
    %v2385 = vpop.f32.mrf.mxu0
    %v2386 = vadd.f32 0.0, %v2385
    %2387 = vmatmul.bf16.gmra.mxu0 %v1932
    %v2388 = vpop.f32.mrf.mxu0
    %v2389 = vadd.f32 0.0, %v2388
    %v2390 = vpop.f32.mrf.mxu0
    %v2391 = vadd.f32 0.0, %v2390
    %2392 = vdwg.mxu0
    %2393 = vmatpush.bf16.msra.mxu0 %v2093
    %2394 = vmatpush.bf16.msra.mxu0 %v2091
    %2395 = vmatpush.bf16.msra.mxu0 %v2089
    %2396 = vmatpush.bf16.msra.mxu0 %v2087
    %2397 = vmatpush.bf16.msra.mxu0 %v2085
    %2398 = vmatpush.bf16.msra.mxu0 %v2083
    %2399 = vmatpush.bf16.msra.mxu0 %v2081
    %2400 = vmatpush.bf16.msra.mxu0 %v2079
    %2401 = vmatmul.bf16.gmra.mxu0 %v1903
    %v2402 = vpop.f32.mrf.mxu0
    %v2403 = vadd.f32 %v2314, %v2402
    %v2404 = vpop.f32.mrf.mxu0
    %v2405 = vadd.f32 %v2316, %v2404
    %2406 = vmatmul.bf16.gmra.mxu0 %v1905
    %v2407 = vpop.f32.mrf.mxu0
    %v2408 = vadd.f32 %v2319, %v2407
    %v2409 = vpop.f32.mrf.mxu0
    %v2410 = vadd.f32 %v2321, %v2409
    %2411 = vmatmul.bf16.gmra.mxu0 %v1907
    %v2412 = vpop.f32.mrf.mxu0
    %v2413 = vadd.f32 %v2324, %v2412
    %v2414 = vpop.f32.mrf.mxu0
    %v2415 = vadd.f32 %v2326, %v2414
    %2416 = vmatmul.bf16.gmra.mxu0 %v1909
    %v2417 = vpop.f32.mrf.mxu0
    %v2418 = vadd.f32 %v2329, %v2417
    %v2419 = vpop.f32.mrf.mxu0
    %v2420 = vadd.f32 %v2331, %v2419
    %2421 = vmatmul.bf16.gmra.mxu0 %v1911
    %v2422 = vpop.f32.mrf.mxu0
    %v2423 = vadd.f32 %v2334, %v2422
    %v2424 = vpop.f32.mrf.mxu0
    %v2425 = vadd.f32 %v2336, %v2424
    %2426 = vmatmul.bf16.gmra.mxu0 %v1913
    %v2427 = vpop.f32.mrf.mxu0
    %v2428 = vadd.f32 %v2339, %v2427
    %v2429 = vpop.f32.mrf.mxu0
    %v2430 = vadd.f32 %v2341, %v2429
    %2431 = vmatmul.bf16.gmra.mxu0 %v1915
    %v2432 = vpop.f32.mrf.mxu0
    %v2433 = vadd.f32 %v2344, %v2432
    %v2434 = vpop.f32.mrf.mxu0
    %v2435 = vadd.f32 %v2346, %v2434
    %2436 = vmatmul.bf16.gmra.mxu0 %v1917
    %v2437 = vpop.f32.mrf.mxu0
    %v2438 = vadd.f32 %v2349, %v2437
    %v2439 = vpop.f32.mrf.mxu0
    %v2440 = vadd.f32 %v2351, %v2439
    %2441 = vmatmul.bf16.gmra.mxu0 %v1919
    %v2442 = vpop.f32.mrf.mxu0
    %v2443 = vadd.f32 %v2354, %v2442
    %v2444 = vpop.f32.mrf.mxu0
    %v2445 = vadd.f32 %v2356, %v2444
    %2446 = vmatmul.bf16.gmra.mxu0 %v1921
    %v2447 = vpop.f32.mrf.mxu0
    %v2448 = vadd.f32 %v2359, %v2447
    %v2449 = vpop.f32.mrf.mxu0
    %v2450 = vadd.f32 %v2361, %v2449
    %2451 = vmatmul.bf16.gmra.mxu0 %v1923
    %v2452 = vpop.f32.mrf.mxu0
    %v2453 = vadd.f32 %v2364, %v2452
    %v2454 = vpop.f32.mrf.mxu0
    %v2455 = vadd.f32 %v2366, %v2454
    %2456 = vmatmul.bf16.gmra.mxu0 %v1925
    %v2457 = vpop.f32.mrf.mxu0
    %v2458 = vadd.f32 %v2369, %v2457
    %v2459 = vpop.f32.mrf.mxu0
    %v2460 = vadd.f32 %v2371, %v2459
    %2461 = vmatmul.bf16.gmra.mxu0 %v1927
    %v2462 = vpop.f32.mrf.mxu0
    %v2463 = vadd.f32 %v2374, %v2462
    %v2464 = vpop.f32.mrf.mxu0
    %v2465 = vadd.f32 %v2376, %v2464
    %2466 = vmatmul.bf16.gmra.mxu0 %v1929
    %v2467 = vpop.f32.mrf.mxu0
    %v2468 = vadd.f32 %v2379, %v2467
    %v2469 = vpop.f32.mrf.mxu0
    %v2470 = vadd.f32 %v2381, %v2469
    %2471 = vmatmul.bf16.gmra.mxu0 %v1931
    %v2472 = vpop.f32.mrf.mxu0
    %v2473 = vadd.f32 %v2384, %v2472
    %v2474 = vpop.f32.mrf.mxu0
    %v2475 = vadd.f32 %v2386, %v2474
    %2476 = vmatmul.bf16.gmra.mxu0 %v1933
    %v2477 = vpop.f32.mrf.mxu0
    %v2478 = vadd.f32 %v2389, %v2477
    %v2479 = vpop.f32.mrf.mxu0
    %v2480 = vadd.f32 %v2391, %v2479
    %2481 = vdwg.mxu0
    %v2514 = vunpack.c.l.b16 %v1102
    %v2515 = vunpack.c.h.b16 %v1102
    %v2516 = vunpack.c.l.b16 %v1103
    %v2517 = vunpack.c.h.b16 %v1103
    %v2518 = vunpack.c.l.b16 %v1104
    %v2519 = vunpack.c.h.b16 %v1104
    %v2520 = vunpack.c.l.b16 %v1105
    %v2521 = vunpack.c.h.b16 %v1105
    %v2522 = vunpack.c.l.b16 %v1106
    %v2523 = vunpack.c.h.b16 %v1106
    %v2524 = vunpack.c.l.b16 %v1107
    %v2525 = vunpack.c.h.b16 %v1107
    %v2526 = vunpack.c.l.b16 %v1108
    %v2527 = vunpack.c.h.b16 %v1108
    %v2528 = vunpack.c.l.b16 %v1109
    %v2529 = vunpack.c.h.b16 %v1109
    %v2530 = vunpack.c.l.b16 %v1110
    %v2531 = vunpack.c.h.b16 %v1110
    %v2532 = vunpack.c.l.b16 %v1111
    %v2533 = vunpack.c.h.b16 %v1111
    %v2534 = vunpack.c.l.b16 %v1112
    %v2535 = vunpack.c.h.b16 %v1112
    %v2536 = vunpack.c.l.b16 %v1113
    %v2537 = vunpack.c.h.b16 %v1113
    %v2538 = vunpack.c.l.b16 %v1114
    %v2539 = vunpack.c.h.b16 %v1114
    %v2540 = vunpack.c.l.b16 %v1115
    %v2541 = vunpack.c.h.b16 %v1115
    %v2542 = vunpack.c.l.b16 %v1116
    %v2543 = vunpack.c.h.b16 %v1116
    %v2544 = vunpack.c.l.b16 %v1117
    %v2545 = vunpack.c.h.b16 %v1117
    %v2546 = vunpack.c.l.b16 %v1118
    %v2547 = vunpack.c.h.b16 %v1118
    %v2548 = vunpack.c.l.b16 %v1119
    %v2549 = vunpack.c.h.b16 %v1119
    %v2550 = vunpack.c.l.b16 %v1120
    %v2551 = vunpack.c.h.b16 %v1120
    %v2552 = vunpack.c.l.b16 %v1121
    %v2553 = vunpack.c.h.b16 %v1121
    %v2554 = vunpack.c.l.b16 %v1122
    %v2555 = vunpack.c.h.b16 %v1122
    %v2556 = vunpack.c.l.b16 %v1123
    %v2557 = vunpack.c.h.b16 %v1123
    %v2558 = vunpack.c.l.b16 %v1124
    %v2559 = vunpack.c.h.b16 %v1124
    %v2560 = vunpack.c.l.b16 %v1125
    %v2561 = vunpack.c.h.b16 %v1125
    %v2562 = vunpack.c.l.b16 %v1126
    %v2563 = vunpack.c.h.b16 %v1126
    %v2564 = vunpack.c.l.b16 %v1127
    %v2565 = vunpack.c.h.b16 %v1127
    %v2566 = vunpack.c.l.b16 %v1128
    %v2567 = vunpack.c.h.b16 %v1128
    %v2568 = vunpack.c.l.b16 %v1129
    %v2569 = vunpack.c.h.b16 %v1129
    %v2570 = vunpack.c.l.b16 %v1130
    %v2571 = vunpack.c.h.b16 %v1130
    %v2572 = vunpack.c.l.b16 %v1131
    %v2573 = vunpack.c.h.b16 %v1131
    %v2574 = vunpack.c.l.b16 %v1132
    %v2575 = vunpack.c.h.b16 %v1132
    %v2576 = vunpack.c.l.b16 %v1133
    %v2577 = vunpack.c.h.b16 %v1133
    %v2578 = vpack.c.b16 %v2516, %v2514
    %v2579 = vpack.c.b16 %v2517, %v2515
    %v2580 = vpack.c.b16 %v2520, %v2518
    %v2581 = vpack.c.b16 %v2521, %v2519
    %v2582 = vpack.c.b16 %v2524, %v2522
    %v2583 = vpack.c.b16 %v2525, %v2523
    %v2584 = vpack.c.b16 %v2528, %v2526
    %v2585 = vpack.c.b16 %v2529, %v2527
    %v2586 = vpack.c.b16 %v2532, %v2530
    %v2587 = vpack.c.b16 %v2533, %v2531
    %v2588 = vpack.c.b16 %v2536, %v2534
    %v2589 = vpack.c.b16 %v2537, %v2535
    %v2590 = vpack.c.b16 %v2540, %v2538
    %v2591 = vpack.c.b16 %v2541, %v2539
    %v2592 = vpack.c.b16 %v2544, %v2542
    %v2593 = vpack.c.b16 %v2545, %v2543
    %v2594 = vpack.c.b16 %v2548, %v2546
    %v2595 = vpack.c.b16 %v2549, %v2547
    %v2596 = vpack.c.b16 %v2552, %v2550
    %v2597 = vpack.c.b16 %v2553, %v2551
    %v2598 = vpack.c.b16 %v2556, %v2554
    %v2599 = vpack.c.b16 %v2557, %v2555
    %v2600 = vpack.c.b16 %v2560, %v2558
    %v2601 = vpack.c.b16 %v2561, %v2559
    %v2602 = vpack.c.b16 %v2564, %v2562
    %v2603 = vpack.c.b16 %v2565, %v2563
    %v2604 = vpack.c.b16 %v2568, %v2566
    %v2605 = vpack.c.b16 %v2569, %v2567
    %v2606 = vpack.c.b16 %v2572, %v2570
    %v2607 = vpack.c.b16 %v2573, %v2571
    %v2608 = vpack.c.b16 %v2576, %v2574
    %v2609 = vpack.c.b16 %v2577, %v2575
    %2642 = vmatpush.bf16.msra.mxu0 %v2592
    %2643 = vmatpush.bf16.msra.mxu0 %v2590
    %2644 = vmatpush.bf16.msra.mxu0 %v2588
    %2645 = vmatpush.bf16.msra.mxu0 %v2586
    %2646 = vmatpush.bf16.msra.mxu0 %v2584
    %2647 = vmatpush.bf16.msra.mxu0 %v2582
    %2648 = vmatpush.bf16.msra.mxu0 %v2580
    %2649 = vmatpush.bf16.msra.mxu0 %v2578
    %2650 = vmatmul.bf16.gmra.mxu0 %v1070
    %v2651 = vpop.f32.mrf.mxu0
    %v2652 = vadd.f32 %v2225, %v2651
    %v2653 = vpop.f32.mrf.mxu0
    %v2654 = vadd.f32 %v2227, %v2653
    %2655 = vmatmul.bf16.gmra.mxu0 %v1072
    %v2656 = vpop.f32.mrf.mxu0
    %v2657 = vadd.f32 %v2230, %v2656
    %v2658 = vpop.f32.mrf.mxu0
    %v2659 = vadd.f32 %v2232, %v2658
    %2660 = vmatmul.bf16.gmra.mxu0 %v1074
    %v2661 = vpop.f32.mrf.mxu0
    %v2662 = vadd.f32 %v2235, %v2661
    %v2663 = vpop.f32.mrf.mxu0
    %v2664 = vadd.f32 %v2237, %v2663
    %2665 = vmatmul.bf16.gmra.mxu0 %v1076
    %v2666 = vpop.f32.mrf.mxu0
    %v2667 = vadd.f32 %v2240, %v2666
    %v2668 = vpop.f32.mrf.mxu0
    %v2669 = vadd.f32 %v2242, %v2668
    %2670 = vmatmul.bf16.gmra.mxu0 %v1078
    %v2671 = vpop.f32.mrf.mxu0
    %v2672 = vadd.f32 %v2245, %v2671
    %v2673 = vpop.f32.mrf.mxu0
    %v2674 = vadd.f32 %v2247, %v2673
    %2675 = vmatmul.bf16.gmra.mxu0 %v1080
    %v2676 = vpop.f32.mrf.mxu0
    %v2677 = vadd.f32 %v2250, %v2676
    %v2678 = vpop.f32.mrf.mxu0
    %v2679 = vadd.f32 %v2252, %v2678
    %2680 = vmatmul.bf16.gmra.mxu0 %v1082
    %v2681 = vpop.f32.mrf.mxu0
    %v2682 = vadd.f32 %v2255, %v2681
    %v2683 = vpop.f32.mrf.mxu0
    %v2684 = vadd.f32 %v2257, %v2683
    %2685 = vmatmul.bf16.gmra.mxu0 %v1084
    %v2686 = vpop.f32.mrf.mxu0
    %v2687 = vadd.f32 %v2260, %v2686
    %v2688 = vpop.f32.mrf.mxu0
    %v2689 = vadd.f32 %v2262, %v2688
    %2690 = vmatmul.bf16.gmra.mxu0 %v1086
    %v2691 = vpop.f32.mrf.mxu0
    %v2692 = vadd.f32 %v2265, %v2691
    %v2693 = vpop.f32.mrf.mxu0
    %v2694 = vadd.f32 %v2267, %v2693
    %2695 = vmatmul.bf16.gmra.mxu0 %v1088
    %v2696 = vpop.f32.mrf.mxu0
    %v2697 = vadd.f32 %v2270, %v2696
    %v2698 = vpop.f32.mrf.mxu0
    %v2699 = vadd.f32 %v2272, %v2698
    %2700 = vmatmul.bf16.gmra.mxu0 %v1090
    %v2701 = vpop.f32.mrf.mxu0
    %v2702 = vadd.f32 %v2275, %v2701
    %v2703 = vpop.f32.mrf.mxu0
    %v2704 = vadd.f32 %v2277, %v2703
    %2705 = vmatmul.bf16.gmra.mxu0 %v1092
    %v2706 = vpop.f32.mrf.mxu0
    %v2707 = vadd.f32 %v2280, %v2706
    %v2708 = vpop.f32.mrf.mxu0
    %v2709 = vadd.f32 %v2282, %v2708
    %2710 = vmatmul.bf16.gmra.mxu0 %v1094
    %v2711 = vpop.f32.mrf.mxu0
    %v2712 = vadd.f32 %v2285, %v2711
    %v2713 = vpop.f32.mrf.mxu0
    %v2714 = vadd.f32 %v2287, %v2713
    %2715 = vmatmul.bf16.gmra.mxu0 %v1096
    %v2716 = vpop.f32.mrf.mxu0
    %v2717 = vadd.f32 %v2290, %v2716
    %v2718 = vpop.f32.mrf.mxu0
    %v2719 = vadd.f32 %v2292, %v2718
    %2720 = vmatmul.bf16.gmra.mxu0 %v1098
    %v2721 = vpop.f32.mrf.mxu0
    %v2722 = vadd.f32 %v2295, %v2721
    %v2723 = vpop.f32.mrf.mxu0
    %v2724 = vadd.f32 %v2297, %v2723
    %2725 = vmatmul.bf16.gmra.mxu0 %v1100
    %v2726 = vpop.f32.mrf.mxu0
    %v2727 = vadd.f32 %v2300, %v2726
    %v2728 = vpop.f32.mrf.mxu0
    %v2729 = vadd.f32 %v2302, %v2728
    %2730 = vdwg.mxu0
    %2731 = vmatpush.bf16.msra.mxu0 %v2608
    %2732 = vmatpush.bf16.msra.mxu0 %v2606
    %2733 = vmatpush.bf16.msra.mxu0 %v2604
    %2734 = vmatpush.bf16.msra.mxu0 %v2602
    %2735 = vmatpush.bf16.msra.mxu0 %v2600
    %2736 = vmatpush.bf16.msra.mxu0 %v2598
    %2737 = vmatpush.bf16.msra.mxu0 %v2596
    %2738 = vmatpush.bf16.msra.mxu0 %v2594
    %2739 = vmatmul.bf16.gmra.mxu0 %v1071
    %v2740 = vpop.f32.mrf.mxu0
    %v2741 = vadd.f32 %v2652, %v2740
    %v2742 = vpop.f32.mrf.mxu0
    %v2743 = vadd.f32 %v2654, %v2742
    %2744 = vmatmul.bf16.gmra.mxu0 %v1073
    %v2745 = vpop.f32.mrf.mxu0
    %v2746 = vadd.f32 %v2657, %v2745
    %v2747 = vpop.f32.mrf.mxu0
    %v2748 = vadd.f32 %v2659, %v2747
    %2749 = vmatmul.bf16.gmra.mxu0 %v1075
    %v2750 = vpop.f32.mrf.mxu0
    %v2751 = vadd.f32 %v2662, %v2750
    %v2752 = vpop.f32.mrf.mxu0
    %v2753 = vadd.f32 %v2664, %v2752
    %2754 = vmatmul.bf16.gmra.mxu0 %v1077
    %v2755 = vpop.f32.mrf.mxu0
    %v2756 = vadd.f32 %v2667, %v2755
    %v2757 = vpop.f32.mrf.mxu0
    %v2758 = vadd.f32 %v2669, %v2757
    %2759 = vmatmul.bf16.gmra.mxu0 %v1079
    %v2760 = vpop.f32.mrf.mxu0
    %v2761 = vadd.f32 %v2672, %v2760
    %v2762 = vpop.f32.mrf.mxu0
    %v2763 = vadd.f32 %v2674, %v2762
    %2764 = vmatmul.bf16.gmra.mxu0 %v1081
    %v2765 = vpop.f32.mrf.mxu0
    %v2766 = vadd.f32 %v2677, %v2765
    %v2767 = vpop.f32.mrf.mxu0
    %v2768 = vadd.f32 %v2679, %v2767
    %2769 = vmatmul.bf16.gmra.mxu0 %v1083
    %v2770 = vpop.f32.mrf.mxu0
    %v2771 = vadd.f32 %v2682, %v2770
    %v2772 = vpop.f32.mrf.mxu0
    %v2773 = vadd.f32 %v2684, %v2772
    %2774 = vmatmul.bf16.gmra.mxu0 %v1085
    %v2775 = vpop.f32.mrf.mxu0
    %v2776 = vadd.f32 %v2687, %v2775
    %v2777 = vpop.f32.mrf.mxu0
    %v2778 = vadd.f32 %v2689, %v2777
    %2779 = vmatmul.bf16.gmra.mxu0 %v1087
    %v2780 = vpop.f32.mrf.mxu0
    %v2781 = vadd.f32 %v2692, %v2780
    %v2782 = vpop.f32.mrf.mxu0
    %v2783 = vadd.f32 %v2694, %v2782
    %2784 = vmatmul.bf16.gmra.mxu0 %v1089
    %v2785 = vpop.f32.mrf.mxu0
    %v2786 = vadd.f32 %v2697, %v2785
    %v2787 = vpop.f32.mrf.mxu0
    %v2788 = vadd.f32 %v2699, %v2787
    %2789 = vmatmul.bf16.gmra.mxu0 %v1091
    %v2790 = vpop.f32.mrf.mxu0
    %v2791 = vadd.f32 %v2702, %v2790
    %v2792 = vpop.f32.mrf.mxu0
    %v2793 = vadd.f32 %v2704, %v2792
    %2794 = vmatmul.bf16.gmra.mxu0 %v1093
    %v2795 = vpop.f32.mrf.mxu0
    %v2796 = vadd.f32 %v2707, %v2795
    %v2797 = vpop.f32.mrf.mxu0
    %v2798 = vadd.f32 %v2709, %v2797
    %2799 = vmatmul.bf16.gmra.mxu0 %v1095
    %v2800 = vpop.f32.mrf.mxu0
    %v2801 = vadd.f32 %v2712, %v2800
    %v2802 = vpop.f32.mrf.mxu0
    %v2803 = vadd.f32 %v2714, %v2802
    %2804 = vmatmul.bf16.gmra.mxu0 %v1097
    %v2805 = vpop.f32.mrf.mxu0
    %v2806 = vadd.f32 %v2717, %v2805
    %v2807 = vpop.f32.mrf.mxu0
    %v2808 = vadd.f32 %v2719, %v2807
    %2809 = vmatmul.bf16.gmra.mxu0 %v1099
    %v2810 = vpop.f32.mrf.mxu0
    %v2811 = vadd.f32 %v2722, %v2810
    %v2812 = vpop.f32.mrf.mxu0
    %v2813 = vadd.f32 %v2724, %v2812
    %2814 = vmatmul.bf16.gmra.mxu0 %v1101
    %v2815 = vpop.f32.mrf.mxu0
    %v2816 = vadd.f32 %v2727, %v2815
    %v2817 = vpop.f32.mrf.mxu0
    %v2818 = vadd.f32 %v2729, %v2817
    %2819 = vdwg.mxu0
    %2820 = vmatpush.bf16.msra.mxu0 %v2593
    %2821 = vmatpush.bf16.msra.mxu0 %v2591
    %2822 = vmatpush.bf16.msra.mxu0 %v2589
    %2823 = vmatpush.bf16.msra.mxu0 %v2587
    %2824 = vmatpush.bf16.msra.mxu0 %v2585
    %2825 = vmatpush.bf16.msra.mxu0 %v2583
    %2826 = vmatpush.bf16.msra.mxu0 %v2581
    %2827 = vmatpush.bf16.msra.mxu0 %v2579
    %2828 = vmatmul.bf16.gmra.mxu0 %v1070
    %v2829 = vpop.f32.mrf.mxu0
    %v2830 = vadd.f32 %v2403, %v2829
    %v2831 = vpop.f32.mrf.mxu0
    %v2832 = vadd.f32 %v2405, %v2831
    %2833 = vmatmul.bf16.gmra.mxu0 %v1072
    %v2834 = vpop.f32.mrf.mxu0
    %v2835 = vadd.f32 %v2408, %v2834
    %v2836 = vpop.f32.mrf.mxu0
    %v2837 = vadd.f32 %v2410, %v2836
    %2838 = vmatmul.bf16.gmra.mxu0 %v1074
    %v2839 = vpop.f32.mrf.mxu0
    %v2840 = vadd.f32 %v2413, %v2839
    %v2841 = vpop.f32.mrf.mxu0
    %v2842 = vadd.f32 %v2415, %v2841
    %2843 = vmatmul.bf16.gmra.mxu0 %v1076
    %v2844 = vpop.f32.mrf.mxu0
    %v2845 = vadd.f32 %v2418, %v2844
    %v2846 = vpop.f32.mrf.mxu0
    %v2847 = vadd.f32 %v2420, %v2846
    %2848 = vmatmul.bf16.gmra.mxu0 %v1078
    %v2849 = vpop.f32.mrf.mxu0
    %v2850 = vadd.f32 %v2423, %v2849
    %v2851 = vpop.f32.mrf.mxu0
    %v2852 = vadd.f32 %v2425, %v2851
    %2853 = vmatmul.bf16.gmra.mxu0 %v1080
    %v2854 = vpop.f32.mrf.mxu0
    %v2855 = vadd.f32 %v2428, %v2854
    %v2856 = vpop.f32.mrf.mxu0
    %v2857 = vadd.f32 %v2430, %v2856
    %2858 = vmatmul.bf16.gmra.mxu0 %v1082
    %v2859 = vpop.f32.mrf.mxu0
    %v2860 = vadd.f32 %v2433, %v2859
    %v2861 = vpop.f32.mrf.mxu0
    %v2862 = vadd.f32 %v2435, %v2861
    %2863 = vmatmul.bf16.gmra.mxu0 %v1084
    %v2864 = vpop.f32.mrf.mxu0
    %v2865 = vadd.f32 %v2438, %v2864
    %v2866 = vpop.f32.mrf.mxu0
    %v2867 = vadd.f32 %v2440, %v2866
    %2868 = vmatmul.bf16.gmra.mxu0 %v1086
    %v2869 = vpop.f32.mrf.mxu0
    %v2870 = vadd.f32 %v2443, %v2869
    %v2871 = vpop.f32.mrf.mxu0
    %v2872 = vadd.f32 %v2445, %v2871
    %2873 = vmatmul.bf16.gmra.mxu0 %v1088
    %v2874 = vpop.f32.mrf.mxu0
    %v2875 = vadd.f32 %v2448, %v2874
    %v2876 = vpop.f32.mrf.mxu0
    %v2877 = vadd.f32 %v2450, %v2876
    %2878 = vmatmul.bf16.gmra.mxu0 %v1090
    %v2879 = vpop.f32.mrf.mxu0
    %v2880 = vadd.f32 %v2453, %v2879
    %v2881 = vpop.f32.mrf.mxu0
    %v2882 = vadd.f32 %v2455, %v2881
    %2883 = vmatmul.bf16.gmra.mxu0 %v1092
    %v2884 = vpop.f32.mrf.mxu0
    %v2885 = vadd.f32 %v2458, %v2884
    %v2886 = vpop.f32.mrf.mxu0
    %v2887 = vadd.f32 %v2460, %v2886
    %2888 = vmatmul.bf16.gmra.mxu0 %v1094
    %v2889 = vpop.f32.mrf.mxu0
    %v2890 = vadd.f32 %v2463, %v2889
    %v2891 = vpop.f32.mrf.mxu0
    %v2892 = vadd.f32 %v2465, %v2891
    %2893 = vmatmul.bf16.gmra.mxu0 %v1096
    %v2894 = vpop.f32.mrf.mxu0
    %v2895 = vadd.f32 %v2468, %v2894
    %v2896 = vpop.f32.mrf.mxu0
    %v2897 = vadd.f32 %v2470, %v2896
    %2898 = vmatmul.bf16.gmra.mxu0 %v1098
    %v2899 = vpop.f32.mrf.mxu0
    %v2900 = vadd.f32 %v2473, %v2899
    %v2901 = vpop.f32.mrf.mxu0
    %v2902 = vadd.f32 %v2475, %v2901
    %2903 = vmatmul.bf16.gmra.mxu0 %v1100
    %v2904 = vpop.f32.mrf.mxu0
    %v2905 = vadd.f32 %v2478, %v2904
    %v2906 = vpop.f32.mrf.mxu0
    %v2907 = vadd.f32 %v2480, %v2906
    %2908 = vdwg.mxu0
    %2909 = vmatpush.bf16.msra.mxu0 %v2609
    %2910 = vmatpush.bf16.msra.mxu0 %v2607
    %2911 = vmatpush.bf16.msra.mxu0 %v2605
    %2912 = vmatpush.bf16.msra.mxu0 %v2603
    %2913 = vmatpush.bf16.msra.mxu0 %v2601
    %2914 = vmatpush.bf16.msra.mxu0 %v2599
    %2915 = vmatpush.bf16.msra.mxu0 %v2597
    %2916 = vmatpush.bf16.msra.mxu0 %v2595
    %2917 = vmatmul.bf16.gmra.mxu0 %v1071
    %v2918 = vpop.f32.mrf.mxu0
    %v2919 = vadd.f32 %v2830, %v2918
    %v2920 = vpop.f32.mrf.mxu0
    %v2921 = vadd.f32 %v2832, %v2920
    %2922 = vmatmul.bf16.gmra.mxu0 %v1073
    %v2923 = vpop.f32.mrf.mxu0
    %v2924 = vadd.f32 %v2835, %v2923
    %v2925 = vpop.f32.mrf.mxu0
    %v2926 = vadd.f32 %v2837, %v2925
    %2927 = vmatmul.bf16.gmra.mxu0 %v1075
    %v2928 = vpop.f32.mrf.mxu0
    %v2929 = vadd.f32 %v2840, %v2928
    %v2930 = vpop.f32.mrf.mxu0
    %v2931 = vadd.f32 %v2842, %v2930
    %2932 = vmatmul.bf16.gmra.mxu0 %v1077
    %v2933 = vpop.f32.mrf.mxu0
    %v2934 = vadd.f32 %v2845, %v2933
    %v2935 = vpop.f32.mrf.mxu0
    %v2936 = vadd.f32 %v2847, %v2935
    %2937 = vmatmul.bf16.gmra.mxu0 %v1079
    %v2938 = vpop.f32.mrf.mxu0
    %v2939 = vadd.f32 %v2850, %v2938
    %v2940 = vpop.f32.mrf.mxu0
    %v2941 = vadd.f32 %v2852, %v2940
    %2942 = vmatmul.bf16.gmra.mxu0 %v1081
    %v2943 = vpop.f32.mrf.mxu0
    %v2944 = vadd.f32 %v2855, %v2943
    %v2945 = vpop.f32.mrf.mxu0
    %v2946 = vadd.f32 %v2857, %v2945
    %2947 = vmatmul.bf16.gmra.mxu0 %v1083
    %v2948 = vpop.f32.mrf.mxu0
    %v2949 = vadd.f32 %v2860, %v2948
    %v2950 = vpop.f32.mrf.mxu0
    %v2951 = vadd.f32 %v2862, %v2950
    %2952 = vmatmul.bf16.gmra.mxu0 %v1085
    %v2953 = vpop.f32.mrf.mxu0
    %v2954 = vadd.f32 %v2865, %v2953
    %v2955 = vpop.f32.mrf.mxu0
    %v2956 = vadd.f32 %v2867, %v2955
    %2957 = vmatmul.bf16.gmra.mxu0 %v1087
    %v2958 = vpop.f32.mrf.mxu0
    %v2959 = vadd.f32 %v2870, %v2958
    %v2960 = vpop.f32.mrf.mxu0
    %v2961 = vadd.f32 %v2872, %v2960
    %2962 = vmatmul.bf16.gmra.mxu0 %v1089
    %v2963 = vpop.f32.mrf.mxu0
    %v2964 = vadd.f32 %v2875, %v2963
    %v2965 = vpop.f32.mrf.mxu0
    %v2966 = vadd.f32 %v2877, %v2965
    %2967 = vmatmul.bf16.gmra.mxu0 %v1091
    %v2968 = vpop.f32.mrf.mxu0
    %v2969 = vadd.f32 %v2880, %v2968
    %v2970 = vpop.f32.mrf.mxu0
    %v2971 = vadd.f32 %v2882, %v2970
    %2972 = vmatmul.bf16.gmra.mxu0 %v1093
    %v2973 = vpop.f32.mrf.mxu0
    %v2974 = vadd.f32 %v2885, %v2973
    %v2975 = vpop.f32.mrf.mxu0
    %v2976 = vadd.f32 %v2887, %v2975
    %2977 = vmatmul.bf16.gmra.mxu0 %v1095
    %v2978 = vpop.f32.mrf.mxu0
    %v2979 = vadd.f32 %v2890, %v2978
    %v2980 = vpop.f32.mrf.mxu0
    %v2981 = vadd.f32 %v2892, %v2980
    %2982 = vmatmul.bf16.gmra.mxu0 %v1097
    %v2983 = vpop.f32.mrf.mxu0
    %v2984 = vadd.f32 %v2895, %v2983
    %v2985 = vpop.f32.mrf.mxu0
    %v2986 = vadd.f32 %v2897, %v2985
    %2987 = vmatmul.bf16.gmra.mxu0 %v1099
    %v2988 = vpop.f32.mrf.mxu0
    %v2989 = vadd.f32 %v2900, %v2988
    %v2990 = vpop.f32.mrf.mxu0
    %v2991 = vadd.f32 %v2902, %v2990
    %2992 = vmatmul.bf16.gmra.mxu0 %v1101
    %v2993 = vpop.f32.mrf.mxu0
    %v2994 = vadd.f32 %v2905, %v2993
    %v2995 = vpop.f32.mrf.mxu0
    %v2996 = vadd.f32 %v2907, %v2995
    %2997 = vdwg.mxu0
    %2998 = vset.pattern.permute.xlu0 9
    %2999 = vperm.xlu0 %2998, %v202
    %v3000 = vpop.permute.xlu0 %2999
    %3001 = vset.pattern.permute.xlu0 9
    %3002 = vperm.xlu0 %3001, %v203
    %v3003 = vpop.permute.xlu0 %3002
    %3004 = vset.pattern.permute.xlu0 9
    %3005 = vperm.xlu0 %3004, %v204
    %v3006 = vpop.permute.xlu0 %3005
    %3007 = vset.pattern.permute.xlu0 9
    %3008 = vperm.xlu0 %3007, %v205
    %v3009 = vpop.permute.xlu0 %3008
    %3010 = vset.pattern.permute.xlu0 9
    %3011 = vperm.xlu0 %3010, %v206
    %v3012 = vpop.permute.xlu0 %3011
    %3013 = vset.pattern.permute.xlu0 9
    %3014 = vperm.xlu0 %3013, %v207
    %v3015 = vpop.permute.xlu0 %3014
    %3016 = vset.pattern.permute.xlu0 9
    %3017 = vperm.xlu0 %3016, %v208
    %v3018 = vpop.permute.xlu0 %3017
    %3019 = vset.pattern.permute.xlu0 9
    %3020 = vperm.xlu0 %3019, %v209
    %v3021 = vpop.permute.xlu0 %3020
    %3022 = vset.pattern.permute.xlu0 9
    %3023 = vperm.xlu0 %3022, %v210
    %v3024 = vpop.permute.xlu0 %3023
    %3025 = vset.pattern.permute.xlu0 9
    %3026 = vperm.xlu0 %3025, %v211
    %v3027 = vpop.permute.xlu0 %3026
    %3028 = vset.pattern.permute.xlu0 9
    %3029 = vperm.xlu0 %3028, %v212
    %v3030 = vpop.permute.xlu0 %3029
    %3031 = vset.pattern.permute.xlu0 9
    %3032 = vperm.xlu0 %3031, %v213
    %v3033 = vpop.permute.xlu0 %3032
    %3034 = vset.pattern.permute.xlu0 9
    %3035 = vperm.xlu0 %3034, %v214
    %v3036 = vpop.permute.xlu0 %3035
    %3037 = vset.pattern.permute.xlu0 9
    %3038 = vperm.xlu0 %3037, %v215
    %v3039 = vpop.permute.xlu0 %3038
    %3040 = vset.pattern.permute.xlu0 9
    %3041 = vperm.xlu0 %3040, %v216
    %v3042 = vpop.permute.xlu0 %3041
    %3043 = vset.pattern.permute.xlu0 9
    %3044 = vperm.xlu0 %3043, %v217
    %v3045 = vpop.permute.xlu0 %3044
    %3046 = vset.pattern.permute.xlu0 9
    %3047 = vperm.xlu0 %3046, %v218
    %v3048 = vpop.permute.xlu0 %3047
    %3049 = vset.pattern.permute.xlu0 9
    %3050 = vperm.xlu0 %3049, %v219
    %v3051 = vpop.permute.xlu0 %3050
    %3052 = vset.pattern.permute.xlu0 9
    %3053 = vperm.xlu0 %3052, %v220
    %v3054 = vpop.permute.xlu0 %3053
    %3055 = vset.pattern.permute.xlu0 9
    %3056 = vperm.xlu0 %3055, %v221
    %v3057 = vpop.permute.xlu0 %3056
    %3058 = vset.pattern.permute.xlu0 9
    %3059 = vperm.xlu0 %3058, %v222
    %v3060 = vpop.permute.xlu0 %3059
    %3061 = vset.pattern.permute.xlu0 9
    %3062 = vperm.xlu0 %3061, %v223
    %v3063 = vpop.permute.xlu0 %3062
    %3064 = vset.pattern.permute.xlu0 9
    %3065 = vperm.xlu0 %3064, %v224
    %v3066 = vpop.permute.xlu0 %3065
    %3067 = vset.pattern.permute.xlu0 9
    %3068 = vperm.xlu0 %3067, %v225
    %v3069 = vpop.permute.xlu0 %3068
    %3070 = vset.pattern.permute.xlu0 9
    %3071 = vperm.xlu0 %3070, %v226
    %v3072 = vpop.permute.xlu0 %3071
    %3073 = vset.pattern.permute.xlu0 9
    %3074 = vperm.xlu0 %3073, %v227
    %v3075 = vpop.permute.xlu0 %3074
    %3076 = vset.pattern.permute.xlu0 9
    %3077 = vperm.xlu0 %3076, %v228
    %v3078 = vpop.permute.xlu0 %3077
    %3079 = vset.pattern.permute.xlu0 9
    %3080 = vperm.xlu0 %3079, %v229
    %v3081 = vpop.permute.xlu0 %3080
    %3082 = vset.pattern.permute.xlu0 9
    %3083 = vperm.xlu0 %3082, %v230
    %v3084 = vpop.permute.xlu0 %3083
    %3085 = vset.pattern.permute.xlu0 9
    %3086 = vperm.xlu0 %3085, %v231
    %v3087 = vpop.permute.xlu0 %3086
    %3088 = vset.pattern.permute.xlu0 9
    %3089 = vperm.xlu0 %3088, %v232
    %v3090 = vpop.permute.xlu0 %3089
    %3091 = vset.pattern.permute.xlu0 9
    %3092 = vperm.xlu0 %3091, %v233
    %v3093 = vpop.permute.xlu0 %3092
    %3094 = vset.pattern.permute.xlu0 8
    %3095 = vperm.xlu0 %3094, %v134
    %v3096 = vpop.permute.xlu0 %3095
    %3097 = vset.pattern.permute.xlu0 8
    %3098 = vperm.xlu0 %3097, %v136
    %v3099 = vpop.permute.xlu0 %3098
    %3100 = vset.pattern.permute.xlu0 8
    %3101 = vperm.xlu0 %3100, %v138
    %v3102 = vpop.permute.xlu0 %3101
    %3103 = vset.pattern.permute.xlu0 8
    %3104 = vperm.xlu0 %3103, %v140
    %v3105 = vpop.permute.xlu0 %3104
    %3106 = vset.pattern.permute.xlu0 8
    %3107 = vperm.xlu0 %3106, %v142
    %v3108 = vpop.permute.xlu0 %3107
    %3109 = vset.pattern.permute.xlu0 8
    %3110 = vperm.xlu0 %3109, %v144
    %v3111 = vpop.permute.xlu0 %3110
    %3112 = vset.pattern.permute.xlu0 8
    %3113 = vperm.xlu0 %3112, %v146
    %v3114 = vpop.permute.xlu0 %3113
    %3115 = vset.pattern.permute.xlu0 8
    %3116 = vperm.xlu0 %3115, %v148
    %v3117 = vpop.permute.xlu0 %3116
    %3118 = vset.pattern.permute.xlu0 8
    %3119 = vperm.xlu0 %3118, %v150
    %v3120 = vpop.permute.xlu0 %3119
    %3121 = vset.pattern.permute.xlu0 8
    %3122 = vperm.xlu0 %3121, %v152
    %v3123 = vpop.permute.xlu0 %3122
    %3124 = vset.pattern.permute.xlu0 8
    %3125 = vperm.xlu0 %3124, %v154
    %v3126 = vpop.permute.xlu0 %3125
    %3127 = vset.pattern.permute.xlu0 8
    %3128 = vperm.xlu0 %3127, %v156
    %v3129 = vpop.permute.xlu0 %3128
    %3130 = vset.pattern.permute.xlu0 8
    %3131 = vperm.xlu0 %3130, %v158
    %v3132 = vpop.permute.xlu0 %3131
    %3133 = vset.pattern.permute.xlu0 8
    %3134 = vperm.xlu0 %3133, %v160
    %v3135 = vpop.permute.xlu0 %3134
    %3136 = vset.pattern.permute.xlu0 8
    %3137 = vperm.xlu0 %3136, %v162
    %v3138 = vpop.permute.xlu0 %3137
    %3139 = vset.pattern.permute.xlu0 8
    %3140 = vperm.xlu0 %3139, %v164
    %v3141 = vpop.permute.xlu0 %3140
    %3142 = vset.pattern.permute.xlu0 8
    %3143 = vperm.xlu0 %3142, %v166
    %v3144 = vpop.permute.xlu0 %3143
    %3145 = vset.pattern.permute.xlu0 8
    %3146 = vperm.xlu0 %3145, %v168
    %v3147 = vpop.permute.xlu0 %3146
    %3148 = vset.pattern.permute.xlu0 8
    %3149 = vperm.xlu0 %3148, %v170
    %v3150 = vpop.permute.xlu0 %3149
    %3151 = vset.pattern.permute.xlu0 8
    %3152 = vperm.xlu0 %3151, %v172
    %v3153 = vpop.permute.xlu0 %3152
    %3154 = vset.pattern.permute.xlu0 8
    %3155 = vperm.xlu0 %3154, %v174
    %v3156 = vpop.permute.xlu0 %3155
    %3157 = vset.pattern.permute.xlu0 8
    %3158 = vperm.xlu0 %3157, %v176
    %v3159 = vpop.permute.xlu0 %3158
    %3160 = vset.pattern.permute.xlu0 8
    %3161 = vperm.xlu0 %3160, %v178
    %v3162 = vpop.permute.xlu0 %3161
    %3163 = vset.pattern.permute.xlu0 8
    %3164 = vperm.xlu0 %3163, %v180
    %v3165 = vpop.permute.xlu0 %3164
    %3166 = vset.pattern.permute.xlu0 8
    %3167 = vperm.xlu0 %3166, %v182
    %v3168 = vpop.permute.xlu0 %3167
    %3169 = vset.pattern.permute.xlu0 8
    %3170 = vperm.xlu0 %3169, %v184
    %v3171 = vpop.permute.xlu0 %3170
    %3172 = vset.pattern.permute.xlu0 8
    %3173 = vperm.xlu0 %3172, %v186
    %v3174 = vpop.permute.xlu0 %3173
    %3175 = vset.pattern.permute.xlu0 8
    %3176 = vperm.xlu0 %3175, %v188
    %v3177 = vpop.permute.xlu0 %3176
    %3178 = vset.pattern.permute.xlu0 8
    %3179 = vperm.xlu0 %3178, %v190
    %v3180 = vpop.permute.xlu0 %3179
    %3181 = vset.pattern.permute.xlu0 8
    %3182 = vperm.xlu0 %3181, %v192
    %v3183 = vpop.permute.xlu0 %3182
    %3184 = vset.pattern.permute.xlu0 8
    %3185 = vperm.xlu0 %3184, %v194
    %v3186 = vpop.permute.xlu0 %3185
    %3187 = vset.pattern.permute.xlu0 8
    %3188 = vperm.xlu0 %3187, %v196
    %v3189 = vpop.permute.xlu0 %3188
    %v3190 = vsel %vm200, %v3000, %v3096
    %v3191 = vsel %vm200, %v3003, %v3099
    %v3192 = vsel %vm200, %v3006, %v3102
    %v3193 = vsel %vm200, %v3009, %v3105
    %v3194 = vsel %vm200, %v3012, %v3108
    %v3195 = vsel %vm200, %v3015, %v3111
    %v3196 = vsel %vm200, %v3018, %v3114
    %v3197 = vsel %vm200, %v3021, %v3117
    %v3198 = vsel %vm200, %v3024, %v3120
    %v3199 = vsel %vm200, %v3027, %v3123
    %v3200 = vsel %vm200, %v3030, %v3126
    %v3201 = vsel %vm200, %v3033, %v3129
    %v3202 = vsel %vm200, %v3036, %v3132
    %v3203 = vsel %vm200, %v3039, %v3135
    %v3204 = vsel %vm200, %v3042, %v3138
    %v3205 = vsel %vm200, %v3045, %v3141
    %v3206 = vsel %vm200, %v3048, %v3144
    %v3207 = vsel %vm200, %v3051, %v3147
    %v3208 = vsel %vm200, %v3054, %v3150
    %v3209 = vsel %vm200, %v3057, %v3153
    %v3210 = vsel %vm200, %v3060, %v3156
    %v3211 = vsel %vm200, %v3063, %v3159
    %v3212 = vsel %vm200, %v3066, %v3162
    %v3213 = vsel %vm200, %v3069, %v3165
    %v3214 = vsel %vm200, %v3072, %v3168
    %v3215 = vsel %vm200, %v3075, %v3171
    %v3216 = vsel %vm200, %v3078, %v3174
    %v3217 = vsel %vm200, %v3081, %v3177
    %v3218 = vsel %vm200, %v3084, %v3180
    %v3219 = vsel %vm200, %v3087, %v3183
    %v3220 = vsel %vm200, %v3090, %v3186
    %v3221 = vsel %vm200, %v3093, %v3189
    %vm3222 = vcmp.eq.s32.totalorder %v198, %v3190
    %vm3223 = vcmp.eq.s32.totalorder %v198, %v3191
    %vm3224 = vcmp.eq.s32.totalorder %v198, %v3192
    %vm3225 = vcmp.eq.s32.totalorder %v198, %v3193
    %vm3226 = vcmp.eq.s32.totalorder %v198, %v3194
    %vm3227 = vcmp.eq.s32.totalorder %v198, %v3195
    %vm3228 = vcmp.eq.s32.totalorder %v198, %v3196
    %vm3229 = vcmp.eq.s32.totalorder %v198, %v3197
    %vm3230 = vcmp.eq.s32.totalorder %v198, %v3198
    %vm3231 = vcmp.eq.s32.totalorder %v198, %v3199
    %vm3232 = vcmp.eq.s32.totalorder %v198, %v3200
    %vm3233 = vcmp.eq.s32.totalorder %v198, %v3201
    %vm3234 = vcmp.eq.s32.totalorder %v198, %v3202
    %vm3235 = vcmp.eq.s32.totalorder %v198, %v3203
    %vm3236 = vcmp.eq.s32.totalorder %v198, %v3204
    %vm3237 = vcmp.eq.s32.totalorder %v198, %v3205
    %vm3238 = vcmp.eq.s32.totalorder %v198, %v3206
    %vm3239 = vcmp.eq.s32.totalorder %v198, %v3207
    %vm3240 = vcmp.eq.s32.totalorder %v198, %v3208
    %vm3241 = vcmp.eq.s32.totalorder %v198, %v3209
    %vm3242 = vcmp.eq.s32.totalorder %v198, %v3210
    %vm3243 = vcmp.eq.s32.totalorder %v198, %v3211
    %vm3244 = vcmp.eq.s32.totalorder %v198, %v3212
    %vm3245 = vcmp.eq.s32.totalorder %v198, %v3213
    %vm3246 = vcmp.eq.s32.totalorder %v198, %v3214
    %vm3247 = vcmp.eq.s32.totalorder %v198, %v3215
    %vm3248 = vcmp.eq.s32.totalorder %v198, %v3216
    %vm3249 = vcmp.eq.s32.totalorder %v198, %v3217
    %vm3250 = vcmp.eq.s32.totalorder %v198, %v3218
    %vm3251 = vcmp.eq.s32.totalorder %v198, %v3219
    %vm3252 = vcmp.eq.s32.totalorder %v198, %v3220
    %vm3253 = vcmp.eq.s32.totalorder %v198, %v3221
    %v3254 = vsel %vm3222, 1, 0
    %v3255 = vsel %vm3223, 1, 0
    %v3256 = vsel %vm3224, 1, 0
    %v3257 = vsel %vm3225, 1, 0
    %v3258 = vsel %vm3226, 1, 0
    %v3259 = vsel %vm3227, 1, 0
    %v3260 = vsel %vm3228, 1, 0
    %v3261 = vsel %vm3229, 1, 0
    %v3262 = vsel %vm3230, 1, 0
    %v3263 = vsel %vm3231, 1, 0
    %v3264 = vsel %vm3232, 1, 0
    %v3265 = vsel %vm3233, 1, 0
    %v3266 = vsel %vm3234, 1, 0
    %v3267 = vsel %vm3235, 1, 0
    %v3268 = vsel %vm3236, 1, 0
    %v3269 = vsel %vm3237, 1, 0
    %v3270 = vsel %vm3238, 1, 0
    %v3271 = vsel %vm3239, 1, 0
    %v3272 = vsel %vm3240, 1, 0
    %v3273 = vsel %vm3241, 1, 0
    %v3274 = vsel %vm3242, 1, 0
    %v3275 = vsel %vm3243, 1, 0
    %v3276 = vsel %vm3244, 1, 0
    %v3277 = vsel %vm3245, 1, 0
    %v3278 = vsel %vm3246, 1, 0
    %v3279 = vsel %vm3247, 1, 0
    %v3280 = vsel %vm3248, 1, 0
    %v3281 = vsel %vm3249, 1, 0
    %v3282 = vsel %vm3250, 1, 0
    %v3283 = vsel %vm3251, 1, 0
    %v3284 = vsel %vm3252, 1, 0
    %v3285 = vsel %vm3253, 1, 0
    %v3286 = vcvt.s32.f32 %v3254
    %v3287 = vcvt.s32.f32 %v3255
    %v3288 = vcvt.s32.f32 %v3256
    %v3289 = vcvt.s32.f32 %v3257
    %v3290 = vcvt.s32.f32 %v3258
    %v3291 = vcvt.s32.f32 %v3259
    %v3292 = vcvt.s32.f32 %v3260
    %v3293 = vcvt.s32.f32 %v3261
    %v3294 = vcvt.s32.f32 %v3262
    %v3295 = vcvt.s32.f32 %v3263
    %v3296 = vcvt.s32.f32 %v3264
    %v3297 = vcvt.s32.f32 %v3265
    %v3298 = vcvt.s32.f32 %v3266
    %v3299 = vcvt.s32.f32 %v3267
    %v3300 = vcvt.s32.f32 %v3268
    %v3301 = vcvt.s32.f32 %v3269
    %v3302 = vcvt.s32.f32 %v3270
    %v3303 = vcvt.s32.f32 %v3271
    %v3304 = vcvt.s32.f32 %v3272
    %v3305 = vcvt.s32.f32 %v3273
    %v3306 = vcvt.s32.f32 %v3274
    %v3307 = vcvt.s32.f32 %v3275
    %v3308 = vcvt.s32.f32 %v3276
    %v3309 = vcvt.s32.f32 %v3277
    %v3310 = vcvt.s32.f32 %v3278
    %v3311 = vcvt.s32.f32 %v3279
    %v3312 = vcvt.s32.f32 %v3280
    %v3313 = vcvt.s32.f32 %v3281
    %v3314 = vcvt.s32.f32 %v3282
    %v3315 = vcvt.s32.f32 %v3283
    %v3316 = vcvt.s32.f32 %v3284
    %v3317 = vcvt.s32.f32 %v3285
    %v3318 = vpack.c.bf16 %v3287, %v3286
    %v3319 = vpack.c.bf16 %v3289, %v3288
    %v3320 = vpack.c.bf16 %v3291, %v3290
    %v3321 = vpack.c.bf16 %v3293, %v3292
    %v3322 = vpack.c.bf16 %v3295, %v3294
    %v3323 = vpack.c.bf16 %v3297, %v3296
    %v3324 = vpack.c.bf16 %v3299, %v3298
    %v3325 = vpack.c.bf16 %v3301, %v3300
    %v3326 = vpack.c.bf16 %v3303, %v3302
    %v3327 = vpack.c.bf16 %v3305, %v3304
    %v3328 = vpack.c.bf16 %v3307, %v3306
    %v3329 = vpack.c.bf16 %v3309, %v3308
    %v3330 = vpack.c.bf16 %v3311, %v3310
    %v3331 = vpack.c.bf16 %v3313, %v3312
    %v3332 = vpack.c.bf16 %v3315, %v3314
    %v3333 = vpack.c.bf16 %v3317, %v3316
    %v3334 = vld [vmem:[#allocation2 + $0x200] sm:$0xff]
    %v3335 = vld [vmem:[#allocation2 + $0x208] sm:$0xff]
    %v3336 = vld [vmem:[#allocation2 + $0x210] sm:$0xff]
    %v3337 = vld [vmem:[#allocation2 + $0x218] sm:$0xff]
    %v3338 = vld [vmem:[#allocation2 + $0x220] sm:$0xff]
    %v3339 = vld [vmem:[#allocation2 + $0x228] sm:$0xff]
    %v3340 = vld [vmem:[#allocation2 + $0x230] sm:$0xff]
    %v3341 = vld [vmem:[#allocation2 + $0x238] sm:$0xff]
    %v3342 = vld [vmem:[#allocation2 + $0x240] sm:$0xff]
    %v3343 = vld [vmem:[#allocation2 + $0x248] sm:$0xff]
    %v3344 = vld [vmem:[#allocation2 + $0x250] sm:$0xff]
    %v3345 = vld [vmem:[#allocation2 + $0x258] sm:$0xff]
    %v3346 = vld [vmem:[#allocation2 + $0x260] sm:$0xff]
    %v3347 = vld [vmem:[#allocation2 + $0x268] sm:$0xff]
    %v3348 = vld [vmem:[#allocation2 + $0x270] sm:$0xff]
    %v3349 = vld [vmem:[#allocation2 + $0x278] sm:$0xff]
    %v3366 = vunpack.c.l.b16 %v3334
    %v3367 = vunpack.c.h.b16 %v3334
    %v3368 = vunpack.c.l.b16 %v3335
    %v3369 = vunpack.c.h.b16 %v3335
    %v3370 = vunpack.c.l.b16 %v3336
    %v3371 = vunpack.c.h.b16 %v3336
    %v3372 = vunpack.c.l.b16 %v3337
    %v3373 = vunpack.c.h.b16 %v3337
    %v3374 = vunpack.c.l.b16 %v3338
    %v3375 = vunpack.c.h.b16 %v3338
    %v3376 = vunpack.c.l.b16 %v3339
    %v3377 = vunpack.c.h.b16 %v3339
    %v3378 = vunpack.c.l.b16 %v3340
    %v3379 = vunpack.c.h.b16 %v3340
    %v3380 = vunpack.c.l.b16 %v3341
    %v3381 = vunpack.c.h.b16 %v3341
    %v3382 = vunpack.c.l.b16 %v3342
    %v3383 = vunpack.c.h.b16 %v3342
    %v3384 = vunpack.c.l.b16 %v3343
    %v3385 = vunpack.c.h.b16 %v3343
    %v3386 = vunpack.c.l.b16 %v3344
    %v3387 = vunpack.c.h.b16 %v3344
    %v3388 = vunpack.c.l.b16 %v3345
    %v3389 = vunpack.c.h.b16 %v3345
    %v3390 = vunpack.c.l.b16 %v3346
    %v3391 = vunpack.c.h.b16 %v3346
    %v3392 = vunpack.c.l.b16 %v3347
    %v3393 = vunpack.c.h.b16 %v3347
    %v3394 = vunpack.c.l.b16 %v3348
    %v3395 = vunpack.c.h.b16 %v3348
    %v3396 = vunpack.c.l.b16 %v3349
    %v3397 = vunpack.c.h.b16 %v3349
    %v3398 = vpack.c.b16 %v3368, %v3366
    %v3399 = vpack.c.b16 %v3369, %v3367
    %v3400 = vpack.c.b16 %v3372, %v3370
    %v3401 = vpack.c.b16 %v3373, %v3371
    %v3402 = vpack.c.b16 %v3376, %v3374
    %v3403 = vpack.c.b16 %v3377, %v3375
    %v3404 = vpack.c.b16 %v3380, %v3378
    %v3405 = vpack.c.b16 %v3381, %v3379
    %v3406 = vpack.c.b16 %v3384, %v3382
    %v3407 = vpack.c.b16 %v3385, %v3383
    %v3408 = vpack.c.b16 %v3388, %v3386
    %v3409 = vpack.c.b16 %v3389, %v3387
    %v3410 = vpack.c.b16 %v3392, %v3390
    %v3411 = vpack.c.b16 %v3393, %v3391
    %v3412 = vpack.c.b16 %v3396, %v3394
    %v3413 = vpack.c.b16 %v3397, %v3395
    %3430 = vmatpush.bf16.msra.mxu0 %v3412
    %3431 = vmatpush.bf16.msra.mxu0 %v3410
    %3432 = vmatpush.bf16.msra.mxu0 %v3408
    %3433 = vmatpush.bf16.msra.mxu0 %v3406
    %3434 = vmatpush.bf16.msra.mxu0 %v3404
    %3435 = vmatpush.bf16.msra.mxu0 %v3402
    %3436 = vmatpush.bf16.msra.mxu0 %v3400
    %3437 = vmatpush.bf16.msra.mxu0 %v3398
    %3438 = vmatmul.bf16.gmra.mxu0 %v3318
    %v3439 = vpop.f32.mrf.mxu0
    %v3440 = vadd.f32 0.0, %v3439
    %v3441 = vpop.f32.mrf.mxu0
    %v3442 = vadd.f32 0.0, %v3441
    %3443 = vmatmul.bf16.gmra.mxu0 %v3319
    %v3444 = vpop.f32.mrf.mxu0
    %v3445 = vadd.f32 0.0, %v3444
    %v3446 = vpop.f32.mrf.mxu0
    %v3447 = vadd.f32 0.0, %v3446
    %3448 = vmatmul.bf16.gmra.mxu0 %v3320
    %v3449 = vpop.f32.mrf.mxu0
    %v3450 = vadd.f32 0.0, %v3449
    %v3451 = vpop.f32.mrf.mxu0
    %v3452 = vadd.f32 0.0, %v3451
    %3453 = vmatmul.bf16.gmra.mxu0 %v3321
    %v3454 = vpop.f32.mrf.mxu0
    %v3455 = vadd.f32 0.0, %v3454
    %v3456 = vpop.f32.mrf.mxu0
    %v3457 = vadd.f32 0.0, %v3456
    %3458 = vmatmul.bf16.gmra.mxu0 %v3322
    %v3459 = vpop.f32.mrf.mxu0
    %v3460 = vadd.f32 0.0, %v3459
    %v3461 = vpop.f32.mrf.mxu0
    %v3462 = vadd.f32 0.0, %v3461
    %3463 = vmatmul.bf16.gmra.mxu0 %v3323
    %v3464 = vpop.f32.mrf.mxu0
    %v3465 = vadd.f32 0.0, %v3464
    %v3466 = vpop.f32.mrf.mxu0
    %v3467 = vadd.f32 0.0, %v3466
    %3468 = vmatmul.bf16.gmra.mxu0 %v3324
    %v3469 = vpop.f32.mrf.mxu0
    %v3470 = vadd.f32 0.0, %v3469
    %v3471 = vpop.f32.mrf.mxu0
    %v3472 = vadd.f32 0.0, %v3471
    %3473 = vmatmul.bf16.gmra.mxu0 %v3325
    %v3474 = vpop.f32.mrf.mxu0
    %v3475 = vadd.f32 0.0, %v3474
    %v3476 = vpop.f32.mrf.mxu0
    %v3477 = vadd.f32 0.0, %v3476
    %3478 = vmatmul.bf16.gmra.mxu0 %v3326
    %v3479 = vpop.f32.mrf.mxu0
    %v3480 = vadd.f32 0.0, %v3479
    %v3481 = vpop.f32.mrf.mxu0
    %v3482 = vadd.f32 0.0, %v3481
    %3483 = vmatmul.bf16.gmra.mxu0 %v3327
    %v3484 = vpop.f32.mrf.mxu0
    %v3485 = vadd.f32 0.0, %v3484
    %v3486 = vpop.f32.mrf.mxu0
    %v3487 = vadd.f32 0.0, %v3486
    %3488 = vmatmul.bf16.gmra.mxu0 %v3328
    %v3489 = vpop.f32.mrf.mxu0
    %v3490 = vadd.f32 0.0, %v3489
    %v3491 = vpop.f32.mrf.mxu0
    %v3492 = vadd.f32 0.0, %v3491
    %3493 = vmatmul.bf16.gmra.mxu0 %v3329
    %v3494 = vpop.f32.mrf.mxu0
    %v3495 = vadd.f32 0.0, %v3494
    %v3496 = vpop.f32.mrf.mxu0
    %v3497 = vadd.f32 0.0, %v3496
    %3498 = vmatmul.bf16.gmra.mxu0 %v3330
    %v3499 = vpop.f32.mrf.mxu0
    %v3500 = vadd.f32 0.0, %v3499
    %v3501 = vpop.f32.mrf.mxu0
    %v3502 = vadd.f32 0.0, %v3501
    %3503 = vmatmul.bf16.gmra.mxu0 %v3331
    %v3504 = vpop.f32.mrf.mxu0
    %v3505 = vadd.f32 0.0, %v3504
    %v3506 = vpop.f32.mrf.mxu0
    %v3507 = vadd.f32 0.0, %v3506
    %3508 = vmatmul.bf16.gmra.mxu0 %v3332
    %v3509 = vpop.f32.mrf.mxu0
    %v3510 = vadd.f32 0.0, %v3509
    %v3511 = vpop.f32.mrf.mxu0
    %v3512 = vadd.f32 0.0, %v3511
    %3513 = vmatmul.bf16.gmra.mxu0 %v3333
    %v3514 = vpop.f32.mrf.mxu0
    %v3515 = vadd.f32 0.0, %v3514
    %v3516 = vpop.f32.mrf.mxu0
    %v3517 = vadd.f32 0.0, %v3516
    %3518 = vdwg.mxu0
    %3519 = vmatpush.bf16.msra.mxu0 %v3413
    %3520 = vmatpush.bf16.msra.mxu0 %v3411
    %3521 = vmatpush.bf16.msra.mxu0 %v3409
    %3522 = vmatpush.bf16.msra.mxu0 %v3407
    %3523 = vmatpush.bf16.msra.mxu0 %v3405
    %3524 = vmatpush.bf16.msra.mxu0 %v3403
    %3525 = vmatpush.bf16.msra.mxu0 %v3401
    %3526 = vmatpush.bf16.msra.mxu0 %v3399
    %3527 = vmatmul.bf16.gmra.mxu0 %v3318
    %v3528 = vpop.f32.mrf.mxu0
    %v3529 = vadd.f32 0.0, %v3528
    %v3530 = vpop.f32.mrf.mxu0
    %v3531 = vadd.f32 0.0, %v3530
    %3532 = vmatmul.bf16.gmra.mxu0 %v3319
    %v3533 = vpop.f32.mrf.mxu0
    %v3534 = vadd.f32 0.0, %v3533
    %v3535 = vpop.f32.mrf.mxu0
    %v3536 = vadd.f32 0.0, %v3535
    %3537 = vmatmul.bf16.gmra.mxu0 %v3320
    %v3538 = vpop.f32.mrf.mxu0
    %v3539 = vadd.f32 0.0, %v3538
    %v3540 = vpop.f32.mrf.mxu0
    %v3541 = vadd.f32 0.0, %v3540
    %3542 = vmatmul.bf16.gmra.mxu0 %v3321
    %v3543 = vpop.f32.mrf.mxu0
    %v3544 = vadd.f32 0.0, %v3543
    %v3545 = vpop.f32.mrf.mxu0
    %v3546 = vadd.f32 0.0, %v3545
    %3547 = vmatmul.bf16.gmra.mxu0 %v3322
    %v3548 = vpop.f32.mrf.mxu0
    %v3549 = vadd.f32 0.0, %v3548
    %v3550 = vpop.f32.mrf.mxu0
    %v3551 = vadd.f32 0.0, %v3550
    %3552 = vmatmul.bf16.gmra.mxu0 %v3323
    %v3553 = vpop.f32.mrf.mxu0
    %v3554 = vadd.f32 0.0, %v3553
    %v3555 = vpop.f32.mrf.mxu0
    %v3556 = vadd.f32 0.0, %v3555
    %3557 = vmatmul.bf16.gmra.mxu0 %v3324
    %v3558 = vpop.f32.mrf.mxu0
    %v3559 = vadd.f32 0.0, %v3558
    %v3560 = vpop.f32.mrf.mxu0
    %v3561 = vadd.f32 0.0, %v3560
    %3562 = vmatmul.bf16.gmra.mxu0 %v3325
    %v3563 = vpop.f32.mrf.mxu0
    %v3564 = vadd.f32 0.0, %v3563
    %v3565 = vpop.f32.mrf.mxu0
    %v3566 = vadd.f32 0.0, %v3565
    %3567 = vmatmul.bf16.gmra.mxu0 %v3326
    %v3568 = vpop.f32.mrf.mxu0
    %v3569 = vadd.f32 0.0, %v3568
    %v3570 = vpop.f32.mrf.mxu0
    %v3571 = vadd.f32 0.0, %v3570
    %3572 = vmatmul.bf16.gmra.mxu0 %v3327
    %v3573 = vpop.f32.mrf.mxu0
    %v3574 = vadd.f32 0.0, %v3573
    %v3575 = vpop.f32.mrf.mxu0
    %v3576 = vadd.f32 0.0, %v3575
    %3577 = vmatmul.bf16.gmra.mxu0 %v3328
    %v3578 = vpop.f32.mrf.mxu0
    %v3579 = vadd.f32 0.0, %v3578
    %v3580 = vpop.f32.mrf.mxu0
    %v3581 = vadd.f32 0.0, %v3580
    %3582 = vmatmul.bf16.gmra.mxu0 %v3329
    %v3583 = vpop.f32.mrf.mxu0
    %v3584 = vadd.f32 0.0, %v3583
    %v3585 = vpop.f32.mrf.mxu0
    %v3586 = vadd.f32 0.0, %v3585
    %3587 = vmatmul.bf16.gmra.mxu0 %v3330
    %v3588 = vpop.f32.mrf.mxu0
    %v3589 = vadd.f32 0.0, %v3588
    %v3590 = vpop.f32.mrf.mxu0
    %v3591 = vadd.f32 0.0, %v3590
    %3592 = vmatmul.bf16.gmra.mxu0 %v3331
    %v3593 = vpop.f32.mrf.mxu0
    %v3594 = vadd.f32 0.0, %v3593
    %v3595 = vpop.f32.mrf.mxu0
    %v3596 = vadd.f32 0.0, %v3595
    %3597 = vmatmul.bf16.gmra.mxu0 %v3332
    %v3598 = vpop.f32.mrf.mxu0
    %v3599 = vadd.f32 0.0, %v3598
    %v3600 = vpop.f32.mrf.mxu0
    %v3601 = vadd.f32 0.0, %v3600
    %3602 = vmatmul.bf16.gmra.mxu0 %v3333
    %v3603 = vpop.f32.mrf.mxu0
    %v3604 = vadd.f32 0.0, %v3603
    %v3605 = vpop.f32.mrf.mxu0
    %v3606 = vadd.f32 0.0, %v3605
    %3607 = vdwg.mxu0
    %v3608 = vadd.f32 %v2741, %v3440
    %v3609 = vadd.f32 %v2919, %v3529
    %v3610 = vadd.f32 %v2743, %v3442
    %v3611 = vadd.f32 %v2921, %v3531
    %v3612 = vadd.f32 %v2746, %v3445
    %v3613 = vadd.f32 %v2924, %v3534
    %v3614 = vadd.f32 %v2748, %v3447
    %v3615 = vadd.f32 %v2926, %v3536
    %v3616 = vadd.f32 %v2751, %v3450
    %v3617 = vadd.f32 %v2929, %v3539
    %v3618 = vadd.f32 %v2753, %v3452
    %v3619 = vadd.f32 %v2931, %v3541
    %v3620 = vadd.f32 %v2756, %v3455
    %v3621 = vadd.f32 %v2934, %v3544
    %v3622 = vadd.f32 %v2758, %v3457
    %v3623 = vadd.f32 %v2936, %v3546
    %v3624 = vadd.f32 %v2761, %v3460
    %v3625 = vadd.f32 %v2939, %v3549
    %v3626 = vadd.f32 %v2763, %v3462
    %v3627 = vadd.f32 %v2941, %v3551
    %v3628 = vadd.f32 %v2766, %v3465
    %v3629 = vadd.f32 %v2944, %v3554
    %v3630 = vadd.f32 %v2768, %v3467
    %v3631 = vadd.f32 %v2946, %v3556
    %v3632 = vadd.f32 %v2771, %v3470
    %v3633 = vadd.f32 %v2949, %v3559
    %v3634 = vadd.f32 %v2773, %v3472
    %v3635 = vadd.f32 %v2951, %v3561
    %v3636 = vadd.f32 %v2776, %v3475
    %v3637 = vadd.f32 %v2954, %v3564
    %v3638 = vadd.f32 %v2778, %v3477
    %v3639 = vadd.f32 %v2956, %v3566
    %v3640 = vadd.f32 %v2781, %v3480
    %v3641 = vadd.f32 %v2959, %v3569
    %v3642 = vadd.f32 %v2783, %v3482
    %v3643 = vadd.f32 %v2961, %v3571
    %v3644 = vadd.f32 %v2786, %v3485
    %v3645 = vadd.f32 %v2964, %v3574
    %v3646 = vadd.f32 %v2788, %v3487
    %v3647 = vadd.f32 %v2966, %v3576
    %v3648 = vadd.f32 %v2791, %v3490
    %v3649 = vadd.f32 %v2969, %v3579
    %v3650 = vadd.f32 %v2793, %v3492
    %v3651 = vadd.f32 %v2971, %v3581
    %v3652 = vadd.f32 %v2796, %v3495
    %v3653 = vadd.f32 %v2974, %v3584
    %v3654 = vadd.f32 %v2798, %v3497
    %v3655 = vadd.f32 %v2976, %v3586
    %v3656 = vadd.f32 %v2801, %v3500
    %v3657 = vadd.f32 %v2979, %v3589
    %v3658 = vadd.f32 %v2803, %v3502
    %v3659 = vadd.f32 %v2981, %v3591
    %v3660 = vadd.f32 %v2806, %v3505
    %v3661 = vadd.f32 %v2984, %v3594
    %v3662 = vadd.f32 %v2808, %v3507
    %v3663 = vadd.f32 %v2986, %v3596
    %v3664 = vadd.f32 %v2811, %v3510
    %v3665 = vadd.f32 %v2989, %v3599
    %v3666 = vadd.f32 %v2813, %v3512
    %v3667 = vadd.f32 %v2991, %v3601
    %v3668 = vadd.f32 %v2816, %v3515
    %v3669 = vadd.f32 %v2994, %v3604
    %v3670 = vadd.f32 %v2818, %v3517
    %v3671 = vadd.f32 %v2996, %v3606
    %v3672 = vld [vmem:[%s4] sm:$0x3]
    %v3674 = vperm.slane %v3672, 0
    %v3675 = vperm.slane %v3672, 1
    %v3678 = vadd.f32 %v3608, %v3674
    %v3679 = vadd.f32 %v3609, %v3675
    %v3680 = vadd.f32 %v3610, %v3674
    %v3681 = vadd.f32 %v3611, %v3675
    %v3682 = vadd.f32 %v3612, %v3674
    %v3683 = vadd.f32 %v3613, %v3675
    %v3684 = vadd.f32 %v3614, %v3674
    %v3685 = vadd.f32 %v3615, %v3675
    %v3686 = vadd.f32 %v3616, %v3674
    %v3687 = vadd.f32 %v3617, %v3675
    %v3688 = vadd.f32 %v3618, %v3674
    %v3689 = vadd.f32 %v3619, %v3675
    %v3690 = vadd.f32 %v3620, %v3674
    %v3691 = vadd.f32 %v3621, %v3675
    %v3692 = vadd.f32 %v3622, %v3674
    %v3693 = vadd.f32 %v3623, %v3675
    %v3694 = vadd.f32 %v3624, %v3674
    %v3695 = vadd.f32 %v3625, %v3675
    %v3696 = vadd.f32 %v3626, %v3674
    %v3697 = vadd.f32 %v3627, %v3675
    %v3698 = vadd.f32 %v3628, %v3674
    %v3699 = vadd.f32 %v3629, %v3675
    %v3700 = vadd.f32 %v3630, %v3674
    %v3701 = vadd.f32 %v3631, %v3675
    %v3702 = vadd.f32 %v3632, %v3674
    %v3703 = vadd.f32 %v3633, %v3675
    %v3704 = vadd.f32 %v3634, %v3674
    %v3705 = vadd.f32 %v3635, %v3675
    %v3706 = vadd.f32 %v3636, %v3674
    %v3707 = vadd.f32 %v3637, %v3675
    %v3708 = vadd.f32 %v3638, %v3674
    %v3709 = vadd.f32 %v3639, %v3675
    %v3710 = vadd.f32 %v3640, %v3674
    %v3711 = vadd.f32 %v3641, %v3675
    %v3712 = vadd.f32 %v3642, %v3674
    %v3713 = vadd.f32 %v3643, %v3675
    %v3714 = vadd.f32 %v3644, %v3674
    %v3715 = vadd.f32 %v3645, %v3675
    %v3716 = vadd.f32 %v3646, %v3674
    %v3717 = vadd.f32 %v3647, %v3675
    %v3718 = vadd.f32 %v3648, %v3674
    %v3719 = vadd.f32 %v3649, %v3675
    %v3720 = vadd.f32 %v3650, %v3674
    %v3721 = vadd.f32 %v3651, %v3675
    %v3722 = vadd.f32 %v3652, %v3674
    %v3723 = vadd.f32 %v3653, %v3675
    %v3724 = vadd.f32 %v3654, %v3674
    %v3725 = vadd.f32 %v3655, %v3675
    %v3726 = vadd.f32 %v3656, %v3674
    %v3727 = vadd.f32 %v3657, %v3675
    %v3728 = vadd.f32 %v3658, %v3674
    %v3729 = vadd.f32 %v3659, %v3675
    %v3730 = vadd.f32 %v3660, %v3674
    %v3731 = vadd.f32 %v3661, %v3675
    %v3732 = vadd.f32 %v3662, %v3674
    %v3733 = vadd.f32 %v3663, %v3675
    %v3734 = vadd.f32 %v3664, %v3674
    %v3735 = vadd.f32 %v3665, %v3675
    %v3736 = vadd.f32 %v3666, %v3674
    %v3737 = vadd.f32 %v3667, %v3675
    %v3738 = vadd.f32 %v3668, %v3674
    %v3739 = vadd.f32 %v3669, %v3675
    %v3740 = vadd.f32 %v3670, %v3674
    %v3741 = vadd.f32 %v3671, %v3675
    %v3742 = vmax.f32 %v3678, 0.0
    %v3743 = vmax.f32 %v3679, 0.0
    %v3744 = vmax.f32 %v3680, 0.0
    %v3745 = vmax.f32 %v3681, 0.0
    %v3746 = vmax.f32 %v3682, 0.0
    %v3747 = vmax.f32 %v3683, 0.0
    %v3748 = vmax.f32 %v3684, 0.0
    %v3749 = vmax.f32 %v3685, 0.0
    %v3750 = vmax.f32 %v3686, 0.0
    %v3751 = vmax.f32 %v3687, 0.0
    %v3752 = vmax.f32 %v3688, 0.0
    %v3753 = vmax.f32 %v3689, 0.0
    %v3754 = vmax.f32 %v3690, 0.0
    %v3755 = vmax.f32 %v3691, 0.0
    %v3756 = vmax.f32 %v3692, 0.0
    %v3757 = vmax.f32 %v3693, 0.0
    %v3758 = vmax.f32 %v3694, 0.0
    %v3759 = vmax.f32 %v3695, 0.0
    %v3760 = vmax.f32 %v3696, 0.0
    %v3761 = vmax.f32 %v3697, 0.0
    %v3762 = vmax.f32 %v3698, 0.0
    %v3763 = vmax.f32 %v3699, 0.0
    %v3764 = vmax.f32 %v3700, 0.0
    %v3765 = vmax.f32 %v3701, 0.0
    %v3766 = vmax.f32 %v3702, 0.0
    %v3767 = vmax.f32 %v3703, 0.0
    %v3768 = vmax.f32 %v3704, 0.0
    %v3769 = vmax.f32 %v3705, 0.0
    %v3770 = vmax.f32 %v3706, 0.0
    %v3771 = vmax.f32 %v3707, 0.0
    %v3772 = vmax.f32 %v3708, 0.0
    %v3773 = vmax.f32 %v3709, 0.0
    %v3774 = vmax.f32 %v3710, 0.0
    %v3775 = vmax.f32 %v3711, 0.0
    %v3776 = vmax.f32 %v3712, 0.0
    %v3777 = vmax.f32 %v3713, 0.0
    %v3778 = vmax.f32 %v3714, 0.0
    %v3779 = vmax.f32 %v3715, 0.0
    %v3780 = vmax.f32 %v3716, 0.0
    %v3781 = vmax.f32 %v3717, 0.0
    %v3782 = vmax.f32 %v3718, 0.0
    %v3783 = vmax.f32 %v3719, 0.0
    %v3784 = vmax.f32 %v3720, 0.0
    %v3785 = vmax.f32 %v3721, 0.0
    %v3786 = vmax.f32 %v3722, 0.0
    %v3787 = vmax.f32 %v3723, 0.0
    %v3788 = vmax.f32 %v3724, 0.0
    %v3789 = vmax.f32 %v3725, 0.0
    %v3790 = vmax.f32 %v3726, 0.0
    %v3791 = vmax.f32 %v3727, 0.0
    %v3792 = vmax.f32 %v3728, 0.0
    %v3793 = vmax.f32 %v3729, 0.0
    %v3794 = vmax.f32 %v3730, 0.0
    %v3795 = vmax.f32 %v3731, 0.0
    %v3796 = vmax.f32 %v3732, 0.0
    %v3797 = vmax.f32 %v3733, 0.0
    %v3798 = vmax.f32 %v3734, 0.0
    %v3799 = vmax.f32 %v3735, 0.0
    %v3800 = vmax.f32 %v3736, 0.0
    %v3801 = vmax.f32 %v3737, 0.0
    %v3802 = vmax.f32 %v3738, 0.0
    %v3803 = vmax.f32 %v3739, 0.0
    %v3804 = vmax.f32 %v3740, 0.0
    %v3805 = vmax.f32 %v3741, 0.0
    %v3806 = vpack.c.bf16 %v3744, %v3742
    %v3807 = vpack.c.bf16 %v3745, %v3743
    %v3808 = vpack.c.bf16 %v3748, %v3746
    %v3809 = vpack.c.bf16 %v3749, %v3747
    %v3810 = vpack.c.bf16 %v3752, %v3750
    %v3811 = vpack.c.bf16 %v3753, %v3751
    %v3812 = vpack.c.bf16 %v3756, %v3754
    %v3813 = vpack.c.bf16 %v3757, %v3755
    %v3814 = vpack.c.bf16 %v3760, %v3758
    %v3815 = vpack.c.bf16 %v3761, %v3759
    %v3816 = vpack.c.bf16 %v3764, %v3762
    %v3817 = vpack.c.bf16 %v3765, %v3763
    %v3818 = vpack.c.bf16 %v3768, %v3766
    %v3819 = vpack.c.bf16 %v3769, %v3767
    %v3820 = vpack.c.bf16 %v3772, %v3770
    %v3821 = vpack.c.bf16 %v3773, %v3771
    %v3822 = vpack.c.bf16 %v3776, %v3774
    %v3823 = vpack.c.bf16 %v3777, %v3775
    %v3824 = vpack.c.bf16 %v3780, %v3778
    %v3825 = vpack.c.bf16 %v3781, %v3779
    %v3826 = vpack.c.bf16 %v3784, %v3782
    %v3827 = vpack.c.bf16 %v3785, %v3783
    %v3828 = vpack.c.bf16 %v3788, %v3786
    %v3829 = vpack.c.bf16 %v3789, %v3787
    %v3830 = vpack.c.bf16 %v3792, %v3790
    %v3831 = vpack.c.bf16 %v3793, %v3791
    %v3832 = vpack.c.bf16 %v3796, %v3794
    %v3833 = vpack.c.bf16 %v3797, %v3795
    %v3834 = vpack.c.bf16 %v3800, %v3798
    %v3835 = vpack.c.bf16 %v3801, %v3799
    %v3836 = vpack.c.bf16 %v3804, %v3802
    %v3837 = vpack.c.bf16 %v3805, %v3803
    %v3838 = vld [vmem:[%s2] sm:$0xf]
    %v3839 = vld [vmem:[%s2 + $0x4] sm:$0xf]
    %v3840 = vld [vmem:[%s2 + $0x8] sm:$0xf]
    %v3841 = vld [vmem:[%s2 + $0xc] sm:$0xf]
    %v3842 = vld [vmem:[%s2 + $0x10] sm:$0xf]
    %v3843 = vld [vmem:[%s2 + $0x14] sm:$0xf]
    %v3844 = vld [vmem:[%s2 + $0x18] sm:$0xf]
    %v3845 = vld [vmem:[%s2 + $0x1c] sm:$0xf]
    %v3846 = vld [vmem:[%s2 + $0x20] sm:$0xf]
    %v3847 = vld [vmem:[%s2 + $0x24] sm:$0xf]
    %v3848 = vld [vmem:[%s2 + $0x28] sm:$0xf]
    %v3849 = vld [vmem:[%s2 + $0x2c] sm:$0xf]
    %v3850 = vld [vmem:[%s2 + $0x30] sm:$0xf]
    %v3851 = vld [vmem:[%s2 + $0x34] sm:$0xf]
    %v3852 = vld [vmem:[%s2 + $0x38] sm:$0xf]
    %v3853 = vld [vmem:[%s2 + $0x3c] sm:$0xf]
    %v3854 = vld [vmem:[%s2 + $0x40] sm:$0xf]
    %v3855 = vld [vmem:[%s2 + $0x44] sm:$0xf]
    %v3856 = vld [vmem:[%s2 + $0x48] sm:$0xf]
    %v3857 = vld [vmem:[%s2 + $0x4c] sm:$0xf]
    %v3858 = vld [vmem:[%s2 + $0x50] sm:$0xf]
    %v3859 = vld [vmem:[%s2 + $0x54] sm:$0xf]
    %v3860 = vld [vmem:[%s2 + $0x58] sm:$0xf]
    %v3861 = vld [vmem:[%s2 + $0x5c] sm:$0xf]
    %v3862 = vld [vmem:[%s2 + $0x60] sm:$0xf]
    %v3863 = vld [vmem:[%s2 + $0x64] sm:$0xf]
    %v3864 = vld [vmem:[%s2 + $0x68] sm:$0xf]
    %v3865 = vld [vmem:[%s2 + $0x6c] sm:$0xf]
    %v3866 = vld [vmem:[%s2 + $0x70] sm:$0xf]
    %v3867 = vld [vmem:[%s2 + $0x74] sm:$0xf]
    %v3868 = vld [vmem:[%s2 + $0x78] sm:$0xf]
    %v3869 = vld [vmem:[%s2 + $0x7c] sm:$0xf]
    %v3870 = vld [vmem:[%s4 + $0x2] sm:$0x1]
    %v3872 = vperm.slane %v3870, 0
    %v3906 = vunpack.c.l.b16 %v3838
    %v3907 = vunpack.c.l.b16 %v3839
    %v3908 = vunpack.c.l.b16 %v3840
    %v3909 = vunpack.c.l.b16 %v3841
    %v3910 = vunpack.c.l.b16 %v3842
    %v3911 = vunpack.c.l.b16 %v3843
    %v3912 = vunpack.c.l.b16 %v3844
    %v3913 = vunpack.c.l.b16 %v3845
    %v3914 = vunpack.c.l.b16 %v3846
    %v3915 = vunpack.c.l.b16 %v3847
    %v3916 = vunpack.c.l.b16 %v3848
    %v3917 = vunpack.c.l.b16 %v3849
    %v3918 = vunpack.c.l.b16 %v3850
    %v3919 = vunpack.c.l.b16 %v3851
    %v3920 = vunpack.c.l.b16 %v3852
    %v3921 = vunpack.c.l.b16 %v3853
    %v3922 = vunpack.c.l.b16 %v3854
    %v3923 = vunpack.c.l.b16 %v3855
    %v3924 = vunpack.c.l.b16 %v3856
    %v3925 = vunpack.c.l.b16 %v3857
    %v3926 = vunpack.c.l.b16 %v3858
    %v3927 = vunpack.c.l.b16 %v3859
    %v3928 = vunpack.c.l.b16 %v3860
    %v3929 = vunpack.c.l.b16 %v3861
    %v3930 = vunpack.c.l.b16 %v3862
    %v3931 = vunpack.c.l.b16 %v3863
    %v3932 = vunpack.c.l.b16 %v3864
    %v3933 = vunpack.c.l.b16 %v3865
    %v3934 = vunpack.c.l.b16 %v3866
    %v3935 = vunpack.c.l.b16 %v3867
    %v3936 = vunpack.c.l.b16 %v3868
    %v3937 = vunpack.c.l.b16 %v3869
    %v3938 = vpack.c.b16 %v3907, %v3906
    %v3939 = vpack.c.b16 %v3909, %v3908
    %v3940 = vpack.c.b16 %v3911, %v3910
    %v3941 = vpack.c.b16 %v3913, %v3912
    %v3942 = vpack.c.b16 %v3915, %v3914
    %v3943 = vpack.c.b16 %v3917, %v3916
    %v3944 = vpack.c.b16 %v3919, %v3918
    %v3945 = vpack.c.b16 %v3921, %v3920
    %v3946 = vpack.c.b16 %v3923, %v3922
    %v3947 = vpack.c.b16 %v3925, %v3924
    %v3948 = vpack.c.b16 %v3927, %v3926
    %v3949 = vpack.c.b16 %v3929, %v3928
    %v3950 = vpack.c.b16 %v3931, %v3930
    %v3951 = vpack.c.b16 %v3933, %v3932
    %v3952 = vpack.c.b16 %v3935, %v3934
    %v3953 = vpack.c.b16 %v3937, %v3936
    %3970 = vmatpush.bf16.msra.mxu0 %v3945
    %3971 = vmatpush.bf16.msra.mxu0 %v3944
    %3972 = vmatpush.bf16.msra.mxu0 %v3943
    %3973 = vmatpush.bf16.msra.mxu0 %v3942
    %3974 = vmatpush.bf16.msra.mxu0 %v3941
    %3975 = vmatpush.bf16.msra.mxu0 %v3940
    %3976 = vmatpush.bf16.msra.mxu0 %v3939
    %3977 = vmatpush.bf16.msra.mxu0 %v3938
    %3978 = vmatmul.bf16.gmra.mxu0 %v3806
    %v3979 = vpop.f32.mrf.mxu0
    %v3980 = vadd.f32 %v3872, %v3979
    %v3981 = vpop.f32.mrf.mxu0
    %v3982 = vadd.f32 %v3872, %v3981
    %3983 = vmatmul.bf16.gmra.mxu0 %v3808
    %v3984 = vpop.f32.mrf.mxu0
    %v3985 = vadd.f32 %v3872, %v3984
    %v3986 = vpop.f32.mrf.mxu0
    %v3987 = vadd.f32 %v3872, %v3986
    %3988 = vmatmul.bf16.gmra.mxu0 %v3810
    %v3989 = vpop.f32.mrf.mxu0
    %v3990 = vadd.f32 %v3872, %v3989
    %v3991 = vpop.f32.mrf.mxu0
    %v3992 = vadd.f32 %v3872, %v3991
    %3993 = vmatmul.bf16.gmra.mxu0 %v3812
    %v3994 = vpop.f32.mrf.mxu0
    %v3995 = vadd.f32 %v3872, %v3994
    %v3996 = vpop.f32.mrf.mxu0
    %v3997 = vadd.f32 %v3872, %v3996
    %3998 = vmatmul.bf16.gmra.mxu0 %v3814
    %v3999 = vpop.f32.mrf.mxu0
    %v4000 = vadd.f32 %v3872, %v3999
    %v4001 = vpop.f32.mrf.mxu0
    %v4002 = vadd.f32 %v3872, %v4001
    %4003 = vmatmul.bf16.gmra.mxu0 %v3816
    %v4004 = vpop.f32.mrf.mxu0
    %v4005 = vadd.f32 %v3872, %v4004
    %v4006 = vpop.f32.mrf.mxu0
    %v4007 = vadd.f32 %v3872, %v4006
    %4008 = vmatmul.bf16.gmra.mxu0 %v3818
    %v4009 = vpop.f32.mrf.mxu0
    %v4010 = vadd.f32 %v3872, %v4009
    %v4011 = vpop.f32.mrf.mxu0
    %v4012 = vadd.f32 %v3872, %v4011
    %4013 = vmatmul.bf16.gmra.mxu0 %v3820
    %v4014 = vpop.f32.mrf.mxu0
    %v4015 = vadd.f32 %v3872, %v4014
    %v4016 = vpop.f32.mrf.mxu0
    %v4017 = vadd.f32 %v3872, %v4016
    %4018 = vmatmul.bf16.gmra.mxu0 %v3822
    %v4019 = vpop.f32.mrf.mxu0
    %v4020 = vadd.f32 %v3872, %v4019
    %v4021 = vpop.f32.mrf.mxu0
    %v4022 = vadd.f32 %v3872, %v4021
    %4023 = vmatmul.bf16.gmra.mxu0 %v3824
    %v4024 = vpop.f32.mrf.mxu0
    %v4025 = vadd.f32 %v3872, %v4024
    %v4026 = vpop.f32.mrf.mxu0
    %v4027 = vadd.f32 %v3872, %v4026
    %4028 = vmatmul.bf16.gmra.mxu0 %v3826
    %v4029 = vpop.f32.mrf.mxu0
    %v4030 = vadd.f32 %v3872, %v4029
    %v4031 = vpop.f32.mrf.mxu0
    %v4032 = vadd.f32 %v3872, %v4031
    %4033 = vmatmul.bf16.gmra.mxu0 %v3828
    %v4034 = vpop.f32.mrf.mxu0
    %v4035 = vadd.f32 %v3872, %v4034
    %v4036 = vpop.f32.mrf.mxu0
    %v4037 = vadd.f32 %v3872, %v4036
    %4038 = vmatmul.bf16.gmra.mxu0 %v3830
    %v4039 = vpop.f32.mrf.mxu0
    %v4040 = vadd.f32 %v3872, %v4039
    %v4041 = vpop.f32.mrf.mxu0
    %v4042 = vadd.f32 %v3872, %v4041
    %4043 = vmatmul.bf16.gmra.mxu0 %v3832
    %v4044 = vpop.f32.mrf.mxu0
    %v4045 = vadd.f32 %v3872, %v4044
    %v4046 = vpop.f32.mrf.mxu0
    %v4047 = vadd.f32 %v3872, %v4046
    %4048 = vmatmul.bf16.gmra.mxu0 %v3834
    %v4049 = vpop.f32.mrf.mxu0
    %v4050 = vadd.f32 %v3872, %v4049
    %v4051 = vpop.f32.mrf.mxu0
    %v4052 = vadd.f32 %v3872, %v4051
    %4053 = vmatmul.bf16.gmra.mxu0 %v3836
    %v4054 = vpop.f32.mrf.mxu0
    %v4055 = vadd.f32 %v3872, %v4054
    %v4056 = vpop.f32.mrf.mxu0
    %v4057 = vadd.f32 %v3872, %v4056
    %4058 = vdwg.mxu0
    %4059 = vmatpush.bf16.msra.mxu0 %v3953
    %4060 = vmatpush.bf16.msra.mxu0 %v3952
    %4061 = vmatpush.bf16.msra.mxu0 %v3951
    %4062 = vmatpush.bf16.msra.mxu0 %v3950
    %4063 = vmatpush.bf16.msra.mxu0 %v3949
    %4064 = vmatpush.bf16.msra.mxu0 %v3948
    %4065 = vmatpush.bf16.msra.mxu0 %v3947
    %4066 = vmatpush.bf16.msra.mxu0 %v3946
    %4067 = vmatmul.bf16.gmra.mxu0 %v3807
    %v4068 = vpop.f32.mrf.mxu0
    %v4069 = vadd.f32 %v3980, %v4068
    %v4070 = vpop.f32.mrf.mxu0
    %v4071 = vadd.f32 %v3982, %v4070
    %4072 = vmatmul.bf16.gmra.mxu0 %v3809
    %v4073 = vpop.f32.mrf.mxu0
    %v4074 = vadd.f32 %v3985, %v4073
    %v4075 = vpop.f32.mrf.mxu0
    %v4076 = vadd.f32 %v3987, %v4075
    %4077 = vmatmul.bf16.gmra.mxu0 %v3811
    %v4078 = vpop.f32.mrf.mxu0
    %v4079 = vadd.f32 %v3990, %v4078
    %v4080 = vpop.f32.mrf.mxu0
    %v4081 = vadd.f32 %v3992, %v4080
    %4082 = vmatmul.bf16.gmra.mxu0 %v3813
    %v4083 = vpop.f32.mrf.mxu0
    %v4084 = vadd.f32 %v3995, %v4083
    %v4085 = vpop.f32.mrf.mxu0
    %v4086 = vadd.f32 %v3997, %v4085
    %4087 = vmatmul.bf16.gmra.mxu0 %v3815
    %v4088 = vpop.f32.mrf.mxu0
    %v4089 = vadd.f32 %v4000, %v4088
    %v4090 = vpop.f32.mrf.mxu0
    %v4091 = vadd.f32 %v4002, %v4090
    %4092 = vmatmul.bf16.gmra.mxu0 %v3817
    %v4093 = vpop.f32.mrf.mxu0
    %v4094 = vadd.f32 %v4005, %v4093
    %v4095 = vpop.f32.mrf.mxu0
    %v4096 = vadd.f32 %v4007, %v4095
    %4097 = vmatmul.bf16.gmra.mxu0 %v3819
    %v4098 = vpop.f32.mrf.mxu0
    %v4099 = vadd.f32 %v4010, %v4098
    %v4100 = vpop.f32.mrf.mxu0
    %v4101 = vadd.f32 %v4012, %v4100
    %4102 = vmatmul.bf16.gmra.mxu0 %v3821
    %v4103 = vpop.f32.mrf.mxu0
    %v4104 = vadd.f32 %v4015, %v4103
    %v4105 = vpop.f32.mrf.mxu0
    %v4106 = vadd.f32 %v4017, %v4105
    %4107 = vmatmul.bf16.gmra.mxu0 %v3823
    %v4108 = vpop.f32.mrf.mxu0
    %v4109 = vadd.f32 %v4020, %v4108
    %v4110 = vpop.f32.mrf.mxu0
    %v4111 = vadd.f32 %v4022, %v4110
    %4112 = vmatmul.bf16.gmra.mxu0 %v3825
    %v4113 = vpop.f32.mrf.mxu0
    %v4114 = vadd.f32 %v4025, %v4113
    %v4115 = vpop.f32.mrf.mxu0
    %v4116 = vadd.f32 %v4027, %v4115
    %4117 = vmatmul.bf16.gmra.mxu0 %v3827
    %v4118 = vpop.f32.mrf.mxu0
    %v4119 = vadd.f32 %v4030, %v4118
    %v4120 = vpop.f32.mrf.mxu0
    %v4121 = vadd.f32 %v4032, %v4120
    %4122 = vmatmul.bf16.gmra.mxu0 %v3829
    %v4123 = vpop.f32.mrf.mxu0
    %v4124 = vadd.f32 %v4035, %v4123
    %v4125 = vpop.f32.mrf.mxu0
    %v4126 = vadd.f32 %v4037, %v4125
    %4127 = vmatmul.bf16.gmra.mxu0 %v3831
    %v4128 = vpop.f32.mrf.mxu0
    %v4129 = vadd.f32 %v4040, %v4128
    %v4130 = vpop.f32.mrf.mxu0
    %v4131 = vadd.f32 %v4042, %v4130
    %4132 = vmatmul.bf16.gmra.mxu0 %v3833
    %v4133 = vpop.f32.mrf.mxu0
    %v4134 = vadd.f32 %v4045, %v4133
    %v4135 = vpop.f32.mrf.mxu0
    %v4136 = vadd.f32 %v4047, %v4135
    %4137 = vmatmul.bf16.gmra.mxu0 %v3835
    %v4138 = vpop.f32.mrf.mxu0
    %v4139 = vadd.f32 %v4050, %v4138
    %v4140 = vpop.f32.mrf.mxu0
    %v4141 = vadd.f32 %v4052, %v4140
    %4142 = vmatmul.bf16.gmra.mxu0 %v3837
    %v4143 = vpop.f32.mrf.mxu0
    %v4144 = vadd.f32 %v4055, %v4143
    %v4145 = vpop.f32.mrf.mxu0
    %v4146 = vadd.f32 %v4057, %v4145
    %4147 = vdwg.mxu0
    %v4148 = vmax.f32 %v4069, 0.0
    %v4149 = vmax.f32 %v4071, 0.0
    %v4150 = vmax.f32 %v4074, 0.0
    %v4151 = vmax.f32 %v4076, 0.0
    %v4152 = vmax.f32 %v4079, 0.0
    %v4153 = vmax.f32 %v4081, 0.0
    %v4154 = vmax.f32 %v4084, 0.0
    %v4155 = vmax.f32 %v4086, 0.0
    %v4156 = vmax.f32 %v4089, 0.0
    %v4157 = vmax.f32 %v4091, 0.0
    %v4158 = vmax.f32 %v4094, 0.0
    %v4159 = vmax.f32 %v4096, 0.0
    %v4160 = vmax.f32 %v4099, 0.0
    %v4161 = vmax.f32 %v4101, 0.0
    %v4162 = vmax.f32 %v4104, 0.0
    %v4163 = vmax.f32 %v4106, 0.0
    %v4164 = vmax.f32 %v4109, 0.0
    %v4165 = vmax.f32 %v4111, 0.0
    %v4166 = vmax.f32 %v4114, 0.0
    %v4167 = vmax.f32 %v4116, 0.0
    %v4168 = vmax.f32 %v4119, 0.0
    %v4169 = vmax.f32 %v4121, 0.0
    %v4170 = vmax.f32 %v4124, 0.0
    %v4171 = vmax.f32 %v4126, 0.0
    %v4172 = vmax.f32 %v4129, 0.0
    %v4173 = vmax.f32 %v4131, 0.0
    %v4174 = vmax.f32 %v4134, 0.0
    %v4175 = vmax.f32 %v4136, 0.0
    %v4176 = vmax.f32 %v4139, 0.0
    %v4177 = vmax.f32 %v4141, 0.0
    %v4178 = vmax.f32 %v4144, 0.0
    %v4179 = vmax.f32 %v4146, 0.0
    %v4180 = vpack.c.bf16 %v4149, %v4148
    %v4181 = vpack.c.bf16 %v4151, %v4150
    %v4182 = vpack.c.bf16 %v4153, %v4152
    %v4183 = vpack.c.bf16 %v4155, %v4154
    %v4184 = vpack.c.bf16 %v4157, %v4156
    %v4185 = vpack.c.bf16 %v4159, %v4158
    %v4186 = vpack.c.bf16 %v4161, %v4160
    %v4187 = vpack.c.bf16 %v4163, %v4162
    %v4188 = vpack.c.bf16 %v4165, %v4164
    %v4189 = vpack.c.bf16 %v4167, %v4166
    %v4190 = vpack.c.bf16 %v4169, %v4168
    %v4191 = vpack.c.bf16 %v4171, %v4170
    %v4192 = vpack.c.bf16 %v4173, %v4172
    %v4193 = vpack.c.bf16 %v4175, %v4174
    %v4194 = vpack.c.bf16 %v4177, %v4176
    %v4195 = vpack.c.bf16 %v4179, %v4178
    %v4196 = vld [vmem:[%s3] sm:$0xf]
    %v4197 = vld [vmem:[%s3 + $0x4] sm:$0xf]
    %v4198 = vld [vmem:[%s3 + $0x8] sm:$0xf]
    %v4199 = vld [vmem:[%s3 + $0xc] sm:$0xf]
    %v4200 = vld [vmem:[%s3 + $0x10] sm:$0xf]
    %v4201 = vld [vmem:[%s3 + $0x14] sm:$0xf]
    %v4202 = vld [vmem:[%s3 + $0x18] sm:$0xf]
    %v4203 = vld [vmem:[%s3 + $0x1c] sm:$0xf]
    %v4204 = vld [vmem:[%s3 + $0x20] sm:$0xf]
    %v4205 = vld [vmem:[%s3 + $0x24] sm:$0xf]
    %v4206 = vld [vmem:[%s3 + $0x28] sm:$0xf]
    %v4207 = vld [vmem:[%s3 + $0x2c] sm:$0xf]
    %v4208 = vld [vmem:[%s3 + $0x30] sm:$0xf]
    %v4209 = vld [vmem:[%s3 + $0x34] sm:$0xf]
    %v4210 = vld [vmem:[%s3 + $0x38] sm:$0xf]
    %v4211 = vld [vmem:[%s3 + $0x3c] sm:$0xf]
    %v4212 = vld [vmem:[%s4 + $0x3] sm:$0x1]
    %v4214 = vperm.slane %v4212, 0
    %v4232 = vunpack.c.l.b16 %v4196
    %v4233 = vunpack.c.l.b16 %v4197
    %v4234 = vunpack.c.l.b16 %v4198
    %v4235 = vunpack.c.l.b16 %v4199
    %v4236 = vunpack.c.l.b16 %v4200
    %v4237 = vunpack.c.l.b16 %v4201
    %v4238 = vunpack.c.l.b16 %v4202
    %v4239 = vunpack.c.l.b16 %v4203
    %v4240 = vunpack.c.l.b16 %v4204
    %v4241 = vunpack.c.l.b16 %v4205
    %v4242 = vunpack.c.l.b16 %v4206
    %v4243 = vunpack.c.l.b16 %v4207
    %v4244 = vunpack.c.l.b16 %v4208
    %v4245 = vunpack.c.l.b16 %v4209
    %v4246 = vunpack.c.l.b16 %v4210
    %v4247 = vunpack.c.l.b16 %v4211
    %v4248 = vpack.c.b16 %v4233, %v4232
    %v4249 = vpack.c.b16 %v4235, %v4234
    %v4250 = vpack.c.b16 %v4237, %v4236
    %v4251 = vpack.c.b16 %v4239, %v4238
    %v4252 = vpack.c.b16 %v4241, %v4240
    %v4253 = vpack.c.b16 %v4243, %v4242
    %v4254 = vpack.c.b16 %v4245, %v4244
    %v4255 = vpack.c.b16 %v4247, %v4246
    %4264 = vmatpush.bf16.msra.mxu0 %v4255
    %4265 = vmatpush.bf16.msra.mxu0 %v4254
    %4266 = vmatpush.bf16.msra.mxu0 %v4253
    %4267 = vmatpush.bf16.msra.mxu0 %v4252
    %4268 = vmatpush.bf16.msra.mxu0 %v4251
    %4269 = vmatpush.bf16.msra.mxu0 %v4250
    %4270 = vmatpush.bf16.msra.mxu0 %v4249
    %4271 = vmatpush.bf16.msra.mxu0 %v4248
    %4272 = vmatmul.bf16.gmra.mxu0 %v4180
    %v4273 = vpop.f32.mrf.mxu0
    %v4274 = vadd.f32 %v4214, %v4273
    %v4275 = vpop.f32.mrf.mxu0
    %v4276 = vadd.f32 %v4214, %v4275
    %4277 = vmatmul.bf16.gmra.mxu0 %v4181
    %v4278 = vpop.f32.mrf.mxu0
    %v4279 = vadd.f32 %v4214, %v4278
    %v4280 = vpop.f32.mrf.mxu0
    %v4281 = vadd.f32 %v4214, %v4280
    %4282 = vmatmul.bf16.gmra.mxu0 %v4182
    %v4283 = vpop.f32.mrf.mxu0
    %v4284 = vadd.f32 %v4214, %v4283
    %v4285 = vpop.f32.mrf.mxu0
    %v4286 = vadd.f32 %v4214, %v4285
    %4287 = vmatmul.bf16.gmra.mxu0 %v4183
    %v4288 = vpop.f32.mrf.mxu0
    %v4289 = vadd.f32 %v4214, %v4288
    %v4290 = vpop.f32.mrf.mxu0
    %v4291 = vadd.f32 %v4214, %v4290
    %4292 = vmatmul.bf16.gmra.mxu0 %v4184
    %v4293 = vpop.f32.mrf.mxu0
    %v4294 = vadd.f32 %v4214, %v4293
    %v4295 = vpop.f32.mrf.mxu0
    %v4296 = vadd.f32 %v4214, %v4295
    %4297 = vmatmul.bf16.gmra.mxu0 %v4185
    %v4298 = vpop.f32.mrf.mxu0
    %v4299 = vadd.f32 %v4214, %v4298
    %v4300 = vpop.f32.mrf.mxu0
    %v4301 = vadd.f32 %v4214, %v4300
    %4302 = vmatmul.bf16.gmra.mxu0 %v4186
    %v4303 = vpop.f32.mrf.mxu0
    %v4304 = vadd.f32 %v4214, %v4303
    %v4305 = vpop.f32.mrf.mxu0
    %v4306 = vadd.f32 %v4214, %v4305
    %4307 = vmatmul.bf16.gmra.mxu0 %v4187
    %v4308 = vpop.f32.mrf.mxu0
    %v4309 = vadd.f32 %v4214, %v4308
    %v4310 = vpop.f32.mrf.mxu0
    %v4311 = vadd.f32 %v4214, %v4310
    %4312 = vmatmul.bf16.gmra.mxu0 %v4188
    %v4313 = vpop.f32.mrf.mxu0
    %v4314 = vadd.f32 %v4214, %v4313
    %v4315 = vpop.f32.mrf.mxu0
    %v4316 = vadd.f32 %v4214, %v4315
    %4317 = vmatmul.bf16.gmra.mxu0 %v4189
    %v4318 = vpop.f32.mrf.mxu0
    %v4319 = vadd.f32 %v4214, %v4318
    %v4320 = vpop.f32.mrf.mxu0
    %v4321 = vadd.f32 %v4214, %v4320
    %4322 = vmatmul.bf16.gmra.mxu0 %v4190
    %v4323 = vpop.f32.mrf.mxu0
    %v4324 = vadd.f32 %v4214, %v4323
    %v4325 = vpop.f32.mrf.mxu0
    %v4326 = vadd.f32 %v4214, %v4325
    %4327 = vmatmul.bf16.gmra.mxu0 %v4191
    %v4328 = vpop.f32.mrf.mxu0
    %v4329 = vadd.f32 %v4214, %v4328
    %v4330 = vpop.f32.mrf.mxu0
    %v4331 = vadd.f32 %v4214, %v4330
    %4332 = vmatmul.bf16.gmra.mxu0 %v4192
    %v4333 = vpop.f32.mrf.mxu0
    %v4334 = vadd.f32 %v4214, %v4333
    %v4335 = vpop.f32.mrf.mxu0
    %v4336 = vadd.f32 %v4214, %v4335
    %4337 = vmatmul.bf16.gmra.mxu0 %v4193
    %v4338 = vpop.f32.mrf.mxu0
    %v4339 = vadd.f32 %v4214, %v4338
    %v4340 = vpop.f32.mrf.mxu0
    %v4341 = vadd.f32 %v4214, %v4340
    %4342 = vmatmul.bf16.gmra.mxu0 %v4194
    %v4343 = vpop.f32.mrf.mxu0
    %v4344 = vadd.f32 %v4214, %v4343
    %v4345 = vpop.f32.mrf.mxu0
    %v4346 = vadd.f32 %v4214, %v4345
    %4347 = vmatmul.bf16.gmra.mxu0 %v4195
    %v4348 = vpop.f32.mrf.mxu0
    %v4349 = vadd.f32 %v4214, %v4348
    %v4350 = vpop.f32.mrf.mxu0
    %v4351 = vadd.f32 %v4214, %v4350
    %4352 = vdwg.mxu0
    %4353 = vst [vmem:[#allocation5] sm:$0xff] %v4274
    %4354 = vst [vmem:[#allocation5 + $0x8] sm:$0xff] %v4276
    %4355 = vst [vmem:[#allocation5 + $0x10] sm:$0xff] %v4279
    %4356 = vst [vmem:[#allocation5 + $0x18] sm:$0xff] %v4281
    %4357 = vst [vmem:[#allocation5 + $0x20] sm:$0xff] %v4284
    %4358 = vst [vmem:[#allocation5 + $0x28] sm:$0xff] %v4286
    %4359 = vst [vmem:[#allocation5 + $0x30] sm:$0xff] %v4289
    %4360 = vst [vmem:[#allocation5 + $0x38] sm:$0xff] %v4291
    %4361 = vst [vmem:[#allocation5 + $0x40] sm:$0xff] %v4294
    %4362 = vst [vmem:[#allocation5 + $0x48] sm:$0xff] %v4296
    %4363 = vst [vmem:[#allocation5 + $0x50] sm:$0xff] %v4299
    %4364 = vst [vmem:[#allocation5 + $0x58] sm:$0xff] %v4301
    %4365 = vst [vmem:[#allocation5 + $0x60] sm:$0xff] %v4304
    %4366 = vst [vmem:[#allocation5 + $0x68] sm:$0xff] %v4306
    %4367 = vst [vmem:[#allocation5 + $0x70] sm:$0xff] %v4309
    %4368 = vst [vmem:[#allocation5 + $0x78] sm:$0xff] %v4311
    %4369 = vst [vmem:[#allocation5 + $0x80] sm:$0xff] %v4314
    %4370 = vst [vmem:[#allocation5 + $0x88] sm:$0xff] %v4316
    %4371 = vst [vmem:[#allocation5 + $0x90] sm:$0xff] %v4319
    %4372 = vst [vmem:[#allocation5 + $0x98] sm:$0xff] %v4321
    %4373 = vst [vmem:[#allocation5 + $0xa0] sm:$0xff] %v4324
    %4374 = vst [vmem:[#allocation5 + $0xa8] sm:$0xff] %v4326
    %4375 = vst [vmem:[#allocation5 + $0xb0] sm:$0xff] %v4329
    %4376 = vst [vmem:[#allocation5 + $0xb8] sm:$0xff] %v4331
    %4377 = vst [vmem:[#allocation5 + $0xc0] sm:$0xff] %v4334
    %4378 = vst [vmem:[#allocation5 + $0xc8] sm:$0xff] %v4336
    %4379 = vst [vmem:[#allocation5 + $0xd0] sm:$0xff] %v4339
    %4380 = vst [vmem:[#allocation5 + $0xd8] sm:$0xff] %v4341
    %4381 = vst [vmem:[#allocation5 + $0xe0] sm:$0xff] %v4344
    %4382 = vst [vmem:[#allocation5 + $0xe8] sm:$0xff] %v4346
    %4383 = vst [vmem:[#allocation5 + $0xf0] sm:$0xff] %v4349
    %4384 = vst [vmem:[#allocation5 + $0xf8] sm:$0xff] %v4351
    // Predicated region
    $region26: #{tpu_custom_call.1} parent=1 // pred_check
      _
    $region27: #{tpu_custom_call.1} parent=1 // pred_check_branch
      %4386 = sbr.rel (0) target = $region29
    $region28: #{tpu_custom_call.1} parent=1 // pred_region
      %4388 = vsyncadd [#allocation4], 0
      %s4389 = sshll.u32 [#allocation5], 4
      %s4390 = int_to_ptr.vmem [resolvable:$true] %s4389
      %s4391 = sshll.u32 %s5, 4
      %s4392 = int_to_ptr.hbm [resolvable:$true] %s4391
      %4397 = dma.vmem_to_hbm [thread:$0]  %s4390, 4096, %s4392, [#allocation4], 128, 128, 8
    $region29: #{tpu_custom_call.1} parent=1 // pred_fallthru
      _
    // Predicated region
    $region30: #{tpu_custom_call.1} parent=1 // pred_check
      _
    $region31: #{tpu_custom_call.1} parent=1 // pred_check_branch
      %4399 = sbr.rel (0) target = $region33
    $region32: #{tpu_custom_call.1} parent=1 // pred_region
      %4401 = dma.done [#allocation4], 4096
    $region33: #{tpu_custom_call.1} parent=1 // pred_fallthru
      _
    %4402 = vsyncpa [#allocation3], 1
    %4403 = vsyncpa [#allocation4], 1

</llo_original>
